<compile_context>
chip_gen: v7x
topology: tpu7x:2x2x1
jax: 0.10.0
libtpu: 0.0.40
codegen_flags: <defaults>
</compile_context>

<pallas_src>
import functools
import math

import jax
import jax.numpy as jnp
from jax.experimental import pallas as pl
from jax.experimental.pallas import tpu as pltpu

# Explicit scoped-VMEM budget: safe on v7x (64 MiB physical) while leaving pipeline
# headroom on v5e/v6e (128 MiB physical).
_VMEM_LIMIT_BYTES = 48 * 1024 * 1024


# ----------------------------- tiling helpers -----------------------------

def _pick_tile(dim, cap, aligns):
    """Largest tile <= cap dividing `dim`, preferring coarser alignment.

    Returns the full extent when dim <= cap and None when no aligned divisor exists
    (the caller pads the array up to the tile instead of using a monolithic block)."""
    if dim <= cap:
        return dim
    for a in aligns:
        t = (cap // a) * a
        while t >= a:
            if dim % t == 0:
                return t
            t -= a
    return None


# ----------------------------- fused matmul kernel -----------------------------
# y = act( LN_in?(x) @ W + b )          (act in {None, silu, relu}; GLU uses a second W/b)
# y = residual + res_scale * y          (optional)
# y = LN_out(y)                         (optional; requires tn == N)

def _mm_kernel(*refs, act, glu, has_ln, has_res, has_oln, res_scale, eps):
    it = iter(refs)
    if has_ln:
        lng_ref = next(it)
        lnb_ref = next(it)
    x_ref = next(it)
    w_ref = next(it)
    b_ref = next(it)
    if glu:
        w2_ref = next(it)
        b2_ref = next(it)
    if has_res:
        r_ref = next(it)
    if has_oln:
        og_ref = next(it)
        ob_ref = next(it)
    o_ref = next(it)
    acc_ref = next(it)
    acc2_ref = next(it) if glu else None
    xln_ref = next(it) if has_ln else None

    @pl.when(pl.program_id(2) == 0)
    def _init():
        acc_ref[...] = jnp.zeros_like(acc_ref)
        if glu:
            acc2_ref[...] = jnp.zeros_like(acc2_ref)

    if has_ln:
        # LayerNorm over the full K row (tk == K is enforced by the wrapper).
        # Computed once per x tile (j == 0) and cached in VMEM for the other N tiles.
        @pl.when(pl.program_id(1) == 0)
        def _ln():
            xf = x_ref[...].astype(jnp.float32)
            mu = jnp.mean(xf, axis=-1, keepdims=True)
            var = jnp.mean(jnp.square(xf - mu), axis=-1, keepdims=True)
            xn = (xf - mu) * jax.lax.rsqrt(var + eps)
            xn = xn * lng_ref[...].astype(jnp.float32) + lnb_ref[...].astype(jnp.float32)
            xln_ref[...] = xn.astype(xln_ref.dtype)

        x = xln_ref[...]
    else:
        x = x_ref[...]

    # bf16 operands straight to the MXU; accumulate in f32.
    acc_ref[...] += jnp.dot(x, w_ref[...], preferred_element_type=jnp.float32)
    if glu:
        acc2_ref[...] += jnp.dot(x, w2_ref[...], preferred_element_type=jnp.float32)

    @pl.when(pl.program_id(2) == pl.num_programs(2) - 1)
    def _fin():
        y = acc_ref[...] + b_ref[...].astype(jnp.float32)
        if glu:
            g = acc2_ref[...] + b2_ref[...].astype(jnp.float32)
            y = y * jax.nn.sigmoid(g)
        elif act == "silu":
            y = y * jax.nn.sigmoid(y)
        elif act == "relu":
            y = jnp.maximum(y, 0.0)
        if has_res:
            y = r_ref[...].astype(jnp.float32) + res_scale * y
        if has_oln:
            mu = jnp.mean(y, axis=-1, keepdims=True)
            var = jnp.mean(jnp.square(y - mu), axis=-1, keepdims=True)
            y = (y - mu) * jax.lax.rsqrt(var + eps)
            y = y * og_ref[...].astype(jnp.float32) + ob_ref[...].astype(jnp.float32)
        o_ref[...] = y.astype(o_ref.dtype)


def fused_linear(x, w, b, *, act=None, glu_w2=None, glu_b2=None, ln=None,
                 residual=None, res_scale=1.0, out_ln=None, eps=1e-5):
    """Tiled, pipelined matmul with fused LN / activation / residual / output-LN."""
    lead = x.shape[:-1]
    K = x.shape[-1]
    N = w.shape[-1]
    x2 = x.reshape(-1, K)
    M = x2.shape[0]

    glu = glu_w2 is not None
    has_ln = ln is not None
    has_res = residual is not None
    has_oln = out_ln is not None

    res2 = residual.reshape(-1, N) if has_res else None

    # Lane-dense output: pad a misaligned N up to a 128 multiple (zero-padded
    # W/b/residual keep the math exact) and slice the columns back outside.
    # Skipped when the output LayerNorm is fused (it needs the true row length).
    N_orig = N
    if (N % 128 != 0) and not has_oln:
        n_pad = (-N) % 128
        w = jnp.pad(w, ((0, 0), (0, n_pad)))
        b = jnp.pad(b, ((0, n_pad),))
        if glu:
            glu_w2 = jnp.pad(glu_w2, ((0, 0), (0, n_pad)))
            glu_b2 = jnp.pad(glu_b2, ((0, n_pad),))
        if has_res:
            res2 = jnp.pad(res2, ((0, 0), (0, n_pad)))
        N = N + n_pad

    # Tile selection: bigger tm halves weight re-reads (weights are fetched M/tm
    # times); tn/tk prefer 256 alignment for the v6e/v7x 2x256^2 MXU.
    tm = _pick_tile(M, 512, (8,))
    if tm is None:
        tm = 512
    M_orig = M
    if M % tm != 0:                       # never fall back to a monolithic block
        m_pad = (-M) % tm
        x2 = jnp.pad(x2, ((0, m_pad), (0, 0)))
        if has_res:
            res2 = jnp.pad(res2, ((0, m_pad), (0, 0)))
        M = M + m_pad

    if has_oln:
        tn = N                             # output LN needs the full row
    else:
        tn = _pick_tile(N, 512, (256, 128)) or N   # TODO(synk): pad ragged N too
    if has_ln:
        tk = K                             # input LN needs the full row
    else:
        tk = _pick_tile(K, 512, (256, 128)) or K   # TODO(synk): pad ragged K too

    grid = (M // tm, N // tn, K // tk)

    in_arrays, in_specs = [], []
    if has_ln:
        g, bt = ln
        in_arrays += [g.reshape(1, K), bt.reshape(1, K)]
        in_specs += [pl.BlockSpec((1, K), lambda i, j, k: (0, 0))] * 2
    in_arrays += [x2, w, b.reshape(1, N)]
    in_specs += [
        pl.BlockSpec((tm, tk), lambda i, j, k: (i, k)),
        pl.BlockSpec((tk, tn), lambda i, j, k: (k, j)),
        pl.BlockSpec((1, tn), lambda i, j, k: (0, j)),
    ]
    if glu:
        in_arrays += [glu_w2, glu_b2.reshape(1, N)]
        in_specs += [
            pl.BlockSpec((tk, tn), lambda i, j, k: (k, j)),
            pl.BlockSpec((1, tn), lambda i, j, k: (0, j)),
        ]
    if has_res:
        in_arrays += [res2]
        in_specs += [pl.BlockSpec((tm, tn), lambda i, j, k: (i, j))]
    if has_oln:
        og, ob = out_ln
        in_arrays += [og.reshape(1, N), ob.reshape(1, N)]
        in_specs += [pl.BlockSpec((1, N), lambda i, j, k: (0, 0))] * 2

    scratch = [pltpu.VMEM((tm, tn), jnp.float32)]
    if glu:
        scratch.append(pltpu.VMEM((tm, tn), jnp.float32))
    if has_ln:
        scratch.append(pltpu.VMEM((tm, K), w.dtype))   # cached LN-normalized x tile

    out = pl.pallas_call(
        functools.partial(_mm_kernel, act=act, glu=glu, has_ln=has_ln,
                          has_res=has_res, has_oln=has_oln,
                          res_scale=res_scale, eps=eps),
        out_shape=jax.ShapeDtypeStruct((M, N), x.dtype),
        grid=grid,
        in_specs=in_specs,
        out_specs=pl.BlockSpec((tm, tn), lambda i, j, k: (i, j)),
        scratch_shapes=scratch,
        compiler_params=pltpu.CompilerParams(
            dimension_semantics=("parallel", "parallel", "arbitrary"),
            vmem_limit_bytes=_VMEM_LIMIT_BYTES),
    )(*in_arrays)
    out = out[:M_orig, :N_orig]
    return out.reshape(*lead, N_orig)


# ----------------------------- attention kernels -----------------------------
# Consumes the fused QKV tensor [B, S, 3D] directly (no split-head transposes) and writes
# each head's output straight into its lane strip of the [B, S, D] output.
# TODO(synk): flash-style KV tiling (online softmax) for long S on v7x's 64 MiB VMEM.

def _attn_head(q, k, v, scale):
    q = q * scale                                       # fold 1/sqrt(Dh) into the [S,Dh] tile
    s = jax.lax.dot_general(q, k, (((1,), (1,)), ((), ())),
                            preferred_element_type=jnp.float32)
    s = s - jnp.max(s, axis=-1, keepdims=True)
    p = jnp.exp(s)
    l = jnp.sum(p, axis=-1, keepdims=True)
    o = jnp.dot(p.astype(v.dtype), v, preferred_element_type=jnp.float32)
    return o * pl.reciprocal(l, approx=True)            # defer normalization to [S, Dh]


def _mhsa_kernel_headblk(q_ref, k_ref, v_ref, o_ref, *, scale):
    o_ref[0] = _attn_head(q_ref[0], k_ref[0], v_ref[0], scale).astype(o_ref.dtype)


def _mhsa_kernel_full(qkv_ref, o_ref, *, num_heads, scale):
    qkv = qkv_ref[0]                       # [S, 3D]
    D3 = qkv.shape[-1]
    D = D3 // 3
    Dh = D // num_heads
    for h in range(num_heads):             # static unroll; each head stored immediately
        q = qkv[:, h * Dh:(h + 1) * Dh]
        k = qkv[:, D + h * Dh:D + (h + 1) * Dh]
        v = qkv[:, 2 * D + h * Dh:2 * D + (h + 1) * Dh]
        o = _attn_head(q, k, v, scale)
        o_ref[0, :, h * Dh:(h + 1) * Dh] = o.astype(o_ref.dtype)


def mhsa_attention(qkv, num_heads):
    """qkv: [B, S, 3D] -> [B, S, D]."""
    B, S, D3 = qkv.shape
    D = D3 // 3
    Dh = D // num_heads
    scale = 1.0 / math.sqrt(Dh)

    if Dh % 128 == 0 and S % 8 == 0:
        # Head-blocked grid: per-head lane blocks (lane-dense stores), (B, heads) both
        # parallel so megacore has something to shard even at small per-chip B.
        return pl.pallas_call(
            functools.partial(_mhsa_kernel_headblk, scale=scale),
            out_shape=jax.ShapeDtypeStruct((B, S, D), qkv.dtype),
            grid=(B, num_heads),
            in_specs=[
                pl.BlockSpec((1, S, Dh), lambda b, h: (b, 0, h)),
                pl.BlockSpec((1, S, Dh), lambda b, h: (b, 0, num_heads + h)),
                pl.BlockSpec((1, S, Dh), lambda b, h: (b, 0, 2 * num_heads + h)),
            ],
            out_specs=pl.BlockSpec((1, S, Dh), lambda b, h: (b, 0, h)),
            compiler_params=pltpu.CompilerParams(
                dimension_semantics=("parallel", "parallel"),
                vmem_limit_bytes=_VMEM_LIMIT_BYTES),
        )(qkv, qkv, qkv)

    # Small-head fallback: whole [S, 3D] block per batch, per-head static slices.
    return pl.pallas_call(
        functools.partial(_mhsa_kernel_full, num_heads=num_heads, scale=scale),
        out_shape=jax.ShapeDtypeStruct((B, S, D), qkv.dtype),
        grid=(B,),
        in_specs=[pl.BlockSpec((1, S, D3), lambda b: (b, 0, 0))],
        out_specs=pl.BlockSpec((1, S, D), lambda b: (b, 0, 0)),
        compiler_params=pltpu.CompilerParams(dimension_semantics=("parallel",),
                                             vmem_limit_bytes=_VMEM_LIMIT_BYTES),
    )(qkv)


# ----------------------------- depthwise conv + BN(eval) + SiLU -----------------------------

def _dwconv_bn_silu_kernel(x_ref, w_ref, scale_ref, shift_ref, o_ref, *, K, pad):
    x = x_ref[0].astype(jnp.float32)                 # [S, D]
    S = x.shape[0]
    w = w_ref[...].astype(jnp.float32)               # [K, D]
    rows = jax.lax.broadcasted_iota(jnp.int32, (S, 1), 0)
    acc = jnp.zeros_like(x)
    for k in range(K):                               # static unroll over the taps
        off = k - pad
        if off == 0:
            xs = x
        else:
            # Sublane shift on the XLU (free next to the VALU FMAs); mask the rows
            # that wrapped around (the 'same'-padding halo). No scratch, no memset.
            xs = pltpu.roll(x, shift=(-off) % S, axis=0)
            if off > 0:
                xs = jnp.where(rows < S - off, xs, 0.0)
            else:
                xs = jnp.where(rows >= -off, xs, 0.0)
        acc = acc + xs * w[k, :][None, :]
    y = acc * scale_ref[...].astype(jnp.float32) + shift_ref[...].astype(jnp.float32)
    y = y * jax.nn.sigmoid(y)                        # SiLU
    o_ref[0] = y.astype(o_ref.dtype)


def depthwise_conv_bn_silu(x, w, bn_scale, bn_shift, kernel_size):
    """Depthwise conv along S ('same' padding, odd kernel) + BatchNorm(eval) + SiLU."""
    B, S, D = x.shape
    pad = (kernel_size - 1) // 2
    # TODO(synk): add S-tiling with a (K-1) halo for very long sequences (v7x VMEM).
    return pl.pallas_call(
        functools.partial(_dwconv_bn_silu_kernel, K=kernel_size, pad=pad),
        out_shape=jax.ShapeDtypeStruct((B, S, D), x.dtype),
        grid=(B,),
        in_specs=[
            pl.BlockSpec((1, S, D), lambda i: (i, 0, 0)),
            pl.BlockSpec((kernel_size, D), lambda i: (0, 0)),
            pl.BlockSpec((1, D), lambda i: (0, 0)),
            pl.BlockSpec((1, D), lambda i: (0, 0)),
        ],
        out_specs=pl.BlockSpec((1, S, D), lambda i: (i, 0, 0)),
        compiler_params=pltpu.CompilerParams(dimension_semantics=("parallel",),
                                             vmem_limit_bytes=_VMEM_LIMIT_BYTES),
    )(x, w, bn_scale.reshape(1, D), bn_shift.reshape(1, D))


# ----------------------------- model (functional) -----------------------------

def ffn_module(x, p, final_ln=None):
    # LN -> Linear(D,4D)+SiLU fused; Linear(4D,D) + half-step residual (+ block-final LN) fused.
    y = fused_linear(x, p["w1"], p["b1"], act="silu", ln=(p["ln_g"], p["ln_b"]))
    y = fused_linear(y, p["w2"], p["b2"], residual=x, res_scale=0.5, out_ln=final_ln)
    return y


def mhsa_module(x, p, num_heads):
    qkv = fused_linear(x, p["wqkv"], p["bqkv"], ln=(p["ln_g"], p["ln_b"]))   # fused LN + QKV
    o = mhsa_attention(qkv, num_heads)
    return fused_linear(o, p["wo"], p["bo"], residual=x, res_scale=1.0)


def conv_module(x, p, kernel_size):
    # LN -> pointwise conv (D->2D) + GLU fused (value / gate weight halves kept separate).
    y = fused_linear(x, p["pw1_wa"], p["pw1_ba"],
                     glu_w2=p["pw1_wb"], glu_b2=p["pw1_bb"],
                     ln=(p["ln_g"], p["ln_b"]))
    y = depthwise_conv_bn_silu(y, p["dw_w"], p["bn_scale"], p["bn_shift"], kernel_size)
    return fused_linear(y, p["pw2_w"], p["pw2_b"], residual=x, res_scale=1.0)


def conformer_block(x, p, num_heads, kernel_size):
    x = ffn_module(x, p["ffn1"])
    x = mhsa_module(x, p["mhsa"], num_heads)
    x = conv_module(x, p["conv"], kernel_size)
    # Block-final LayerNorm fused into ffn2's second linear epilogue.
    x = ffn_module(x, p["ffn2"], final_ln=(p["norm_g"], p["norm_b"]))
    return x


def conformer_forward(params, x, *, num_heads, kernel_size):
    # x: [B, 1, S, F]  (matches the PyTorch module's input convention).
    # transpose(2, 3) + the per-frame Linear prolog compose to operating on x[:, 0].
    # TODO(synk): Prolog source not provided; implemented as per-frame Linear(F, D) + SiLU.
    x = x[:, 0].astype(jnp.bfloat16)             # [B, S, F]; bf16 activations for the MXU
    x = fused_linear(x, params["prolog"]["w"], params["prolog"]["b"], act="silu")
    for bp in params["blocks"]:
        x = conformer_block(x, bp, num_heads, kernel_size)
    # TODO(synk): Epilog source not provided; Linear(D,hidden)+ReLU+Linear(hidden,n_class).
    x = fused_linear(x, params["epilog"]["w1"], params["epilog"]["b1"], act="relu")
    x = fused_linear(x, params["epilog"]["w2"], params["epilog"]["b2"])
    return x.astype(jnp.float32)                 # [B, S, n_class]


def init_params(key, in_features, encoder_dim, num_heads, kernel_size,
                hidden_size, n_class, n_blocks):
    D = encoder_dim
    assert D % num_heads == 0
    keys = iter(jax.random.split(key, 4096))

    def w_(shape, fan_in=None):
        fan_in = shape[0] if fan_in is None else fan_in
        bound = 1.0 / math.sqrt(fan_in)
        return jax.random.uniform(next(keys), shape, jnp.float32,
                                  -bound, bound).astype(jnp.bfloat16)   # bf16 MXU operands

    def dense(fan_in, fan_out):
        return w_((fan_in, fan_out)), jnp.zeros((fan_out,), jnp.float32)

    def ffn_p():
        w1, b1 = dense(D, 4 * D)
        w2, b2 = dense(4 * D, D)
        return dict(ln_g=jnp.ones((D,)), ln_b=jnp.zeros((D,)), w1=w1, b1=b1, w2=w2, b2=b2)

    def mhsa_p():
        wqkv, bqkv = dense(D, 3 * D)             # fused [Wq | Wk | Wv]
        wo, bo = dense(D, D)
        return dict(ln_g=jnp.ones((D,)), ln_b=jnp.zeros((D,)),
                    wqkv=wqkv, bqkv=bqkv, wo=wo, bo=bo)

    def conv_p():
        pw1_wa, pw1_ba = dense(D, D)             # GLU value half
        pw1_wb, pw1_bb = dense(D, D)             # GLU gate half
        # Depthwise Conv1d weight [D, 1, K] in PyTorch -> stored here as [K, D].
        dw_w = w_((kernel_size, D), fan_in=kernel_size)
        pw2_w, pw2_b = dense(D, D)
        eps = 1e-5
        bn_gamma, bn_beta = jnp.ones((D,)), jnp.zeros((D,))
        bn_mean, bn_var = jnp.zeros((D,)), jnp.ones((D,))
        bn_scale = bn_gamma * jax.lax.rsqrt(bn_var + eps)     # eval-mode BatchNorm folded
        bn_shift = bn_beta - bn_mean * bn_scale
        return dict(ln_g=jnp.ones((D,)), ln_b=jnp.zeros((D,)),
                    pw1_wa=pw1_wa, pw1_ba=pw1_ba, pw1_wb=pw1_wb, pw1_bb=pw1_bb,
                    dw_w=dw_w, bn_scale=bn_scale, bn_shift=bn_shift,
                    pw2_w=pw2_w, pw2_b=pw2_b)

    blocks = []
    for _ in range(n_blocks):
        blocks.append(dict(ffn1=ffn_p(), mhsa=mhsa_p(), conv=conv_p(), ffn2=ffn_p(),
                           norm_g=jnp.ones((D,)), norm_b=jnp.zeros((D,))))

    pw, pb = dense(in_features, D)
    ew1, eb1 = dense(D, hidden_size)
    ew2, eb2 = dense(hidden_size, n_class)
    return dict(prolog=dict(w=pw, b=pb),
                blocks=blocks,
                epilog=dict(w1=ew1, b1=eb1, w2=ew2, b2=eb2))


if __name__ == "__main__":
    B, S, F = 2, 8, 16
    encoder_dim, num_heads, kernel_size = 32, 4, 3
    hidden_size, n_class, n_blocks = 32, 8, 2

    key = jax.random.PRNGKey(0)
    kp, kx = jax.random.split(key)
    params = init_params(kp, F, encoder_dim, num_heads, kernel_size,
                         hidden_size, n_class, n_blocks)
    x = jax.random.normal(kx, (B, 1, S, F), jnp.float32)

    fwd = jax.jit(functools.partial(conformer_forward,
                                    num_heads=num_heads, kernel_size=kernel_size))
    out = fwd(params, x)
    out = jax.block_until_ready(out)
    assert out.shape == (B, S, n_class), out.shape
    assert jnp.all(jnp.isfinite(out))
    print("KERNEL_OK")
</pallas_src>

<mosaic_0001>
module attributes {stable_mosaic.version = 11 : i64} {
  func.func @_mm_kernel(%arg0: i32, %arg1: i32, %arg2: i32, %arg3: memref<16x16xbf16, #tpu.memory_space<vmem>>, %arg4: memref<16x128xbf16, #tpu.memory_space<vmem>>, %arg5: memref<1x128xf32, #tpu.memory_space<vmem>>, %arg6: memref<16x128xbf16, #tpu.memory_space<vmem>>, %arg7: memref<16x128xf32, #tpu.memory_space<vmem>>) attributes {dimension_semantics = [#tpu.dimension_semantics<parallel>, #tpu.dimension_semantics<parallel>, #tpu.dimension_semantics<arbitrary>], iteration_bounds = array<i64: 1, 1, 1>, scalar_prefetch = 0 : i64, scratch_operands = 1 : i64, tpu.core_type = #tpu.core_type<tc>, window_params = [{transform_indices = @transform_0, window_bounds = array<i64: 16, 16>}, {transform_indices = @transform_1, window_bounds = array<i64: 16, 128>}, {transform_indices = @transform_2, window_bounds = array<i64: 1, 128>}, {transform_indices = @transform_3, window_bounds = array<i64: 16, 128>}]} {
    %c0_i32 = arith.constant 0 : i32
    %0 = arith.cmpi eq, %arg2, %c0_i32 : i32
    %1 = arith.extui %0 : i1 to i32
    %c0_i32_0 = arith.constant 0 : i32
    %2 = arith.cmpi ne, %1, %c0_i32_0 : i32
    scf.if %2 {
      %cst_10 = arith.constant 0.000000e+00 : f32
      %12 = vector.broadcast %cst_10 : f32 to vector<16x128xf32>
      %c0_11 = arith.constant 0 : index
      %c0_12 = arith.constant 0 : index
      %13 = vector.load %arg7[%c0_11, %c0_12] : memref<16x128xf32, #tpu.memory_space<vmem>>, vector<16x128xf32>
      tpu.vector_store %arg7[%c0_11, %c0_12], %12 {strides = array<i32>} : memref<16x128xf32, #tpu.memory_space<vmem>>, vector<16x128xf32>,
    } else {
    }
    %c0 = arith.constant 0 : index
    %c0_1 = arith.constant 0 : index
    %3 = vector.load %arg3[%c0, %c0_1] : memref<16x16xbf16, #tpu.memory_space<vmem>>, vector<16x16xbf16>
    %c0_2 = arith.constant 0 : index
    %c0_3 = arith.constant 0 : index
    %4 = vector.load %arg7[%c0_2, %c0_3] : memref<16x128xf32, #tpu.memory_space<vmem>>, vector<16x128xf32>
    %c0_4 = arith.constant 0 : index
    %c0_5 = arith.constant 0 : index
    %5 = vector.load %arg4[%c0_4, %c0_5] : memref<16x128xbf16, #tpu.memory_space<vmem>>, vector<16x128xbf16>
    %cst = arith.constant dense<0.000000e+00> : vector<16x128xf32>
    %6 = tpu.matmul %3, %5, %cst {dimension_numbers = #tpu.dot_dimension_numbers<[1], [0], [0], [1], [0, 0, 1, 1], [], []>} : vector<16x16xbf16>, vector<16x128xbf16>, vector<16x128xf32> -> vector<16x128xf32>
    %7 = arith.addf %4, %6 : vector<16x128xf32>
    %c0_6 = arith.constant 0 : index
    %c0_7 = arith.constant 0 : index
    %8 = vector.load %arg7[%c0_6, %c0_7] : memref<16x128xf32, #tpu.memory_space<vmem>>, vector<16x128xf32>
    tpu.vector_store %arg7[%c0_6, %c0_7], %7 {strides = array<i32>} : memref<16x128xf32, #tpu.memory_space<vmem>>, vector<16x128xf32>,
    %c0_i32_8 = arith.constant 0 : i32
    %9 = arith.cmpi eq, %arg2, %c0_i32_8 : i32
    %10 = arith.extui %9 : i1 to i32
    %c0_i32_9 = arith.constant 0 : i32
    %11 = arith.cmpi ne, %10, %c0_i32_9 : i32
    scf.if %11 {
      %c0_10 = arith.constant 0 : index
      %c0_11 = arith.constant 0 : index
      %12 = vector.load %arg7[%c0_10, %c0_11] : memref<16x128xf32, #tpu.memory_space<vmem>>, vector<16x128xf32>
      %c0_12 = arith.constant 0 : index
      %c0_13 = arith.constant 0 : index
      %13 = vector.load %arg5[%c0_12, %c0_13] : memref<1x128xf32, #tpu.memory_space<vmem>>, vector<1x128xf32>
      %14 = vector.broadcast %13 : vector<1x128xf32> to vector<16x128xf32>
      %15 = arith.addf %12, %14 : vector<16x128xf32>
      %16 = arith.negf %15 : vector<16x128xf32>
      %17 = math.exp %16 : vector<16x128xf32>
      %cst_14 = arith.constant 1.000000e+00 : f32
      %18 = vector.broadcast %cst_14 : f32 to vector<16x128xf32>
      %19 = arith.addf %18, %17 : vector<16x128xf32>
      %20 = arith.divf %18, %19 : vector<16x128xf32>
      %21 = arith.mulf %15, %20 : vector<16x128xf32>
      %22 = arith.truncf %21 : vector<16x128xf32> to vector<16x128xbf16>
      %c0_15 = arith.constant 0 : index
      %c0_16 = arith.constant 0 : index
      %23 = vector.load %arg6[%c0_15, %c0_16] : memref<16x128xbf16, #tpu.memory_space<vmem>>, vector<16x128xbf16>
      tpu.vector_store %arg6[%c0_15, %c0_16], %22 {strides = array<i32>} : memref<16x128xbf16, #tpu.memory_space<vmem>>, vector<16x128xbf16>,
    } else {
    }
    return
  }
  func.func @transform_0(%arg0: i32, %arg1: i32, %arg2: i32) -> (i32, i32) {
    %c0_i32 = arith.constant 0 : i32
    return %arg0, %arg2 : i32, i32
  }
  func.func @transform_1(%arg0: i32, %arg1: i32, %arg2: i32) -> (i32, i32) {
    %c0_i32 = arith.constant 0 : i32
    return %arg2, %arg1 : i32, i32
  }
  func.func @transform_2(%arg0: i32, %arg1: i32, %arg2: i32) -> (i32, i32) {
    %c0_i32 = arith.constant 0 : i32
    %c0_i32_0 = arith.constant 0 : i32
    return %c0_i32, %arg1 : i32, i32
  }
  func.func @transform_3(%arg0: i32, %arg1: i32, %arg2: i32) -> (i32, i32) {
    %c0_i32 = arith.constant 0 : i32
    return %arg0, %arg1 : i32, i32
  }
}

module attributes {stable_mosaic.version = 11 : i64} {
  func.func @_mm_kernel(%arg0: i32, %arg1: i32, %arg2: i32, %arg3: memref<16x128xbf16, #tpu.memory_space<vmem>>, %arg4: memref<128x128xbf16, #tpu.memory_space<vmem>>, %arg5: memref<1x128xf32, #tpu.memory_space<vmem>>, %arg6: memref<16x128xbf16, #tpu.memory_space<vmem>>, %arg7: memref<16x128xbf16, #tpu.memory_space<vmem>>, %arg8: memref<16x128xf32, #tpu.memory_space<vmem>>) attributes {dimension_semantics = [#tpu.dimension_semantics<parallel>, #tpu.dimension_semantics<parallel>, #tpu.dimension_semantics<arbitrary>], iteration_bounds = array<i64: 1, 1, 1>, scalar_prefetch = 0 : i64, scratch_operands = 1 : i64, tpu.core_type = #tpu.core_type<tc>, window_params = [{transform_indices = @transform_0, window_bounds = array<i64: 16, 128>}, {transform_indices = @transform_1, window_bounds = array<i64: 128, 128>}, {transform_indices = @transform_2, window_bounds = array<i64: 1, 128>}, {transform_indices = @transform_3, window_bounds = array<i64: 16, 128>}, {transform_indices = @transform_4, window_bounds = array<i64: 16, 128>}]} {
    %c0_i32 = arith.constant 0 : i32
    %0 = arith.cmpi eq, %arg2, %c0_i32 : i32
    %1 = arith.extui %0 : i1 to i32
    %c0_i32_0 = arith.constant 0 : i32
    %2 = arith.cmpi ne, %1, %c0_i32_0 : i32
    scf.if %2 {
      %cst_10 = arith.constant 0.000000e+00 : f32
      %12 = vector.broadcast %cst_10 : f32 to vector<16x128xf32>
      %c0_11 = arith.constant 0 : index
      %c0_12 = arith.constant 0 : index
      %13 = vector.load %arg8[%c0_11, %c0_12] : memref<16x128xf32, #tpu.memory_space<vmem>>, vector<16x128xf32>
      tpu.vector_store %arg8[%c0_11, %c0_12], %12 {strides = array<i32>} : memref<16x128xf32, #tpu.memory_space<vmem>>, vector<16x128xf32>,
    } else {
    }
    %c0 = arith.constant 0 : index
    %c0_1 = arith.constant 0 : index
    %3 = vector.load %arg3[%c0, %c0_1] : memref<16x128xbf16, #tpu.memory_space<vmem>>, vector<16x128xbf16>
    %c0_2 = arith.constant 0 : index
    %c0_3 = arith.constant 0 : index
    %4 = vector.load %arg8[%c0_2, %c0_3] : memref<16x128xf32, #tpu.memory_space<vmem>>, vector<16x128xf32>
    %c0_4 = arith.constant 0 : index
    %c0_5 = arith.constant 0 : index
    %5 = vector.load %arg4[%c0_4, %c0_5] : memref<128x128xbf16, #tpu.memory_space<vmem>>, vector<128x128xbf16>
    %cst = arith.constant dense<0.000000e+00> : vector<16x128xf32>
    %6 = tpu.matmul %3, %5, %cst {dimension_numbers = #tpu.dot_dimension_numbers<[1], [0], [0], [1], [0, 0, 1, 1], [], []>} : vector<16x128xbf16>, vector<128x128xbf16>, vector<16x128xf32> -> vector<16x128xf32>
    %7 = arith.addf %4, %6 : vector<16x128xf32>
    %c0_6 = arith.constant 0 : index
    %c0_7 = arith.constant 0 : index
    %8 = vector.load %arg8[%c0_6, %c0_7] : memref<16x128xf32, #tpu.memory_space<vmem>>, vector<16x128xf32>
    tpu.vector_store %arg8[%c0_6, %c0_7], %7 {strides = array<i32>} : memref<16x128xf32, #tpu.memory_space<vmem>>, vector<16x128xf32>,
    %c0_i32_8 = arith.constant 0 : i32
    %9 = arith.cmpi eq, %arg2, %c0_i32_8 : i32
    %10 = arith.extui %9 : i1 to i32
    %c0_i32_9 = arith.constant 0 : i32
    %11 = arith.cmpi ne, %10, %c0_i32_9 : i32
    scf.if %11 {
      %c0_10 = arith.constant 0 : index
      %c0_11 = arith.constant 0 : index
      %12 = vector.load %arg8[%c0_10, %c0_11] : memref<16x128xf32, #tpu.memory_space<vmem>>, vector<16x128xf32>
      %c0_12 = arith.constant 0 : index
      %c0_13 = arith.constant 0 : index
      %13 = vector.load %arg5[%c0_12, %c0_13] : memref<1x128xf32, #tpu.memory_space<vmem>>, vector<1x128xf32>
      %14 = vector.broadcast %13 : vector<1x128xf32> to vector<16x128xf32>
      %15 = arith.addf %12, %14 : vector<16x128xf32>
      %c0_14 = arith.constant 0 : index
      %c0_15 = arith.constant 0 : index
      %16 = vector.load %arg6[%c0_14, %c0_15] : memref<16x128xbf16, #tpu.memory_space<vmem>>, vector<16x128xbf16>
      %17 = arith.extf %16 : vector<16x128xbf16> to vector<16x128xf32>
      %cst_16 = arith.constant 5.000000e-01 : f32
      %18 = vector.broadcast %cst_16 : f32 to vector<16x128xf32>
      %19 = arith.mulf %18, %15 : vector<16x128xf32>
      %20 = arith.addf %17, %19 : vector<16x128xf32>
      %21 = arith.truncf %20 : vector<16x128xf32> to vector<16x128xbf16>
      %c0_17 = arith.constant 0 : index
      %c0_18 = arith.constant 0 : index
      %22 = vector.load %arg7[%c0_17, %c0_18] : memref<16x128xbf16, #tpu.memory_space<vmem>>, vector<16x128xbf16>
      tpu.vector_store %arg7[%c0_17, %c0_18], %21 {strides = array<i32>} : memref<16x128xbf16, #tpu.memory_space<vmem>>, vector<16x128xbf16>,
    } else {
    }
    return
  }
  func.func @transform_0(%arg0: i32, %arg1: i32, %arg2: i32) -> (i32, i32) {
    %c0_i32 = arith.constant 0 : i32
    return %arg0, %arg2 : i32, i32
  }
  func.func @transform_1(%arg0: i32, %arg1: i32, %arg2: i32) -> (i32, i32) {
    %c0_i32 = arith.constant 0 : i32
    return %arg2, %arg1 : i32, i32
  }
  func.func @transform_2(%arg0: i32, %arg1: i32, %arg2: i32) -> (i32, i32) {
    %c0_i32 = arith.constant 0 : i32
    %c0_i32_0 = arith.constant 0 : i32
    return %c0_i32, %arg1 : i32, i32
  }
  func.func @transform_3(%arg0: i32, %arg1: i32, %arg2: i32) -> (i32, i32) {
    %c0_i32 = arith.constant 0 : i32
    return %arg0, %arg1 : i32, i32
  }
  func.func @transform_4(%arg0: i32, %arg1: i32, %arg2: i32) -> (i32, i32) {
    %c0_i32 = arith.constant 0 : i32
    return %arg0, %arg1 : i32, i32
  }
}

module attributes {stable_mosaic.version = 11 : i64} {
  func.func @_mm_kernel(%arg0: i32, %arg1: i32, %arg2: i32, %arg3: memref<1x32xf32, #tpu.memory_space<vmem>>, %arg4: memref<1x32xf32, #tpu.memory_space<vmem>>, %arg5: memref<16x32xbf16, #tpu.memory_space<vmem>>, %arg6: memref<32x128xbf16, #tpu.memory_space<vmem>>, %arg7: memref<1x128xf32, #tpu.memory_space<vmem>>, %arg8: memref<16x128xbf16, #tpu.memory_space<vmem>>, %arg9: memref<16x128xf32, #tpu.memory_space<vmem>>, %arg10: memref<16x32xbf16, #tpu.memory_space<vmem>>) attributes {dimension_semantics = [#tpu.dimension_semantics<parallel>, #tpu.dimension_semantics<parallel>, #tpu.dimension_semantics<arbitrary>], iteration_bounds = array<i64: 1, 1, 1>, scalar_prefetch = 0 : i64, scratch_operands = 2 : i64, tpu.core_type = #tpu.core_type<tc>, window_params = [{pipeline_mode = #tpu.pipeline_mode<synchronous>, transform_indices = @transform_0, window_bounds = array<i64: 1, 32>}, {pipeline_mode = #tpu.pipeline_mode<synchronous>, transform_indices = @transform_1, window_bounds = array<i64: 1, 32>}, {transform_indices = @transform_2, window_bounds = array<i64: 16, 32>}, {transform_indices = @transform_3, window_bounds = array<i64: 32, 128>}, {transform_indices = @transform_4, window_bounds = array<i64: 1, 128>}, {transform_indices = @transform_5, window_bounds = array<i64: 16, 128>}]} {
    %c0_i32 = arith.constant 0 : i32
    %0 = arith.cmpi eq, %arg2, %c0_i32 : i32
    %1 = arith.extui %0 : i1 to i32
    %c0_i32_0 = arith.constant 0 : i32
    %2 = arith.cmpi ne, %1, %c0_i32_0 : i32
    scf.if %2 {
      %cst_12 = arith.constant 0.000000e+00 : f32
      %15 = vector.broadcast %cst_12 : f32 to vector<16x128xf32>
      %c0_13 = arith.constant 0 : index
      %c0_14 = arith.constant 0 : index
      %16 = vector.load %arg9[%c0_13, %c0_14] : memref<16x128xf32, #tpu.memory_space<vmem>>, vector<16x128xf32>
      tpu.vector_store %arg9[%c0_13, %c0_14], %15 {strides = array<i32>} : memref<16x128xf32, #tpu.memory_space<vmem>>, vector<16x128xf32>,
    } else {
    }
    %c0_i32_1 = arith.constant 0 : i32
    %3 = arith.cmpi eq, %arg1, %c0_i32_1 : i32
    %4 = arith.extui %3 : i1 to i32
    %c0_i32_2 = arith.constant 0 : i32
    %5 = arith.cmpi ne, %4, %c0_i32_2 : i32
    scf.if %5 {
      %c0_12 = arith.constant 0 : index
      %c0_13 = arith.constant 0 : index
      %15 = vector.load %arg5[%c0_12, %c0_13] : memref<16x32xbf16, #tpu.memory_space<vmem>>, vector<16x32xbf16>
      %16 = arith.extf %15 : vector<16x32xbf16> to vector<16x32xf32>
      %cst_14 = arith.constant dense<0.000000e+00> : vector<16xf32>
      %17 = vector.multi_reduction <add>, %16, %cst_14 [1] : vector<16x32xf32> to vector<16xf32>
      %18 = vector.shape_cast %17 : vector<16xf32> to vector<16x1xf32>
      %cst_15 = arith.constant 3.200000e+01 : f32
      %19 = vector.broadcast %cst_15 : f32 to vector<16x1xf32>
      %20 = arith.divf %18, %19 : vector<16x1xf32>
      %21 = vector.broadcast %20 : vector<16x1xf32> to vector<16x32xf32>
      %22 = arith.subf %16, %21 : vector<16x32xf32>
      %23 = arith.mulf %22, %22 : vector<16x32xf32>
      %cst_16 = arith.constant dense<0.000000e+00> : vector<16xf32>
      %24 = vector.multi_reduction <add>, %23, %cst_16 [1] : vector<16x32xf32> to vector<16xf32>
      %25 = vector.shape_cast %24 : vector<16xf32> to vector<16x1xf32>
      %cst_17 = arith.constant 3.200000e+01 : f32
      %26 = vector.broadcast %cst_17 : f32 to vector<16x1xf32>
      %27 = arith.divf %25, %26 : vector<16x1xf32>
      %28 = vector.broadcast %20 : vector<16x1xf32> to vector<16x32xf32>
      %29 = arith.subf %16, %28 : vector<16x32xf32>
      %cst_18 = arith.constant 9.99999974E-6 : f32
      %30 = vector.broadcast %cst_18 : f32 to vector<16x1xf32>
      %31 = arith.addf %27, %30 : vector<16x1xf32>
      %32 = math.rsqrt %31 : vector<16x1xf32>
      %33 = vector.broadcast %32 : vector<16x1xf32> to vector<16x32xf32>
      %34 = arith.mulf %29, %33 : vector<16x32xf32>
      %c0_19 = arith.constant 0 : index
      %c0_20 = arith.constant 0 : index
      %35 = vector.load %arg3[%c0_19, %c0_20] : memref<1x32xf32, #tpu.memory_space<vmem>>, vector<1x32xf32>
      %36 = vector.broadcast %35 : vector<1x32xf32> to vector<16x32xf32>
      %37 = arith.mulf %34, %36 : vector<16x32xf32>
      %c0_21 = arith.constant 0 : index
      %c0_22 = arith.constant 0 : index
      %38 = vector.load %arg4[%c0_21, %c0_22] : memref<1x32xf32, #tpu.memory_space<vmem>>, vector<1x32xf32>
      %39 = vector.broadcast %38 : vector<1x32xf32> to vector<16x32xf32>
      %40 = arith.addf %37, %39 : vector<16x32xf32>
      %41 = arith.truncf %40 : vector<16x32xf32> to vector<16x32xbf16>
      %c0_23 = arith.constant 0 : index
      %c0_24 = arith.constant 0 : index
      %42 = vector.load %arg10[%c0_23, %c0_24] : memref<16x32xbf16, #tpu.memory_space<vmem>>, vector<16x32xbf16>
      tpu.vector_store %arg10[%c0_23, %c0_24], %41 {strides = array<i32>} : memref<16x32xbf16, #tpu.memory_space<vmem>>, vector<16x32xbf16>,
    } else {
    }
    %c0 = arith.constant 0 : index
    %c0_3 = arith.constant 0 : index
    %6 = vector.load %arg10[%c0, %c0_3] : memref<16x32xbf16, #tpu.memory_space<vmem>>, vector<16x32xbf16>
    %c0_4 = arith.constant 0 : index
    %c0_5 = arith.constant 0 : index
    %7 = vector.load %arg9[%c0_4, %c0_5] : memref<16x128xf32, #tpu.memory_space<vmem>>, vector<16x128xf32>
    %c0_6 = arith.constant 0 : index
    %c0_7 = arith.constant 0 : index
    %8 = vector.load %arg6[%c0_6, %c0_7] : memref<32x128xbf16, #tpu.memory_space<vmem>>, vector<32x128xbf16>
    %cst = arith.constant dense<0.000000e+00> : vector<16x128xf32>
    %9 = tpu.matmul %6, %8, %cst {dimension_numbers = #tpu.dot_dimension_numbers<[1], [0], [0], [1], [0, 0, 1, 1], [], []>} : vector<16x32xbf16>, vector<32x128xbf16>, vector<16x128xf32> -> vector<16x128xf32>
    %10 = arith.addf %7, %9 : vector<16x128xf32>
    %c0_8 = arith.constant 0 : index
    %c0_9 = arith.constant 0 : index
    %11 = vector.load %arg9[%c0_8, %c0_9] : memref<16x128xf32, #tpu.memory_space<vmem>>, vector<16x128xf32>
    tpu.vector_store %arg9[%c0_8, %c0_9], %10 {strides = array<i32>} : memref<16x128xf32, #tpu.memory_space<vmem>>, vector<16x128xf32>,
    %c0_i32_10 = arith.constant 0 : i32
    %12 = arith.cmpi eq, %arg2, %c0_i32_10 : i32
    %13 = arith.extui %12 : i1 to i32
    %c0_i32_11 = arith.constant 0 : i32
    %14 = arith.cmpi ne, %13, %c0_i32_11 : i32
    scf.if %14 {
      %c0_12 = arith.constant 0 : index
      %c0_13 = arith.constant 0 : index
      %15 = vector.load %arg9[%c0_12, %c0_13] : memref<16x128xf32, #tpu.memory_space<vmem>>, vector<16x128xf32>
      %c0_14 = arith.constant 0 : index
      %c0_15 = arith.constant 0 : index
      %16 = vector.load %arg7[%c0_14, %c0_15] : memref<1x128xf32, #tpu.memory_space<vmem>>, vector<1x128xf32>
      %17 = vector.broadcast %16 : vector<1x128xf32> to vector<16x128xf32>
      %18 = arith.addf %15, %17 : vector<16x128xf32>
      %19 = arith.negf %18 : vector<16x128xf32>
      %20 = math.exp %19 : vector<16x128xf32>
      %cst_16 = arith.constant 1.000000e+00 : f32
      %21 = vector.broadcast %cst_16 : f32 to vector<16x128xf32>
      %22 = arith.addf %21, %20 : vector<16x128xf32>
      %23 = arith.divf %21, %22 : vector<16x128xf32>
      %24 = arith.mulf %18, %23 : vector<16x128xf32>
      %25 = arith.truncf %24 : vector<16x128xf32> to vector<16x128xbf16>
      %c0_17 = arith.constant 0 : index
      %c0_18 = arith.constant 0 : index
      %26 = vector.load %arg8[%c0_17, %c0_18] : memref<16x128xbf16, #tpu.memory_space<vmem>>, vector<16x128xbf16>
      tpu.vector_store %arg8[%c0_17, %c0_18], %25 {strides = array<i32>} : memref<16x128xbf16, #tpu.memory_space<vmem>>, vector<16x128xbf16>,
    } else {
    }
    return
  }
  func.func @transform_0(%arg0: i32, %arg1: i32, %arg2: i32) -> (i32, i32) {
    %c0_i32 = arith.constant 0 : i32
    %c0_i32_0 = arith.constant 0 : i32
    %c0_i32_1 = arith.constant 0 : i32
    return %c0_i32, %c0_i32_0 : i32, i32
  }
  func.func @transform_1(%arg0: i32, %arg1: i32, %arg2: i32) -> (i32, i32) {
    %c0_i32 = arith.constant 0 : i32
    %c0_i32_0 = arith.constant 0 : i32
    %c0_i32_1 = arith.constant 0 : i32
    return %c0_i32, %c0_i32_0 : i32, i32
  }
  func.func @transform_2(%arg0: i32, %arg1: i32, %arg2: i32) -> (i32, i32) {
    %c0_i32 = arith.constant 0 : i32
    return %arg0, %arg2 : i32, i32
  }
  func.func @transform_3(%arg0: i32, %arg1: i32, %arg2: i32) -> (i32, i32) {
    %c0_i32 = arith.constant 0 : i32
    return %arg2, %arg1 : i32, i32
  }
  func.func @transform_4(%arg0: i32, %arg1: i32, %arg2: i32) -> (i32, i32) {
    %c0_i32 = arith.constant 0 : i32
    %c0_i32_0 = arith.constant 0 : i32
    return %c0_i32, %arg1 : i32, i32
  }
  func.func @transform_5(%arg0: i32, %arg1: i32, %arg2: i32) -> (i32, i32) {
    %c0_i32 = arith.constant 0 : i32
    return %arg0, %arg1 : i32, i32
  }
}

module attributes {stable_mosaic.version = 11 : i64} {
  func.func @_mm_kernel(%arg0: i32, %arg1: i32, %arg2: i32, %arg3: memref<1x32xf32, #tpu.memory_space<vmem>>, %arg4: memref<1x32xf32, #tpu.memory_space<vmem>>, %arg5: memref<16x32xbf16, #tpu.memory_space<vmem>>, %arg6: memref<32x128xbf16, #tpu.memory_space<vmem>>, %arg7: memref<1x128xf32, #tpu.memory_space<vmem>>, %arg8: memref<16x128xbf16, #tpu.memory_space<vmem>>, %arg9: memref<16x128xf32, #tpu.memory_space<vmem>>, %arg10: memref<16x32xbf16, #tpu.memory_space<vmem>>) attributes {dimension_semantics = [#tpu.dimension_semantics<parallel>, #tpu.dimension_semantics<parallel>, #tpu.dimension_semantics<arbitrary>], iteration_bounds = array<i64: 1, 1, 1>, scalar_prefetch = 0 : i64, scratch_operands = 2 : i64, tpu.core_type = #tpu.core_type<tc>, window_params = [{pipeline_mode = #tpu.pipeline_mode<synchronous>, transform_indices = @transform_0, window_bounds = array<i64: 1, 32>}, {pipeline_mode = #tpu.pipeline_mode<synchronous>, transform_indices = @transform_1, window_bounds = array<i64: 1, 32>}, {transform_indices = @transform_2, window_bounds = array<i64: 16, 32>}, {transform_indices = @transform_3, window_bounds = array<i64: 32, 128>}, {transform_indices = @transform_4, window_bounds = array<i64: 1, 128>}, {transform_indices = @transform_5, window_bounds = array<i64: 16, 128>}]} {
    %c0_i32 = arith.constant 0 : i32
    %0 = arith.cmpi eq, %arg2, %c0_i32 : i32
    %1 = arith.extui %0 : i1 to i32
    %c0_i32_0 = arith.constant 0 : i32
    %2 = arith.cmpi ne, %1, %c0_i32_0 : i32
    scf.if %2 {
      %cst_12 = arith.constant 0.000000e+00 : f32
      %15 = vector.broadcast %cst_12 : f32 to vector<16x128xf32>
      %c0_13 = arith.constant 0 : index
      %c0_14 = arith.constant 0 : index
      %16 = vector.load %arg9[%c0_13, %c0_14] : memref<16x128xf32, #tpu.memory_space<vmem>>, vector<16x128xf32>
      tpu.vector_store %arg9[%c0_13, %c0_14], %15 {strides = array<i32>} : memref<16x128xf32, #tpu.memory_space<vmem>>, vector<16x128xf32>,
    } else {
    }
    %c0_i32_1 = arith.constant 0 : i32
    %3 = arith.cmpi eq, %arg1, %c0_i32_1 : i32
    %4 = arith.extui %3 : i1 to i32
    %c0_i32_2 = arith.constant 0 : i32
    %5 = arith.cmpi ne, %4, %c0_i32_2 : i32
    scf.if %5 {
      %c0_12 = arith.constant 0 : index
      %c0_13 = arith.constant 0 : index
      %15 = vector.load %arg5[%c0_12, %c0_13] : memref<16x32xbf16, #tpu.memory_space<vmem>>, vector<16x32xbf16>
      %16 = arith.extf %15 : vector<16x32xbf16> to vector<16x32xf32>
      %cst_14 = arith.constant dense<0.000000e+00> : vector<16xf32>
      %17 = vector.multi_reduction <add>, %16, %cst_14 [1] : vector<16x32xf32> to vector<16xf32>
      %18 = vector.shape_cast %17 : vector<16xf32> to vector<16x1xf32>
      %cst_15 = arith.constant 3.200000e+01 : f32
      %19 = vector.broadcast %cst_15 : f32 to vector<16x1xf32>
      %20 = arith.divf %18, %19 : vector<16x1xf32>
      %21 = vector.broadcast %20 : vector<16x1xf32> to vector<16x32xf32>
      %22 = arith.subf %16, %21 : vector<16x32xf32>
      %23 = arith.mulf %22, %22 : vector<16x32xf32>
      %cst_16 = arith.constant dense<0.000000e+00> : vector<16xf32>
      %24 = vector.multi_reduction <add>, %23, %cst_16 [1] : vector<16x32xf32> to vector<16xf32>
      %25 = vector.shape_cast %24 : vector<16xf32> to vector<16x1xf32>
      %cst_17 = arith.constant 3.200000e+01 : f32
      %26 = vector.broadcast %cst_17 : f32 to vector<16x1xf32>
      %27 = arith.divf %25, %26 : vector<16x1xf32>
      %28 = vector.broadcast %20 : vector<16x1xf32> to vector<16x32xf32>
      %29 = arith.subf %16, %28 : vector<16x32xf32>
      %cst_18 = arith.constant 9.99999974E-6 : f32
      %30 = vector.broadcast %cst_18 : f32 to vector<16x1xf32>
      %31 = arith.addf %27, %30 : vector<16x1xf32>
      %32 = math.rsqrt %31 : vector<16x1xf32>
      %33 = vector.broadcast %32 : vector<16x1xf32> to vector<16x32xf32>
      %34 = arith.mulf %29, %33 : vector<16x32xf32>
      %c0_19 = arith.constant 0 : index
      %c0_20 = arith.constant 0 : index
      %35 = vector.load %arg3[%c0_19, %c0_20] : memref<1x32xf32, #tpu.memory_space<vmem>>, vector<1x32xf32>
      %36 = vector.broadcast %35 : vector<1x32xf32> to vector<16x32xf32>
      %37 = arith.mulf %34, %36 : vector<16x32xf32>
      %c0_21 = arith.constant 0 : index
      %c0_22 = arith.constant 0 : index
      %38 = vector.load %arg4[%c0_21, %c0_22] : memref<1x32xf32, #tpu.memory_space<vmem>>, vector<1x32xf32>
      %39 = vector.broadcast %38 : vector<1x32xf32> to vector<16x32xf32>
      %40 = arith.addf %37, %39 : vector<16x32xf32>
      %41 = arith.truncf %40 : vector<16x32xf32> to vector<16x32xbf16>
      %c0_23 = arith.constant 0 : index
      %c0_24 = arith.constant 0 : index
      %42 = vector.load %arg10[%c0_23, %c0_24] : memref<16x32xbf16, #tpu.memory_space<vmem>>, vector<16x32xbf16>
      tpu.vector_store %arg10[%c0_23, %c0_24], %41 {strides = array<i32>} : memref<16x32xbf16, #tpu.memory_space<vmem>>, vector<16x32xbf16>,
    } else {
    }
    %c0 = arith.constant 0 : index
    %c0_3 = arith.constant 0 : index
    %6 = vector.load %arg10[%c0, %c0_3] : memref<16x32xbf16, #tpu.memory_space<vmem>>, vector<16x32xbf16>
    %c0_4 = arith.constant 0 : index
    %c0_5 = arith.constant 0 : index
    %7 = vector.load %arg9[%c0_4, %c0_5] : memref<16x128xf32, #tpu.memory_space<vmem>>, vector<16x128xf32>
    %c0_6 = arith.constant 0 : index
    %c0_7 = arith.constant 0 : index
    %8 = vector.load %arg6[%c0_6, %c0_7] : memref<32x128xbf16, #tpu.memory_space<vmem>>, vector<32x128xbf16>
    %cst = arith.constant dense<0.000000e+00> : vector<16x128xf32>
    %9 = tpu.matmul %6, %8, %cst {dimension_numbers = #tpu.dot_dimension_numbers<[1], [0], [0], [1], [0, 0, 1, 1], [], []>} : vector<16x32xbf16>, vector<32x128xbf16>, vector<16x128xf32> -> vector<16x128xf32>
    %10 = arith.addf %7, %9 : vector<16x128xf32>
    %c0_8 = arith.constant 0 : index
    %c0_9 = arith.constant 0 : index
    %11 = vector.load %arg9[%c0_8, %c0_9] : memref<16x128xf32, #tpu.memory_space<vmem>>, vector<16x128xf32>
    tpu.vector_store %arg9[%c0_8, %c0_9], %10 {strides = array<i32>} : memref<16x128xf32, #tpu.memory_space<vmem>>, vector<16x128xf32>,
    %c0_i32_10 = arith.constant 0 : i32
    %12 = arith.cmpi eq, %arg2, %c0_i32_10 : i32
    %13 = arith.extui %12 : i1 to i32
    %c0_i32_11 = arith.constant 0 : i32
    %14 = arith.cmpi ne, %13, %c0_i32_11 : i32
    scf.if %14 {
      %c0_12 = arith.constant 0 : index
      %c0_13 = arith.constant 0 : index
      %15 = vector.load %arg9[%c0_12, %c0_13] : memref<16x128xf32, #tpu.memory_space<vmem>>, vector<16x128xf32>
      %c0_14 = arith.constant 0 : index
      %c0_15 = arith.constant 0 : index
      %16 = vector.load %arg7[%c0_14, %c0_15] : memref<1x128xf32, #tpu.memory_space<vmem>>, vector<1x128xf32>
      %17 = vector.broadcast %16 : vector<1x128xf32> to vector<16x128xf32>
      %18 = arith.addf %15, %17 : vector<16x128xf32>
      %19 = arith.truncf %18 : vector<16x128xf32> to vector<16x128xbf16>
      %c0_16 = arith.constant 0 : index
      %c0_17 = arith.constant 0 : index
      %20 = vector.load %arg8[%c0_16, %c0_17] : memref<16x128xbf16, #tpu.memory_space<vmem>>, vector<16x128xbf16>
      tpu.vector_store %arg8[%c0_16, %c0_17], %19 {strides = array<i32>} : memref<16x128xbf16, #tpu.memory_space<vmem>>, vector<16x128xbf16>,
    } else {
    }
    return
  }
  func.func @transform_0(%arg0: i32, %arg1: i32, %arg2: i32) -> (i32, i32) {
    %c0_i32 = arith.constant 0 : i32
    %c0_i32_0 = arith.constant 0 : i32
    %c0_i32_1 = arith.constant 0 : i32
    return %c0_i32, %c0_i32_0 : i32, i32
  }
  func.func @transform_1(%arg0: i32, %arg1: i32, %arg2: i32) -> (i32, i32) {
    %c0_i32 = arith.constant 0 : i32
    %c0_i32_0 = arith.constant 0 : i32
    %c0_i32_1 = arith.constant 0 : i32
    return %c0_i32, %c0_i32_0 : i32, i32
  }
  func.func @transform_2(%arg0: i32, %arg1: i32, %arg2: i32) -> (i32, i32) {
    %c0_i32 = arith.constant 0 : i32
    return %arg0, %arg2 : i32, i32
  }
  func.func @transform_3(%arg0: i32, %arg1: i32, %arg2: i32) -> (i32, i32) {
    %c0_i32 = arith.constant 0 : i32
    return %arg2, %arg1 : i32, i32
  }
  func.func @transform_4(%arg0: i32, %arg1: i32, %arg2: i32) -> (i32, i32) {
    %c0_i32 = arith.constant 0 : i32
    %c0_i32_0 = arith.constant 0 : i32
    return %c0_i32, %arg1 : i32, i32
  }
  func.func @transform_5(%arg0: i32, %arg1: i32, %arg2: i32) -> (i32, i32) {
    %c0_i32 = arith.constant 0 : i32
    return %arg0, %arg1 : i32, i32
  }
}

module attributes {stable_mosaic.version = 11 : i64} {
  func.func @_mhsa_kernel_full(%arg0: i32, %arg1: memref<1x8x96xbf16, #tpu.memory_space<vmem>>, %arg2: memref<1x8x32xbf16, #tpu.memory_space<vmem>>) attributes {dimension_semantics = [#tpu.dimension_semantics<parallel>], iteration_bounds = array<i64: 2>, scalar_prefetch = 0 : i64, scratch_operands = 0 : i64, tpu.core_type = #tpu.core_type<tc>, window_params = [{transform_indices = @transform_0, window_bounds = array<i64: 1, 8, 96>}, {transform_indices = @transform_1, window_bounds = array<i64: 1, 8, 32>}]} {
    %c0 = arith.constant 0 : index
    %c0_0 = arith.constant 0 : index
    %c0_1 = arith.constant 0 : index
    %0 = vector.load %arg1[%c0, %c0_0, %c0_1] : memref<1x8x96xbf16, #tpu.memory_space<vmem>>, vector<1x8x96xbf16>
    %1 = vector.shape_cast %0 : vector<1x8x96xbf16> to vector<8x96xbf16>
    %2 = vector.extract_strided_slice %1 {offsets = [0, 0], sizes = [8, 8], strides = [1, 1]} : vector<8x96xbf16> to vector<8x8xbf16>
    %3 = vector.extract_strided_slice %1 {offsets = [0, 32], sizes = [8, 8], strides = [1, 1]} : vector<8x96xbf16> to vector<8x8xbf16>
    %4 = vector.extract_strided_slice %1 {offsets = [0, 64], sizes = [8, 8], strides = [1, 1]} : vector<8x96xbf16> to vector<8x8xbf16>
    %cst = arith.constant 3.535160e-01 : bf16
    %5 = vector.broadcast %cst : bf16 to vector<8x8xbf16>
    %6 = arith.mulf %2, %5 : vector<8x8xbf16>
    %cst_2 = arith.constant dense<0.000000e+00> : vector<8x8xf32>
    %7 = tpu.matmul %6, %3, %cst_2 {dimension_numbers = #tpu.dot_dimension_numbers<[1], [1], [0], [0], [0, 0, 1, 0], [], []>} : vector<8x8xbf16>, vector<8x8xbf16>, vector<8x8xf32> -> vector<8x8xf32>
    %cst_3 = arith.constant dense<0xFF800000> : vector<8xf32>
    %8 = vector.multi_reduction <maximumf>, %7, %cst_3 [1] : vector<8x8xf32> to vector<8xf32>
    %9 = vector.shape_cast %8 : vector<8xf32> to vector<8x1xf32>
    %10 = vector.broadcast %9 : vector<8x1xf32> to vector<8x8xf32>
    %11 = arith.subf %7, %10 : vector<8x8xf32>
    %12 = math.exp %11 : vector<8x8xf32>
    %cst_4 = arith.constant dense<0.000000e+00> : vector<8xf32>
    %13 = vector.multi_reduction <add>, %12, %cst_4 [1] : vector<8x8xf32> to vector<8xf32>
    %14 = vector.shape_cast %13 : vector<8xf32> to vector<8x1xf32>
    %15 = arith.truncf %12 : vector<8x8xf32> to vector<8x8xbf16>
    %cst_5 = arith.constant dense<0.000000e+00> : vector<8x8xf32>
    %16 = tpu.matmul %15, %4, %cst_5 {dimension_numbers = #tpu.dot_dimension_numbers<[1], [0], [0], [1], [0, 0, 1, 1], [], []>} : vector<8x8xbf16>, vector<8x8xbf16>, vector<8x8xf32> -> vector<8x8xf32>
    %17 = tpu.reciprocal %14 {approx = true} : vector<8x1xf32> -> vector<8x1xf32>
    %18 = vector.broadcast %17 : vector<8x1xf32> to vector<8x8xf32>
    %19 = arith.mulf %16, %18 : vector<8x8xf32>
    %20 = arith.truncf %19 : vector<8x8xf32> to vector<8x8xbf16>
    %c0_6 = arith.constant 0 : index
    %c0_7 = arith.constant 0 : index
    %c0_8 = arith.constant 0 : index
    %21 = vector.load %arg2[%c0_6, %c0_7, %c0_8] : memref<1x8x32xbf16, #tpu.memory_space<vmem>>, vector<1x8x8xbf16>
    %22 = vector.shape_cast %21 : vector<1x8x8xbf16> to vector<8x8xbf16>
    %23 = vector.shape_cast %20 : vector<8x8xbf16> to vector<1x8x8xbf16>
    tpu.vector_store %arg2[%c0_6, %c0_7, %c0_8], %23 {strides = array<i32>} : memref<1x8x32xbf16, #tpu.memory_space<vmem>>, vector<1x8x8xbf16>,
    %24 = vector.extract_strided_slice %1 {offsets = [0, 8], sizes = [8, 8], strides = [1, 1]} : vector<8x96xbf16> to vector<8x8xbf16>
    %25 = vector.extract_strided_slice %1 {offsets = [0, 40], sizes = [8, 8], strides = [1, 1]} : vector<8x96xbf16> to vector<8x8xbf16>
    %26 = vector.extract_strided_slice %1 {offsets = [0, 72], sizes = [8, 8], strides = [1, 1]} : vector<8x96xbf16> to vector<8x8xbf16>
    %cst_9 = arith.constant 3.535160e-01 : bf16
    %27 = vector.broadcast %cst_9 : bf16 to vector<8x8xbf16>
    %28 = arith.mulf %24, %27 : vector<8x8xbf16>
    %cst_10 = arith.constant dense<0.000000e+00> : vector<8x8xf32>
    %29 = tpu.matmul %28, %25, %cst_10 {dimension_numbers = #tpu.dot_dimension_numbers<[1], [1], [0], [0], [0, 0, 1, 0], [], []>} : vector<8x8xbf16>, vector<8x8xbf16>, vector<8x8xf32> -> vector<8x8xf32>
    %cst_11 = arith.constant dense<0xFF800000> : vector<8xf32>
    %30 = vector.multi_reduction <maximumf>, %29, %cst_11 [1] : vector<8x8xf32> to vector<8xf32>
    %31 = vector.shape_cast %30 : vector<8xf32> to vector<8x1xf32>
    %32 = vector.broadcast %31 : vector<8x1xf32> to vector<8x8xf32>
    %33 = arith.subf %29, %32 : vector<8x8xf32>
    %34 = math.exp %33 : vector<8x8xf32>
    %cst_12 = arith.constant dense<0.000000e+00> : vector<8xf32>
    %35 = vector.multi_reduction <add>, %34, %cst_12 [1] : vector<8x8xf32> to vector<8xf32>
    %36 = vector.shape_cast %35 : vector<8xf32> to vector<8x1xf32>
    %37 = arith.truncf %34 : vector<8x8xf32> to vector<8x8xbf16>
    %cst_13 = arith.constant dense<0.000000e+00> : vector<8x8xf32>
    %38 = tpu.matmul %37, %26, %cst_13 {dimension_numbers = #tpu.dot_dimension_numbers<[1], [0], [0], [1], [0, 0, 1, 1], [], []>} : vector<8x8xbf16>, vector<8x8xbf16>, vector<8x8xf32> -> vector<8x8xf32>
    %39 = tpu.reciprocal %36 {approx = true} : vector<8x1xf32> -> vector<8x1xf32>
    %40 = vector.broadcast %39 : vector<8x1xf32> to vector<8x8xf32>
    %41 = arith.mulf %38, %40 : vector<8x8xf32>
    %42 = arith.truncf %41 : vector<8x8xf32> to vector<8x8xbf16>
    %c0_14 = arith.constant 0 : index
    %c0_15 = arith.constant 0 : index
    %c8 = arith.constant 8 : index
    %43 = vector.load %arg2[%c0_14, %c0_15, %c8] : memref<1x8x32xbf16, #tpu.memory_space<vmem>>, vector<1x8x8xbf16>
    %44 = vector.shape_cast %43 : vector<1x8x8xbf16> to vector<8x8xbf16>
    %45 = vector.shape_cast %42 : vector<8x8xbf16> to vector<1x8x8xbf16>
    tpu.vector_store %arg2[%c0_14, %c0_15, %c8], %45 {strides = array<i32>} : memref<1x8x32xbf16, #tpu.memory_space<vmem>>, vector<1x8x8xbf16>,
    %46 = vector.extract_strided_slice %1 {offsets = [0, 16], sizes = [8, 8], strides = [1, 1]} : vector<8x96xbf16> to vector<8x8xbf16>
    %47 = vector.extract_strided_slice %1 {offsets = [0, 48], sizes = [8, 8], strides = [1, 1]} : vector<8x96xbf16> to vector<8x8xbf16>
    %48 = vector.extract_strided_slice %1 {offsets = [0, 80], sizes = [8, 8], strides = [1, 1]} : vector<8x96xbf16> to vector<8x8xbf16>
    %cst_16 = arith.constant 3.535160e-01 : bf16
    %49 = vector.broadcast %cst_16 : bf16 to vector<8x8xbf16>
    %50 = arith.mulf %46, %49 : vector<8x8xbf16>
    %cst_17 = arith.constant dense<0.000000e+00> : vector<8x8xf32>
    %51 = tpu.matmul %50, %47, %cst_17 {dimension_numbers = #tpu.dot_dimension_numbers<[1], [1], [0], [0], [0, 0, 1, 0], [], []>} : vector<8x8xbf16>, vector<8x8xbf16>, vector<8x8xf32> -> vector<8x8xf32>
    %cst_18 = arith.constant dense<0xFF800000> : vector<8xf32>
    %52 = vector.multi_reduction <maximumf>, %51, %cst_18 [1] : vector<8x8xf32> to vector<8xf32>
    %53 = vector.shape_cast %52 : vector<8xf32> to vector<8x1xf32>
    %54 = vector.broadcast %53 : vector<8x1xf32> to vector<8x8xf32>
    %55 = arith.subf %51, %54 : vector<8x8xf32>
    %56 = math.exp %55 : vector<8x8xf32>
    %cst_19 = arith.constant dense<0.000000e+00> : vector<8xf32>
    %57 = vector.multi_reduction <add>, %56, %cst_19 [1] : vector<8x8xf32> to vector<8xf32>
    %58 = vector.shape_cast %57 : vector<8xf32> to vector<8x1xf32>
    %59 = arith.truncf %56 : vector<8x8xf32> to vector<8x8xbf16>
    %cst_20 = arith.constant dense<0.000000e+00> : vector<8x8xf32>
    %60 = tpu.matmul %59, %48, %cst_20 {dimension_numbers = #tpu.dot_dimension_numbers<[1], [0], [0], [1], [0, 0, 1, 1], [], []>} : vector<8x8xbf16>, vector<8x8xbf16>, vector<8x8xf32> -> vector<8x8xf32>
    %61 = tpu.reciprocal %58 {approx = true} : vector<8x1xf32> -> vector<8x1xf32>
    %62 = vector.broadcast %61 : vector<8x1xf32> to vector<8x8xf32>
    %63 = arith.mulf %60, %62 : vector<8x8xf32>
    %64 = arith.truncf %63 : vector<8x8xf32> to vector<8x8xbf16>
    %c0_21 = arith.constant 0 : index
    %c0_22 = arith.constant 0 : index
    %c16 = arith.constant 16 : index
    %65 = vector.load %arg2[%c0_21, %c0_22, %c16] : memref<1x8x32xbf16, #tpu.memory_space<vmem>>, vector<1x8x8xbf16>
    %66 = vector.shape_cast %65 : vector<1x8x8xbf16> to vector<8x8xbf16>
    %67 = vector.shape_cast %64 : vector<8x8xbf16> to vector<1x8x8xbf16>
    tpu.vector_store %arg2[%c0_21, %c0_22, %c16], %67 {strides = array<i32>} : memref<1x8x32xbf16, #tpu.memory_space<vmem>>, vector<1x8x8xbf16>,
    %68 = vector.extract_strided_slice %1 {offsets = [0, 24], sizes = [8, 8], strides = [1, 1]} : vector<8x96xbf16> to vector<8x8xbf16>
    %69 = vector.extract_strided_slice %1 {offsets = [0, 56], sizes = [8, 8], strides = [1, 1]} : vector<8x96xbf16> to vector<8x8xbf16>
    %70 = vector.extract_strided_slice %1 {offsets = [0, 88], sizes = [8, 8], strides = [1, 1]} : vector<8x96xbf16> to vector<8x8xbf16>
    %cst_23 = arith.constant 3.535160e-01 : bf16
    %71 = vector.broadcast %cst_23 : bf16 to vector<8x8xbf16>
    %72 = arith.mulf %68, %71 : vector<8x8xbf16>
    %cst_24 = arith.constant dense<0.000000e+00> : vector<8x8xf32>
    %73 = tpu.matmul %72, %69, %cst_24 {dimension_numbers = #tpu.dot_dimension_numbers<[1], [1], [0], [0], [0, 0, 1, 0], [], []>} : vector<8x8xbf16>, vector<8x8xbf16>, vector<8x8xf32> -> vector<8x8xf32>
    %cst_25 = arith.constant dense<0xFF800000> : vector<8xf32>
    %74 = vector.multi_reduction <maximumf>, %73, %cst_25 [1] : vector<8x8xf32> to vector<8xf32>
    %75 = vector.shape_cast %74 : vector<8xf32> to vector<8x1xf32>
    %76 = vector.broadcast %75 : vector<8x1xf32> to vector<8x8xf32>
    %77 = arith.subf %73, %76 : vector<8x8xf32>
    %78 = math.exp %77 : vector<8x8xf32>
    %cst_26 = arith.constant dense<0.000000e+00> : vector<8xf32>
    %79 = vector.multi_reduction <add>, %78, %cst_26 [1] : vector<8x8xf32> to vector<8xf32>
    %80 = vector.shape_cast %79 : vector<8xf32> to vector<8x1xf32>
    %81 = arith.truncf %78 : vector<8x8xf32> to vector<8x8xbf16>
    %cst_27 = arith.constant dense<0.000000e+00> : vector<8x8xf32>
    %82 = tpu.matmul %81, %70, %cst_27 {dimension_numbers = #tpu.dot_dimension_numbers<[1], [0], [0], [1], [0, 0, 1, 1], [], []>} : vector<8x8xbf16>, vector<8x8xbf16>, vector<8x8xf32> -> vector<8x8xf32>
    %83 = tpu.reciprocal %80 {approx = true} : vector<8x1xf32> -> vector<8x1xf32>
    %84 = vector.broadcast %83 : vector<8x1xf32> to vector<8x8xf32>
    %85 = arith.mulf %82, %84 : vector<8x8xf32>
    %86 = arith.truncf %85 : vector<8x8xf32> to vector<8x8xbf16>
    %c0_28 = arith.constant 0 : index
    %c0_29 = arith.constant 0 : index
    %c24 = arith.constant 24 : index
    %87 = vector.load %arg2[%c0_28, %c0_29, %c24] : memref<1x8x32xbf16, #tpu.memory_space<vmem>>, vector<1x8x8xbf16>
    %88 = vector.shape_cast %87 : vector<1x8x8xbf16> to vector<8x8xbf16>
    %89 = vector.shape_cast %86 : vector<8x8xbf16> to vector<1x8x8xbf16>
    tpu.vector_store %arg2[%c0_28, %c0_29, %c24], %89 {strides = array<i32>} : memref<1x8x32xbf16, #tpu.memory_space<vmem>>, vector<1x8x8xbf16>,
    return
  }
  func.func @transform_0(%arg0: i32) -> (i32, i32, i32) {
    %c0_i32 = arith.constant 0 : i32
    %c0_i32_0 = arith.constant 0 : i32
    %c0_i32_1 = arith.constant 0 : i32
    return %arg0, %c0_i32, %c0_i32_0 : i32, i32, i32
  }
  func.func @transform_1(%arg0: i32) -> (i32, i32, i32) {
    %c0_i32 = arith.constant 0 : i32
    %c0_i32_0 = arith.constant 0 : i32
    %c0_i32_1 = arith.constant 0 : i32
    return %arg0, %c0_i32, %c0_i32_0 : i32, i32, i32
  }
}

module attributes {stable_mosaic.version = 11 : i64} {
  func.func @_mm_kernel(%arg0: i32, %arg1: i32, %arg2: i32, %arg3: memref<16x32xbf16, #tpu.memory_space<vmem>>, %arg4: memref<32x128xbf16, #tpu.memory_space<vmem>>, %arg5: memref<1x128xf32, #tpu.memory_space<vmem>>, %arg6: memref<16x128xbf16, #tpu.memory_space<vmem>>, %arg7: memref<16x128xbf16, #tpu.memory_space<vmem>>, %arg8: memref<16x128xf32, #tpu.memory_space<vmem>>) attributes {dimension_semantics = [#tpu.dimension_semantics<parallel>, #tpu.dimension_semantics<parallel>, #tpu.dimension_semantics<arbitrary>], iteration_bounds = array<i64: 1, 1, 1>, scalar_prefetch = 0 : i64, scratch_operands = 1 : i64, tpu.core_type = #tpu.core_type<tc>, window_params = [{transform_indices = @transform_0, window_bounds = array<i64: 16, 32>}, {transform_indices = @transform_1, window_bounds = array<i64: 32, 128>}, {transform_indices = @transform_2, window_bounds = array<i64: 1, 128>}, {transform_indices = @transform_3, window_bounds = array<i64: 16, 128>}, {transform_indices = @transform_4, window_bounds = array<i64: 16, 128>}]} {
    %c0_i32 = arith.constant 0 : i32
    %0 = arith.cmpi eq, %arg2, %c0_i32 : i32
    %1 = arith.extui %0 : i1 to i32
    %c0_i32_0 = arith.constant 0 : i32
    %2 = arith.cmpi ne, %1, %c0_i32_0 : i32
    scf.if %2 {
      %cst_10 = arith.constant 0.000000e+00 : f32
      %12 = vector.broadcast %cst_10 : f32 to vector<16x128xf32>
      %c0_11 = arith.constant 0 : index
      %c0_12 = arith.constant 0 : index
      %13 = vector.load %arg8[%c0_11, %c0_12] : memref<16x128xf32, #tpu.memory_space<vmem>>, vector<16x128xf32>
      tpu.vector_store %arg8[%c0_11, %c0_12], %12 {strides = array<i32>} : memref<16x128xf32, #tpu.memory_space<vmem>>, vector<16x128xf32>,
    } else {
    }
    %c0 = arith.constant 0 : index
    %c0_1 = arith.constant 0 : index
    %3 = vector.load %arg3[%c0, %c0_1] : memref<16x32xbf16, #tpu.memory_space<vmem>>, vector<16x32xbf16>
    %c0_2 = arith.constant 0 : index
    %c0_3 = arith.constant 0 : index
    %4 = vector.load %arg8[%c0_2, %c0_3] : memref<16x128xf32, #tpu.memory_space<vmem>>, vector<16x128xf32>
    %c0_4 = arith.constant 0 : index
    %c0_5 = arith.constant 0 : index
    %5 = vector.load %arg4[%c0_4, %c0_5] : memref<32x128xbf16, #tpu.memory_space<vmem>>, vector<32x128xbf16>
    %cst = arith.constant dense<0.000000e+00> : vector<16x128xf32>
    %6 = tpu.matmul %3, %5, %cst {dimension_numbers = #tpu.dot_dimension_numbers<[1], [0], [0], [1], [0, 0, 1, 1], [], []>} : vector<16x32xbf16>, vector<32x128xbf16>, vector<16x128xf32> -> vector<16x128xf32>
    %7 = arith.addf %4, %6 : vector<16x128xf32>
    %c0_6 = arith.constant 0 : index
    %c0_7 = arith.constant 0 : index
    %8 = vector.load %arg8[%c0_6, %c0_7] : memref<16x128xf32, #tpu.memory_space<vmem>>, vector<16x128xf32>
    tpu.vector_store %arg8[%c0_6, %c0_7], %7 {strides = array<i32>} : memref<16x128xf32, #tpu.memory_space<vmem>>, vector<16x128xf32>,
    %c0_i32_8 = arith.constant 0 : i32
    %9 = arith.cmpi eq, %arg2, %c0_i32_8 : i32
    %10 = arith.extui %9 : i1 to i32
    %c0_i32_9 = arith.constant 0 : i32
    %11 = arith.cmpi ne, %10, %c0_i32_9 : i32
    scf.if %11 {
      %c0_10 = arith.constant 0 : index
      %c0_11 = arith.constant 0 : index
      %12 = vector.load %arg8[%c0_10, %c0_11] : memref<16x128xf32, #tpu.memory_space<vmem>>, vector<16x128xf32>
      %c0_12 = arith.constant 0 : index
      %c0_13 = arith.constant 0 : index
      %13 = vector.load %arg5[%c0_12, %c0_13] : memref<1x128xf32, #tpu.memory_space<vmem>>, vector<1x128xf32>
      %14 = vector.broadcast %13 : vector<1x128xf32> to vector<16x128xf32>
      %15 = arith.addf %12, %14 : vector<16x128xf32>
      %c0_14 = arith.constant 0 : index
      %c0_15 = arith.constant 0 : index
      %16 = vector.load %arg6[%c0_14, %c0_15] : memref<16x128xbf16, #tpu.memory_space<vmem>>, vector<16x128xbf16>
      %17 = arith.extf %16 : vector<16x128xbf16> to vector<16x128xf32>
      %cst_16 = arith.constant 1.000000e+00 : f32
      %18 = vector.broadcast %cst_16 : f32 to vector<16x128xf32>
      %19 = arith.mulf %18, %15 : vector<16x128xf32>
      %20 = arith.addf %17, %19 : vector<16x128xf32>
      %21 = arith.truncf %20 : vector<16x128xf32> to vector<16x128xbf16>
      %c0_17 = arith.constant 0 : index
      %c0_18 = arith.constant 0 : index
      %22 = vector.load %arg7[%c0_17, %c0_18] : memref<16x128xbf16, #tpu.memory_space<vmem>>, vector<16x128xbf16>
      tpu.vector_store %arg7[%c0_17, %c0_18], %21 {strides = array<i32>} : memref<16x128xbf16, #tpu.memory_space<vmem>>, vector<16x128xbf16>,
    } else {
    }
    return
  }
  func.func @transform_0(%arg0: i32, %arg1: i32, %arg2: i32) -> (i32, i32) {
    %c0_i32 = arith.constant 0 : i32
    return %arg0, %arg2 : i32, i32
  }
  func.func @transform_1(%arg0: i32, %arg1: i32, %arg2: i32) -> (i32, i32) {
    %c0_i32 = arith.constant 0 : i32
    return %arg2, %arg1 : i32, i32
  }
  func.func @transform_2(%arg0: i32, %arg1: i32, %arg2: i32) -> (i32, i32) {
    %c0_i32 = arith.constant 0 : i32
    %c0_i32_0 = arith.constant 0 : i32
    return %c0_i32, %arg1 : i32, i32
  }
  func.func @transform_3(%arg0: i32, %arg1: i32, %arg2: i32) -> (i32, i32) {
    %c0_i32 = arith.constant 0 : i32
    return %arg0, %arg1 : i32, i32
  }
  func.func @transform_4(%arg0: i32, %arg1: i32, %arg2: i32) -> (i32, i32) {
    %c0_i32 = arith.constant 0 : i32
    return %arg0, %arg1 : i32, i32
  }
}

module attributes {stable_mosaic.version = 11 : i64} {
  func.func @_mm_kernel(%arg0: i32, %arg1: i32, %arg2: i32, %arg3: memref<1x32xf32, #tpu.memory_space<vmem>>, %arg4: memref<1x32xf32, #tpu.memory_space<vmem>>, %arg5: memref<16x32xbf16, #tpu.memory_space<vmem>>, %arg6: memref<32x128xbf16, #tpu.memory_space<vmem>>, %arg7: memref<1x128xf32, #tpu.memory_space<vmem>>, %arg8: memref<32x128xbf16, #tpu.memory_space<vmem>>, %arg9: memref<1x128xf32, #tpu.memory_space<vmem>>, %arg10: memref<16x128xbf16, #tpu.memory_space<vmem>>, %arg11: memref<16x128xf32, #tpu.memory_space<vmem>>, %arg12: memref<16x128xf32, #tpu.memory_space<vmem>>, %arg13: memref<16x32xbf16, #tpu.memory_space<vmem>>) attributes {dimension_semantics = [#tpu.dimension_semantics<parallel>, #tpu.dimension_semantics<parallel>, #tpu.dimension_semantics<arbitrary>], iteration_bounds = array<i64: 1, 1, 1>, scalar_prefetch = 0 : i64, scratch_operands = 3 : i64, tpu.core_type = #tpu.core_type<tc>, window_params = [{pipeline_mode = #tpu.pipeline_mode<synchronous>, transform_indices = @transform_0, window_bounds = array<i64: 1, 32>}, {pipeline_mode = #tpu.pipeline_mode<synchronous>, transform_indices = @transform_1, window_bounds = array<i64: 1, 32>}, {transform_indices = @transform_2, window_bounds = array<i64: 16, 32>}, {transform_indices = @transform_3, window_bounds = array<i64: 32, 128>}, {transform_indices = @transform_4, window_bounds = array<i64: 1, 128>}, {transform_indices = @transform_5, window_bounds = array<i64: 32, 128>}, {transform_indices = @transform_6, window_bounds = array<i64: 1, 128>}, {transform_indices = @transform_7, window_bounds = array<i64: 16, 128>}]} {
    %c0_i32 = arith.constant 0 : i32
    %0 = arith.cmpi eq, %arg2, %c0_i32 : i32
    %1 = arith.extui %0 : i1 to i32
    %c0_i32_0 = arith.constant 0 : i32
    %2 = arith.cmpi ne, %1, %c0_i32_0 : i32
    scf.if %2 {
      %cst_19 = arith.constant 0.000000e+00 : f32
      %20 = vector.broadcast %cst_19 : f32 to vector<16x128xf32>
      %c0_20 = arith.constant 0 : index
      %c0_21 = arith.constant 0 : index
      %21 = vector.load %arg11[%c0_20, %c0_21] : memref<16x128xf32, #tpu.memory_space<vmem>>, vector<16x128xf32>
      tpu.vector_store %arg11[%c0_20, %c0_21], %20 {strides = array<i32>} : memref<16x128xf32, #tpu.memory_space<vmem>>, vector<16x128xf32>,
      %cst_22 = arith.constant 0.000000e+00 : f32
      %22 = vector.broadcast %cst_22 : f32 to vector<16x128xf32>
      %c0_23 = arith.constant 0 : index
      %c0_24 = arith.constant 0 : index
      %23 = vector.load %arg12[%c0_23, %c0_24] : memref<16x128xf32, #tpu.memory_space<vmem>>, vector<16x128xf32>
      tpu.vector_store %arg12[%c0_23, %c0_24], %22 {strides = array<i32>} : memref<16x128xf32, #tpu.memory_space<vmem>>, vector<16x128xf32>,
    } else {
    }
    %c0_i32_1 = arith.constant 0 : i32
    %3 = arith.cmpi eq, %arg1, %c0_i32_1 : i32
    %4 = arith.extui %3 : i1 to i32
    %c0_i32_2 = arith.constant 0 : i32
    %5 = arith.cmpi ne, %4, %c0_i32_2 : i32
    scf.if %5 {
      %c0_19 = arith.constant 0 : index
      %c0_20 = arith.constant 0 : index
      %20 = vector.load %arg5[%c0_19, %c0_20] : memref<16x32xbf16, #tpu.memory_space<vmem>>, vector<16x32xbf16>
      %21 = arith.extf %20 : vector<16x32xbf16> to vector<16x32xf32>
      %cst_21 = arith.constant dense<0.000000e+00> : vector<16xf32>
      %22 = vector.multi_reduction <add>, %21, %cst_21 [1] : vector<16x32xf32> to vector<16xf32>
      %23 = vector.shape_cast %22 : vector<16xf32> to vector<16x1xf32>
      %cst_22 = arith.constant 3.200000e+01 : f32
      %24 = vector.broadcast %cst_22 : f32 to vector<16x1xf32>
      %25 = arith.divf %23, %24 : vector<16x1xf32>
      %26 = vector.broadcast %25 : vector<16x1xf32> to vector<16x32xf32>
      %27 = arith.subf %21, %26 : vector<16x32xf32>
      %28 = arith.mulf %27, %27 : vector<16x32xf32>
      %cst_23 = arith.constant dense<0.000000e+00> : vector<16xf32>
      %29 = vector.multi_reduction <add>, %28, %cst_23 [1] : vector<16x32xf32> to vector<16xf32>
      %30 = vector.shape_cast %29 : vector<16xf32> to vector<16x1xf32>
      %cst_24 = arith.constant 3.200000e+01 : f32
      %31 = vector.broadcast %cst_24 : f32 to vector<16x1xf32>
      %32 = arith.divf %30, %31 : vector<16x1xf32>
      %33 = vector.broadcast %25 : vector<16x1xf32> to vector<16x32xf32>
      %34 = arith.subf %21, %33 : vector<16x32xf32>
      %cst_25 = arith.constant 9.99999974E-6 : f32
      %35 = vector.broadcast %cst_25 : f32 to vector<16x1xf32>
      %36 = arith.addf %32, %35 : vector<16x1xf32>
      %37 = math.rsqrt %36 : vector<16x1xf32>
      %38 = vector.broadcast %37 : vector<16x1xf32> to vector<16x32xf32>
      %39 = arith.mulf %34, %38 : vector<16x32xf32>
      %c0_26 = arith.constant 0 : index
      %c0_27 = arith.constant 0 : index
      %40 = vector.load %arg3[%c0_26, %c0_27] : memref<1x32xf32, #tpu.memory_space<vmem>>, vector<1x32xf32>
      %41 = vector.broadcast %40 : vector<1x32xf32> to vector<16x32xf32>
      %42 = arith.mulf %39, %41 : vector<16x32xf32>
      %c0_28 = arith.constant 0 : index
      %c0_29 = arith.constant 0 : index
      %43 = vector.load %arg4[%c0_28, %c0_29] : memref<1x32xf32, #tpu.memory_space<vmem>>, vector<1x32xf32>
      %44 = vector.broadcast %43 : vector<1x32xf32> to vector<16x32xf32>
      %45 = arith.addf %42, %44 : vector<16x32xf32>
      %46 = arith.truncf %45 : vector<16x32xf32> to vector<16x32xbf16>
      %c0_30 = arith.constant 0 : index
      %c0_31 = arith.constant 0 : index
      %47 = vector.load %arg13[%c0_30, %c0_31] : memref<16x32xbf16, #tpu.memory_space<vmem>>, vector<16x32xbf16>
      tpu.vector_store %arg13[%c0_30, %c0_31], %46 {strides = array<i32>} : memref<16x32xbf16, #tpu.memory_space<vmem>>, vector<16x32xbf16>,
    } else {
    }
    %c0 = arith.constant 0 : index
    %c0_3 = arith.constant 0 : index
    %6 = vector.load %arg13[%c0, %c0_3] : memref<16x32xbf16, #tpu.memory_space<vmem>>, vector<16x32xbf16>
    %c0_4 = arith.constant 0 : index
    %c0_5 = arith.constant 0 : index
    %7 = vector.load %arg11[%c0_4, %c0_5] : memref<16x128xf32, #tpu.memory_space<vmem>>, vector<16x128xf32>
    %c0_6 = arith.constant 0 : index
    %c0_7 = arith.constant 0 : index
    %8 = vector.load %arg6[%c0_6, %c0_7] : memref<32x128xbf16, #tpu.memory_space<vmem>>, vector<32x128xbf16>
    %cst = arith.constant dense<0.000000e+00> : vector<16x128xf32>
    %9 = tpu.matmul %6, %8, %cst {dimension_numbers = #tpu.dot_dimension_numbers<[1], [0], [0], [1], [0, 0, 1, 1], [], []>} : vector<16x32xbf16>, vector<32x128xbf16>, vector<16x128xf32> -> vector<16x128xf32>
    %10 = arith.addf %7, %9 : vector<16x128xf32>
    %c0_8 = arith.constant 0 : index
    %c0_9 = arith.constant 0 : index
    %11 = vector.load %arg11[%c0_8, %c0_9] : memref<16x128xf32, #tpu.memory_space<vmem>>, vector<16x128xf32>
    tpu.vector_store %arg11[%c0_8, %c0_9], %10 {strides = array<i32>} : memref<16x128xf32, #tpu.memory_space<vmem>>, vector<16x128xf32>,
    %c0_10 = arith.constant 0 : index
    %c0_11 = arith.constant 0 : index
    %12 = vector.load %arg12[%c0_10, %c0_11] : memref<16x128xf32, #tpu.memory_space<vmem>>, vector<16x128xf32>
    %c0_12 = arith.constant 0 : index
    %c0_13 = arith.constant 0 : index
    %13 = vector.load %arg8[%c0_12, %c0_13] : memref<32x128xbf16, #tpu.memory_space<vmem>>, vector<32x128xbf16>
    %cst_14 = arith.constant dense<0.000000e+00> : vector<16x128xf32>
    %14 = tpu.matmul %6, %13, %cst_14 {dimension_numbers = #tpu.dot_dimension_numbers<[1], [0], [0], [1], [0, 0, 1, 1], [], []>} : vector<16x32xbf16>, vector<32x128xbf16>, vector<16x128xf32> -> vector<16x128xf32>
    %15 = arith.addf %12, %14 : vector<16x128xf32>
    %c0_15 = arith.constant 0 : index
    %c0_16 = arith.constant 0 : index
    %16 = vector.load %arg12[%c0_15, %c0_16] : memref<16x128xf32, #tpu.memory_space<vmem>>, vector<16x128xf32>
    tpu.vector_store %arg12[%c0_15, %c0_16], %15 {strides = array<i32>} : memref<16x128xf32, #tpu.memory_space<vmem>>, vector<16x128xf32>,
    %c0_i32_17 = arith.constant 0 : i32
    %17 = arith.cmpi eq, %arg2, %c0_i32_17 : i32
    %18 = arith.extui %17 : i1 to i32
    %c0_i32_18 = arith.constant 0 : i32
    %19 = arith.cmpi ne, %18, %c0_i32_18 : i32
    scf.if %19 {
      %c0_19 = arith.constant 0 : index
      %c0_20 = arith.constant 0 : index
      %20 = vector.load %arg11[%c0_19, %c0_20] : memref<16x128xf32, #tpu.memory_space<vmem>>, vector<16x128xf32>
      %c0_21 = arith.constant 0 : index
      %c0_22 = arith.constant 0 : index
      %21 = vector.load %arg7[%c0_21, %c0_22] : memref<1x128xf32, #tpu.memory_space<vmem>>, vector<1x128xf32>
      %22 = vector.broadcast %21 : vector<1x128xf32> to vector<16x128xf32>
      %23 = arith.addf %20, %22 : vector<16x128xf32>
      %c0_23 = arith.constant 0 : index
      %c0_24 = arith.constant 0 : index
      %24 = vector.load %arg12[%c0_23, %c0_24] : memref<16x128xf32, #tpu.memory_space<vmem>>, vector<16x128xf32>
      %c0_25 = arith.constant 0 : index
      %c0_26 = arith.constant 0 : index
      %25 = vector.load %arg9[%c0_25, %c0_26] : memref<1x128xf32, #tpu.memory_space<vmem>>, vector<1x128xf32>
      %26 = vector.broadcast %25 : vector<1x128xf32> to vector<16x128xf32>
      %27 = arith.addf %24, %26 : vector<16x128xf32>
      %28 = arith.negf %27 : vector<16x128xf32>
      %29 = math.exp %28 : vector<16x128xf32>
      %cst_27 = arith.constant 1.000000e+00 : f32
      %30 = vector.broadcast %cst_27 : f32 to vector<16x128xf32>
      %31 = arith.addf %30, %29 : vector<16x128xf32>
      %32 = arith.divf %30, %31 : vector<16x128xf32>
      %33 = arith.mulf %23, %32 : vector<16x128xf32>
      %34 = arith.truncf %33 : vector<16x128xf32> to vector<16x128xbf16>
      %c0_28 = arith.constant 0 : index
      %c0_29 = arith.constant 0 : index
      %35 = vector.load %arg10[%c0_28, %c0_29] : memref<16x128xbf16, #tpu.memory_space<vmem>>, vector<16x128xbf16>
      tpu.vector_store %arg10[%c0_28, %c0_29], %34 {strides = array<i32>} : memref<16x128xbf16, #tpu.memory_space<vmem>>, vector<16x128xbf16>,
    } else {
    }
    return
  }
  func.func @transform_0(%arg0: i32, %arg1: i32, %arg2: i32) -> (i32, i32) {
    %c0_i32 = arith.constant 0 : i32
    %c0_i32_0 = arith.constant 0 : i32
    %c0_i32_1 = arith.constant 0 : i32
    return %c0_i32, %c0_i32_0 : i32, i32
  }
  func.func @transform_1(%arg0: i32, %arg1: i32, %arg2: i32) -> (i32, i32) {
    %c0_i32 = arith.constant 0 : i32
    %c0_i32_0 = arith.constant 0 : i32
    %c0_i32_1 = arith.constant 0 : i32
    return %c0_i32, %c0_i32_0 : i32, i32
  }
  func.func @transform_2(%arg0: i32, %arg1: i32, %arg2: i32) -> (i32, i32) {
    %c0_i32 = arith.constant 0 : i32
    return %arg0, %arg2 : i32, i32
  }
  func.func @transform_3(%arg0: i32, %arg1: i32, %arg2: i32) -> (i32, i32) {
    %c0_i32 = arith.constant 0 : i32
    return %arg2, %arg1 : i32, i32
  }
  func.func @transform_4(%arg0: i32, %arg1: i32, %arg2: i32) -> (i32, i32) {
    %c0_i32 = arith.constant 0 : i32
    %c0_i32_0 = arith.constant 0 : i32
    return %c0_i32, %arg1 : i32, i32
  }
  func.func @transform_5(%arg0: i32, %arg1: i32, %arg2: i32) -> (i32, i32) {
    %c0_i32 = arith.constant 0 : i32
    return %arg2, %arg1 : i32, i32
  }
  func.func @transform_6(%arg0: i32, %arg1: i32, %arg2: i32) -> (i32, i32) {
    %c0_i32 = arith.constant 0 : i32
    %c0_i32_0 = arith.constant 0 : i32
    return %c0_i32, %arg1 : i32, i32
  }
  func.func @transform_7(%arg0: i32, %arg1: i32, %arg2: i32) -> (i32, i32) {
    %c0_i32 = arith.constant 0 : i32
    return %arg0, %arg1 : i32, i32
  }
}

module attributes {stable_mosaic.version = 11 : i64} {
  func.func @_dwconv_bn_silu_kernel(%arg0: i32, %arg1: memref<1x8x32xbf16, #tpu.memory_space<vmem>>, %arg2: memref<3x32xbf16, #tpu.memory_space<vmem>>, %arg3: memref<1x32xf32, #tpu.memory_space<vmem>>, %arg4: memref<1x32xf32, #tpu.memory_space<vmem>>, %arg5: memref<1x8x32xbf16, #tpu.memory_space<vmem>>) attributes {dimension_semantics = [#tpu.dimension_semantics<parallel>], iteration_bounds = array<i64: 2>, scalar_prefetch = 0 : i64, scratch_operands = 0 : i64, tpu.core_type = #tpu.core_type<tc>, window_params = [{transform_indices = @transform_0, window_bounds = array<i64: 1, 8, 32>}, {pipeline_mode = #tpu.pipeline_mode<synchronous>, transform_indices = @transform_1, window_bounds = array<i64: 3, 32>}, {pipeline_mode = #tpu.pipeline_mode<synchronous>, transform_indices = @transform_2, window_bounds = array<i64: 1, 32>}, {pipeline_mode = #tpu.pipeline_mode<synchronous>, transform_indices = @transform_3, window_bounds = array<i64: 1, 32>}, {transform_indices = @transform_4, window_bounds = array<i64: 1, 8, 32>}]} {
    %c0 = arith.constant 0 : index
    %c0_0 = arith.constant 0 : index
    %c0_1 = arith.constant 0 : index
    %0 = vector.load %arg1[%c0, %c0_0, %c0_1] : memref<1x8x32xbf16, #tpu.memory_space<vmem>>, vector<1x8x32xbf16>
    %1 = vector.shape_cast %0 : vector<1x8x32xbf16> to vector<8x32xbf16>
    %2 = arith.extf %1 : vector<8x32xbf16> to vector<8x32xf32>
    %c0_2 = arith.constant 0 : index
    %c0_3 = arith.constant 0 : index
    %3 = vector.load %arg2[%c0_2, %c0_3] : memref<3x32xbf16, #tpu.memory_space<vmem>>, vector<3x32xbf16>
    %4 = arith.extf %3 : vector<3x32xbf16> to vector<3x32xf32>
    %5 = tpu.iota {dimensions = array<i32: 0>} : vector<8x1xi32>
    %cst = arith.constant 0.000000e+00 : f32
    %6 = vector.broadcast %cst : f32 to vector<8x32xf32>
    %c1_i32 = arith.constant 1 : i32
    %7 = tpu.dynamic_rotate %2 by %c1_i32 dim 0 : vector<8x32xf32>, i32 -> vector<8x32xf32>
    %c1_i32_4 = arith.constant 1 : i32
    %8 = vector.broadcast %c1_i32_4 : i32 to vector<8x1xi32>
    %9 = arith.cmpi sge, %5, %8 : vector<8x1xi32>
    %cst_5 = arith.constant 0.000000e+00 : f32
    %10 = vector.shape_cast %9 : vector<8x1xi1> to vector<8x1xi1>
    %11 = vector.broadcast %10 : vector<8x1xi1> to vector<8x32xi1>
    %12 = vector.broadcast %cst_5 : f32 to vector<8x32xf32>
    %13 = arith.select %11, %7, %12 : vector<8x32xi1>, vector<8x32xf32>
    %14 = vector.extract_strided_slice %4 {offsets = [0, 0], sizes = [1, 32], strides = [1, 1]} : vector<3x32xf32> to vector<1x32xf32>
    %15 = vector.shape_cast %14 : vector<1x32xf32> to vector<32xf32>
    %16 = vector.shape_cast %15 : vector<32xf32> to vector<1x32xf32>
    %17 = vector.broadcast %16 : vector<1x32xf32> to vector<8x32xf32>
    %18 = arith.mulf %13, %17 : vector<8x32xf32>
    %19 = arith.addf %6, %18 : vector<8x32xf32>
    %20 = vector.extract_strided_slice %4 {offsets = [1, 0], sizes = [1, 32], strides = [1, 1]} : vector<3x32xf32> to vector<1x32xf32>
    %21 = vector.shape_cast %20 : vector<1x32xf32> to vector<32xf32>
    %22 = vector.shape_cast %21 : vector<32xf32> to vector<1x32xf32>
    %23 = vector.broadcast %22 : vector<1x32xf32> to vector<8x32xf32>
    %24 = arith.mulf %2, %23 : vector<8x32xf32>
    %25 = arith.addf %19, %24 : vector<8x32xf32>
    %c7_i32 = arith.constant 7 : i32
    %26 = tpu.dynamic_rotate %2 by %c7_i32 dim 0 : vector<8x32xf32>, i32 -> vector<8x32xf32>
    %c7_i32_6 = arith.constant 7 : i32
    %27 = vector.broadcast %c7_i32_6 : i32 to vector<8x1xi32>
    %28 = arith.cmpi slt, %5, %27 : vector<8x1xi32>
    %cst_7 = arith.constant 0.000000e+00 : f32
    %29 = vector.shape_cast %28 : vector<8x1xi1> to vector<8x1xi1>
    %30 = vector.broadcast %29 : vector<8x1xi1> to vector<8x32xi1>
    %31 = vector.broadcast %cst_7 : f32 to vector<8x32xf32>
    %32 = arith.select %30, %26, %31 : vector<8x32xi1>, vector<8x32xf32>
    %33 = vector.extract_strided_slice %4 {offsets = [2, 0], sizes = [1, 32], strides = [1, 1]} : vector<3x32xf32> to vector<1x32xf32>
    %34 = vector.shape_cast %33 : vector<1x32xf32> to vector<32xf32>
    %35 = vector.shape_cast %34 : vector<32xf32> to vector<1x32xf32>
    %36 = vector.broadcast %35 : vector<1x32xf32> to vector<8x32xf32>
    %37 = arith.mulf %32, %36 : vector<8x32xf32>
    %38 = arith.addf %25, %37 : vector<8x32xf32>
    %c0_8 = arith.constant 0 : index
    %c0_9 = arith.constant 0 : index
    %39 = vector.load %arg3[%c0_8, %c0_9] : memref<1x32xf32, #tpu.memory_space<vmem>>, vector<1x32xf32>
    %40 = vector.broadcast %39 : vector<1x32xf32> to vector<8x32xf32>
    %41 = arith.mulf %38, %40 : vector<8x32xf32>
    %c0_10 = arith.constant 0 : index
    %c0_11 = arith.constant 0 : index
    %42 = vector.load %arg4[%c0_10, %c0_11] : memref<1x32xf32, #tpu.memory_space<vmem>>, vector<1x32xf32>
    %43 = vector.broadcast %42 : vector<1x32xf32> to vector<8x32xf32>
    %44 = arith.addf %41, %43 : vector<8x32xf32>
    %45 = arith.negf %44 : vector<8x32xf32>
    %46 = math.exp %45 : vector<8x32xf32>
    %cst_12 = arith.constant 1.000000e+00 : f32
    %47 = vector.broadcast %cst_12 : f32 to vector<8x32xf32>
    %48 = arith.addf %47, %46 : vector<8x32xf32>
    %49 = arith.divf %47, %48 : vector<8x32xf32>
    %50 = arith.mulf %44, %49 : vector<8x32xf32>
    %51 = arith.truncf %50 : vector<8x32xf32> to vector<8x32xbf16>
    %c0_13 = arith.constant 0 : index
    %c0_14 = arith.constant 0 : index
    %c0_15 = arith.constant 0 : index
    %52 = vector.load %arg5[%c0_13, %c0_14, %c0_15] : memref<1x8x32xbf16, #tpu.memory_space<vmem>>, vector<1x8x32xbf16>
    %53 = vector.shape_cast %52 : vector<1x8x32xbf16> to vector<8x32xbf16>
    %54 = vector.shape_cast %51 : vector<8x32xbf16> to vector<1x8x32xbf16>
    tpu.vector_store %arg5[%c0_13, %c0_14, %c0_15], %54 {strides = array<i32>} : memref<1x8x32xbf16, #tpu.memory_space<vmem>>, vector<1x8x32xbf16>,
    return
  }
  func.func @transform_0(%arg0: i32) -> (i32, i32, i32) {
    %c0_i32 = arith.constant 0 : i32
    %c0_i32_0 = arith.constant 0 : i32
    %c0_i32_1 = arith.constant 0 : i32
    return %arg0, %c0_i32, %c0_i32_0 : i32, i32, i32
  }
  func.func @transform_1(%arg0: i32) -> (i32, i32) {
    %c0_i32 = arith.constant 0 : i32
    %c0_i32_0 = arith.constant 0 : i32
    %c0_i32_1 = arith.constant 0 : i32
    return %c0_i32, %c0_i32_0 : i32, i32
  }
  func.func @transform_2(%arg0: i32) -> (i32, i32) {
    %c0_i32 = arith.constant 0 : i32
    %c0_i32_0 = arith.constant 0 : i32
    %c0_i32_1 = arith.constant 0 : i32
    return %c0_i32, %c0_i32_0 : i32, i32
  }
  func.func @transform_3(%arg0: i32) -> (i32, i32) {
    %c0_i32 = arith.constant 0 : i32
    %c0_i32_0 = arith.constant 0 : i32
    %c0_i32_1 = arith.constant 0 : i32
    return %c0_i32, %c0_i32_0 : i32, i32
  }
  func.func @transform_4(%arg0: i32) -> (i32, i32, i32) {
    %c0_i32 = arith.constant 0 : i32
    %c0_i32_0 = arith.constant 0 : i32
    %c0_i32_1 = arith.constant 0 : i32
    return %arg0, %c0_i32, %c0_i32_0 : i32, i32, i32
  }
}

module attributes {stable_mosaic.version = 11 : i64} {
  func.func @_mm_kernel(%arg0: i32, %arg1: i32, %arg2: i32, %arg3: memref<16x128xbf16, #tpu.memory_space<vmem>>, %arg4: memref<128x32xbf16, #tpu.memory_space<vmem>>, %arg5: memref<1x32xf32, #tpu.memory_space<vmem>>, %arg6: memref<16x32xbf16, #tpu.memory_space<vmem>>, %arg7: memref<1x32xf32, #tpu.memory_space<vmem>>, %arg8: memref<1x32xf32, #tpu.memory_space<vmem>>, %arg9: memref<16x32xbf16, #tpu.memory_space<vmem>>, %arg10: memref<16x32xf32, #tpu.memory_space<vmem>>) attributes {dimension_semantics = [#tpu.dimension_semantics<parallel>, #tpu.dimension_semantics<parallel>, #tpu.dimension_semantics<arbitrary>], iteration_bounds = array<i64: 1, 1, 1>, scalar_prefetch = 0 : i64, scratch_operands = 1 : i64, tpu.core_type = #tpu.core_type<tc>, window_params = [{transform_indices = @transform_0, window_bounds = array<i64: 16, 128>}, {transform_indices = @transform_1, window_bounds = array<i64: 128, 32>}, {transform_indices = @transform_2, window_bounds = array<i64: 1, 32>}, {transform_indices = @transform_3, window_bounds = array<i64: 16, 32>}, {pipeline_mode = #tpu.pipeline_mode<synchronous>, transform_indices = @transform_4, window_bounds = array<i64: 1, 32>}, {pipeline_mode = #tpu.pipeline_mode<synchronous>, transform_indices = @transform_5, window_bounds = array<i64: 1, 32>}, {transform_indices = @transform_6, window_bounds = array<i64: 16, 32>}]} {
    %c0_i32 = arith.constant 0 : i32
    %0 = arith.cmpi eq, %arg2, %c0_i32 : i32
    %1 = arith.extui %0 : i1 to i32
    %c0_i32_0 = arith.constant 0 : i32
    %2 = arith.cmpi ne, %1, %c0_i32_0 : i32
    scf.if %2 {
      %cst_10 = arith.constant 0.000000e+00 : f32
      %12 = vector.broadcast %cst_10 : f32 to vector<16x32xf32>
      %c0_11 = arith.constant 0 : index
      %c0_12 = arith.constant 0 : index
      %13 = vector.load %arg10[%c0_11, %c0_12] : memref<16x32xf32, #tpu.memory_space<vmem>>, vector<16x32xf32>
      tpu.vector_store %arg10[%c0_11, %c0_12], %12 {strides = array<i32>} : memref<16x32xf32, #tpu.memory_space<vmem>>, vector<16x32xf32>,
    } else {
    }
    %c0 = arith.constant 0 : index
    %c0_1 = arith.constant 0 : index
    %3 = vector.load %arg3[%c0, %c0_1] : memref<16x128xbf16, #tpu.memory_space<vmem>>, vector<16x128xbf16>
    %c0_2 = arith.constant 0 : index
    %c0_3 = arith.constant 0 : index
    %4 = vector.load %arg10[%c0_2, %c0_3] : memref<16x32xf32, #tpu.memory_space<vmem>>, vector<16x32xf32>
    %c0_4 = arith.constant 0 : index
    %c0_5 = arith.constant 0 : index
    %5 = vector.load %arg4[%c0_4, %c0_5] : memref<128x32xbf16, #tpu.memory_space<vmem>>, vector<128x32xbf16>
    %cst = arith.constant dense<0.000000e+00> : vector<16x32xf32>
    %6 = tpu.matmul %3, %5, %cst {dimension_numbers = #tpu.dot_dimension_numbers<[1], [0], [0], [1], [0, 0, 1, 1], [], []>} : vector<16x128xbf16>, vector<128x32xbf16>, vector<16x32xf32> -> vector<16x32xf32>
    %7 = arith.addf %4, %6 : vector<16x32xf32>
    %c0_6 = arith.constant 0 : index
    %c0_7 = arith.constant 0 : index
    %8 = vector.load %arg10[%c0_6, %c0_7] : memref<16x32xf32, #tpu.memory_space<vmem>>, vector<16x32xf32>
    tpu.vector_store %arg10[%c0_6, %c0_7], %7 {strides = array<i32>} : memref<16x32xf32, #tpu.memory_space<vmem>>, vector<16x32xf32>,
    %c0_i32_8 = arith.constant 0 : i32
    %9 = arith.cmpi eq, %arg2, %c0_i32_8 : i32
    %10 = arith.extui %9 : i1 to i32
    %c0_i32_9 = arith.constant 0 : i32
    %11 = arith.cmpi ne, %10, %c0_i32_9 : i32
    scf.if %11 {
      %c0_10 = arith.constant 0 : index
      %c0_11 = arith.constant 0 : index
      %12 = vector.load %arg10[%c0_10, %c0_11] : memref<16x32xf32, #tpu.memory_space<vmem>>, vector<16x32xf32>
      %c0_12 = arith.constant 0 : index
      %c0_13 = arith.constant 0 : index
      %13 = vector.load %arg5[%c0_12, %c0_13] : memref<1x32xf32, #tpu.memory_space<vmem>>, vector<1x32xf32>
      %14 = vector.broadcast %13 : vector<1x32xf32> to vector<16x32xf32>
      %15 = arith.addf %12, %14 : vector<16x32xf32>
      %c0_14 = arith.constant 0 : index
      %c0_15 = arith.constant 0 : index
      %16 = vector.load %arg6[%c0_14, %c0_15] : memref<16x32xbf16, #tpu.memory_space<vmem>>, vector<16x32xbf16>
      %17 = arith.extf %16 : vector<16x32xbf16> to vector<16x32xf32>
      %cst_16 = arith.constant 5.000000e-01 : f32
      %18 = vector.broadcast %cst_16 : f32 to vector<16x32xf32>
      %19 = arith.mulf %18, %15 : vector<16x32xf32>
      %20 = arith.addf %17, %19 : vector<16x32xf32>
      %cst_17 = arith.constant dense<0.000000e+00> : vector<16xf32>
      %21 = vector.multi_reduction <add>, %20, %cst_17 [1] : vector<16x32xf32> to vector<16xf32>
      %22 = vector.shape_cast %21 : vector<16xf32> to vector<16x1xf32>
      %cst_18 = arith.constant 3.200000e+01 : f32
      %23 = vector.broadcast %cst_18 : f32 to vector<16x1xf32>
      %24 = arith.divf %22, %23 : vector<16x1xf32>
      %25 = vector.broadcast %24 : vector<16x1xf32> to vector<16x32xf32>
      %26 = arith.subf %20, %25 : vector<16x32xf32>
      %27 = arith.mulf %26, %26 : vector<16x32xf32>
      %cst_19 = arith.constant dense<0.000000e+00> : vector<16xf32>
      %28 = vector.multi_reduction <add>, %27, %cst_19 [1] : vector<16x32xf32> to vector<16xf32>
      %29 = vector.shape_cast %28 : vector<16xf32> to vector<16x1xf32>
      %cst_20 = arith.constant 3.200000e+01 : f32
      %30 = vector.broadcast %cst_20 : f32 to vector<16x1xf32>
      %31 = arith.divf %29, %30 : vector<16x1xf32>
      %32 = vector.broadcast %24 : vector<16x1xf32> to vector<16x32xf32>
      %33 = arith.subf %20, %32 : vector<16x32xf32>
      %cst_21 = arith.constant 9.99999974E-6 : f32
      %34 = vector.broadcast %cst_21 : f32 to vector<16x1xf32>
      %35 = arith.addf %31, %34 : vector<16x1xf32>
      %36 = math.rsqrt %35 : vector<16x1xf32>
      %37 = vector.broadcast %36 : vector<16x1xf32> to vector<16x32xf32>
      %38 = arith.mulf %33, %37 : vector<16x32xf32>
      %c0_22 = arith.constant 0 : index
      %c0_23 = arith.constant 0 : index
      %39 = vector.load %arg7[%c0_22, %c0_23] : memref<1x32xf32, #tpu.memory_space<vmem>>, vector<1x32xf32>
      %40 = vector.broadcast %39 : vector<1x32xf32> to vector<16x32xf32>
      %41 = arith.mulf %38, %40 : vector<16x32xf32>
      %c0_24 = arith.constant 0 : index
      %c0_25 = arith.constant 0 : index
      %42 = vector.load %arg8[%c0_24, %c0_25] : memref<1x32xf32, #tpu.memory_space<vmem>>, vector<1x32xf32>
      %43 = vector.broadcast %42 : vector<1x32xf32> to vector<16x32xf32>
      %44 = arith.addf %41, %43 : vector<16x32xf32>
      %45 = arith.truncf %44 : vector<16x32xf32> to vector<16x32xbf16>
      %c0_26 = arith.constant 0 : index
      %c0_27 = arith.constant 0 : index
      %46 = vector.load %arg9[%c0_26, %c0_27] : memref<16x32xbf16, #tpu.memory_space<vmem>>, vector<16x32xbf16>
      tpu.vector_store %arg9[%c0_26, %c0_27], %45 {strides = array<i32>} : memref<16x32xbf16, #tpu.memory_space<vmem>>, vector<16x32xbf16>,
    } else {
    }
    return
  }
  func.func @transform_0(%arg0: i32, %arg1: i32, %arg2: i32) -> (i32, i32) {
    %c0_i32 = arith.constant 0 : i32
    return %arg0, %arg2 : i32, i32
  }
  func.func @transform_1(%arg0: i32, %arg1: i32, %arg2: i32) -> (i32, i32) {
    %c0_i32 = arith.constant 0 : i32
    return %arg2, %arg1 : i32, i32
  }
  func.func @transform_2(%arg0: i32, %arg1: i32, %arg2: i32) -> (i32, i32) {
    %c0_i32 = arith.constant 0 : i32
    %c0_i32_0 = arith.constant 0 : i32
    return %c0_i32, %arg1 : i32, i32
  }
  func.func @transform_3(%arg0: i32, %arg1: i32, %arg2: i32) -> (i32, i32) {
    %c0_i32 = arith.constant 0 : i32
    return %arg0, %arg1 : i32, i32
  }
  func.func @transform_4(%arg0: i32, %arg1: i32, %arg2: i32) -> (i32, i32) {
    %c0_i32 = arith.constant 0 : i32
    %c0_i32_0 = arith.constant 0 : i32
    %c0_i32_1 = arith.constant 0 : i32
    return %c0_i32, %c0_i32_0 : i32, i32
  }
  func.func @transform_5(%arg0: i32, %arg1: i32, %arg2: i32) -> (i32, i32) {
    %c0_i32 = arith.constant 0 : i32
    %c0_i32_0 = arith.constant 0 : i32
    %c0_i32_1 = arith.constant 0 : i32
    return %c0_i32, %c0_i32_0 : i32, i32
  }
  func.func @transform_6(%arg0: i32, %arg1: i32, %arg2: i32) -> (i32, i32) {
    %c0_i32 = arith.constant 0 : i32
    return %arg0, %arg1 : i32, i32
  }
}

module attributes {stable_mosaic.version = 11 : i64} {
  func.func @_mm_kernel(%arg0: i32, %arg1: i32, %arg2: i32, %arg3: memref<16x32xbf16, #tpu.memory_space<vmem>>, %arg4: memref<32x128xbf16, #tpu.memory_space<vmem>>, %arg5: memref<1x128xf32, #tpu.memory_space<vmem>>, %arg6: memref<16x128xbf16, #tpu.memory_space<vmem>>, %arg7: memref<16x128xf32, #tpu.memory_space<vmem>>) attributes {dimension_semantics = [#tpu.dimension_semantics<parallel>, #tpu.dimension_semantics<parallel>, #tpu.dimension_semantics<arbitrary>], iteration_bounds = array<i64: 1, 1, 1>, scalar_prefetch = 0 : i64, scratch_operands = 1 : i64, tpu.core_type = #tpu.core_type<tc>, window_params = [{transform_indices = @transform_0, window_bounds = array<i64: 16, 32>}, {transform_indices = @transform_1, window_bounds = array<i64: 32, 128>}, {transform_indices = @transform_2, window_bounds = array<i64: 1, 128>}, {transform_indices = @transform_3, window_bounds = array<i64: 16, 128>}]} {
    %c0_i32 = arith.constant 0 : i32
    %0 = arith.cmpi eq, %arg2, %c0_i32 : i32
    %1 = arith.extui %0 : i1 to i32
    %c0_i32_0 = arith.constant 0 : i32
    %2 = arith.cmpi ne, %1, %c0_i32_0 : i32
    scf.if %2 {
      %cst_10 = arith.constant 0.000000e+00 : f32
      %12 = vector.broadcast %cst_10 : f32 to vector<16x128xf32>
      %c0_11 = arith.constant 0 : index
      %c0_12 = arith.constant 0 : index
      %13 = vector.load %arg7[%c0_11, %c0_12] : memref<16x128xf32, #tpu.memory_space<vmem>>, vector<16x128xf32>
      tpu.vector_store %arg7[%c0_11, %c0_12], %12 {strides = array<i32>} : memref<16x128xf32, #tpu.memory_space<vmem>>, vector<16x128xf32>,
    } else {
    }
    %c0 = arith.constant 0 : index
    %c0_1 = arith.constant 0 : index
    %3 = vector.load %arg3[%c0, %c0_1] : memref<16x32xbf16, #tpu.memory_space<vmem>>, vector<16x32xbf16>
    %c0_2 = arith.constant 0 : index
    %c0_3 = arith.constant 0 : index
    %4 = vector.load %arg7[%c0_2, %c0_3] : memref<16x128xf32, #tpu.memory_space<vmem>>, vector<16x128xf32>
    %c0_4 = arith.constant 0 : index
    %c0_5 = arith.constant 0 : index
    %5 = vector.load %arg4[%c0_4, %c0_5] : memref<32x128xbf16, #tpu.memory_space<vmem>>, vector<32x128xbf16>
    %cst = arith.constant dense<0.000000e+00> : vector<16x128xf32>
    %6 = tpu.matmul %3, %5, %cst {dimension_numbers = #tpu.dot_dimension_numbers<[1], [0], [0], [1], [0, 0, 1, 1], [], []>} : vector<16x32xbf16>, vector<32x128xbf16>, vector<16x128xf32> -> vector<16x128xf32>
    %7 = arith.addf %4, %6 : vector<16x128xf32>
    %c0_6 = arith.constant 0 : index
    %c0_7 = arith.constant 0 : index
    %8 = vector.load %arg7[%c0_6, %c0_7] : memref<16x128xf32, #tpu.memory_space<vmem>>, vector<16x128xf32>
    tpu.vector_store %arg7[%c0_6, %c0_7], %7 {strides = array<i32>} : memref<16x128xf32, #tpu.memory_space<vmem>>, vector<16x128xf32>,
    %c0_i32_8 = arith.constant 0 : i32
    %9 = arith.cmpi eq, %arg2, %c0_i32_8 : i32
    %10 = arith.extui %9 : i1 to i32
    %c0_i32_9 = arith.constant 0 : i32
    %11 = arith.cmpi ne, %10, %c0_i32_9 : i32
    scf.if %11 {
      %c0_10 = arith.constant 0 : index
      %c0_11 = arith.constant 0 : index
      %12 = vector.load %arg7[%c0_10, %c0_11] : memref<16x128xf32, #tpu.memory_space<vmem>>, vector<16x128xf32>
      %c0_12 = arith.constant 0 : index
      %c0_13 = arith.constant 0 : index
      %13 = vector.load %arg5[%c0_12, %c0_13] : memref<1x128xf32, #tpu.memory_space<vmem>>, vector<1x128xf32>
      %14 = vector.broadcast %13 : vector<1x128xf32> to vector<16x128xf32>
      %15 = arith.addf %12, %14 : vector<16x128xf32>
      %cst_14 = arith.constant 0.000000e+00 : f32
      %16 = vector.broadcast %cst_14 : f32 to vector<16x128xf32>
      %17 = arith.maximumf %15, %16 : vector<16x128xf32>
      %18 = arith.truncf %17 : vector<16x128xf32> to vector<16x128xbf16>
      %c0_15 = arith.constant 0 : index
      %c0_16 = arith.constant 0 : index
      %19 = vector.load %arg6[%c0_15, %c0_16] : memref<16x128xbf16, #tpu.memory_space<vmem>>, vector<16x128xbf16>
      tpu.vector_store %arg6[%c0_15, %c0_16], %18 {strides = array<i32>} : memref<16x128xbf16, #tpu.memory_space<vmem>>, vector<16x128xbf16>,
    } else {
    }
    return
  }
  func.func @transform_0(%arg0: i32, %arg1: i32, %arg2: i32) -> (i32, i32) {
    %c0_i32 = arith.constant 0 : i32
    return %arg0, %arg2 : i32, i32
  }
  func.func @transform_1(%arg0: i32, %arg1: i32, %arg2: i32) -> (i32, i32) {
    %c0_i32 = arith.constant 0 : i32
    return %arg2, %arg1 : i32, i32
  }
  func.func @transform_2(%arg0: i32, %arg1: i32, %arg2: i32) -> (i32, i32) {
    %c0_i32 = arith.constant 0 : i32
    %c0_i32_0 = arith.constant 0 : i32
    return %c0_i32, %arg1 : i32, i32
  }
  func.func @transform_3(%arg0: i32, %arg1: i32, %arg2: i32) -> (i32, i32) {
    %c0_i32 = arith.constant 0 : i32
    return %arg0, %arg1 : i32, i32
  }
}

module attributes {stable_mosaic.version = 11 : i64} {
  func.func @_mm_kernel(%arg0: i32, %arg1: i32, %arg2: i32, %arg3: memref<16x32xbf16, #tpu.memory_space<vmem>>, %arg4: memref<32x128xbf16, #tpu.memory_space<vmem>>, %arg5: memref<1x128xf32, #tpu.memory_space<vmem>>, %arg6: memref<16x128xbf16, #tpu.memory_space<vmem>>, %arg7: memref<16x128xf32, #tpu.memory_space<vmem>>) attributes {dimension_semantics = [#tpu.dimension_semantics<parallel>, #tpu.dimension_semantics<parallel>, #tpu.dimension_semantics<arbitrary>], iteration_bounds = array<i64: 1, 1, 1>, scalar_prefetch = 0 : i64, scratch_operands = 1 : i64, tpu.core_type = #tpu.core_type<tc>, window_params = [{transform_indices = @transform_0, window_bounds = array<i64: 16, 32>}, {transform_indices = @transform_1, window_bounds = array<i64: 32, 128>}, {transform_indices = @transform_2, window_bounds = array<i64: 1, 128>}, {transform_indices = @transform_3, window_bounds = array<i64: 16, 128>}]} {
    %c0_i32 = arith.constant 0 : i32
    %0 = arith.cmpi eq, %arg2, %c0_i32 : i32
    %1 = arith.extui %0 : i1 to i32
    %c0_i32_0 = arith.constant 0 : i32
    %2 = arith.cmpi ne, %1, %c0_i32_0 : i32
    scf.if %2 {
      %cst_10 = arith.constant 0.000000e+00 : f32
      %12 = vector.broadcast %cst_10 : f32 to vector<16x128xf32>
      %c0_11 = arith.constant 0 : index
      %c0_12 = arith.constant 0 : index
      %13 = vector.load %arg7[%c0_11, %c0_12] : memref<16x128xf32, #tpu.memory_space<vmem>>, vector<16x128xf32>
      tpu.vector_store %arg7[%c0_11, %c0_12], %12 {strides = array<i32>} : memref<16x128xf32, #tpu.memory_space<vmem>>, vector<16x128xf32>,
    } else {
    }
    %c0 = arith.constant 0 : index
    %c0_1 = arith.constant 0 : index
    %3 = vector.load %arg3[%c0, %c0_1] : memref<16x32xbf16, #tpu.memory_space<vmem>>, vector<16x32xbf16>
    %c0_2 = arith.constant 0 : index
    %c0_3 = arith.constant 0 : index
    %4 = vector.load %arg7[%c0_2, %c0_3] : memref<16x128xf32, #tpu.memory_space<vmem>>, vector<16x128xf32>
    %c0_4 = arith.constant 0 : index
    %c0_5 = arith.constant 0 : index
    %5 = vector.load %arg4[%c0_4, %c0_5] : memref<32x128xbf16, #tpu.memory_space<vmem>>, vector<32x128xbf16>
    %cst = arith.constant dense<0.000000e+00> : vector<16x128xf32>
    %6 = tpu.matmul %3, %5, %cst {dimension_numbers = #tpu.dot_dimension_numbers<[1], [0], [0], [1], [0, 0, 1, 1], [], []>} : vector<16x32xbf16>, vector<32x128xbf16>, vector<16x128xf32> -> vector<16x128xf32>
    %7 = arith.addf %4, %6 : vector<16x128xf32>
    %c0_6 = arith.constant 0 : index
    %c0_7 = arith.constant 0 : index
    %8 = vector.load %arg7[%c0_6, %c0_7] : memref<16x128xf32, #tpu.memory_space<vmem>>, vector<16x128xf32>
    tpu.vector_store %arg7[%c0_6, %c0_7], %7 {strides = array<i32>} : memref<16x128xf32, #tpu.memory_space<vmem>>, vector<16x128xf32>,
    %c0_i32_8 = arith.constant 0 : i32
    %9 = arith.cmpi eq, %arg2, %c0_i32_8 : i32
    %10 = arith.extui %9 : i1 to i32
    %c0_i32_9 = arith.constant 0 : i32
    %11 = arith.cmpi ne, %10, %c0_i32_9 : i32
    scf.if %11 {
      %c0_10 = arith.constant 0 : index
      %c0_11 = arith.constant 0 : index
      %12 = vector.load %arg7[%c0_10, %c0_11] : memref<16x128xf32, #tpu.memory_space<vmem>>, vector<16x128xf32>
      %c0_12 = arith.constant 0 : index
      %c0_13 = arith.constant 0 : index
      %13 = vector.load %arg5[%c0_12, %c0_13] : memref<1x128xf32, #tpu.memory_space<vmem>>, vector<1x128xf32>
      %14 = vector.broadcast %13 : vector<1x128xf32> to vector<16x128xf32>
      %15 = arith.addf %12, %14 : vector<16x128xf32>
      %16 = arith.truncf %15 : vector<16x128xf32> to vector<16x128xbf16>
      %c0_14 = arith.constant 0 : index
      %c0_15 = arith.constant 0 : index
      %17 = vector.load %arg6[%c0_14, %c0_15] : memref<16x128xbf16, #tpu.memory_space<vmem>>, vector<16x128xbf16>
      tpu.vector_store %arg6[%c0_14, %c0_15], %16 {strides = array<i32>} : memref<16x128xbf16, #tpu.memory_space<vmem>>, vector<16x128xbf16>,
    } else {
    }
    return
  }
  func.func @transform_0(%arg0: i32, %arg1: i32, %arg2: i32) -> (i32, i32) {
    %c0_i32 = arith.constant 0 : i32
    return %arg0, %arg2 : i32, i32
  }
  func.func @transform_1(%arg0: i32, %arg1: i32, %arg2: i32) -> (i32, i32) {
    %c0_i32 = arith.constant 0 : i32
    return %arg2, %arg1 : i32, i32
  }
  func.func @transform_2(%arg0: i32, %arg1: i32, %arg2: i32) -> (i32, i32) {
    %c0_i32 = arith.constant 0 : i32
    %c0_i32_0 = arith.constant 0 : i32
    return %c0_i32, %arg1 : i32, i32
  }
  func.func @transform_3(%arg0: i32, %arg1: i32, %arg2: i32) -> (i32, i32) {
    %c0_i32 = arith.constant 0 : i32
    return %arg0, %arg1 : i32, i32
  }
}

</mosaic_0001>

<llo_original>
// kernel: conformer_forward.23
$region0: #{conformer_forward.23}
  #allocation0 [shape = 'u32[]', space=smem, size = 0x4, offset = 0x4, fixed_abs, tag = 'smem constant byte address 0x4 - core index']
  #allocation1 [shape = 'u32[144,128]{1,0:T(1,128)}', space=vmem, size = 0x12000, scoped, tag = 'internal scratch']
  #allocation2 [shape = 'f32[16,128]{1,0:T(8,128)}', space=vmem, size = 0x2000, scoped, tag = 'scratch operand']
  %s0 = inlined_call_operand.vmem [shape: bf16[16,16], index: 0, kind: input, shape index: {}]
  %s1 = inlined_call_operand.vmem [shape: bf16[16,128], index: 1, kind: input, shape index: {}]
  %s2 = inlined_call_operand.vmem [shape: f32[1,128], index: 2, kind: input, shape index: {}]
  %s3 = inlined_call_operand.vmem [shape: bf16[16,128], index: 3, kind: output, shape index: {}]
  %s4 = sld [smem:[#allocation0]]
  $region30: #{conformer_forward.23} parent=0
    _
  %s6 = ssub.s32 1, %s4
  %s7 = scalar_select 0, %s6, %s4
  // Predicated region
  $region2: #{conformer_forward.23} parent=0 // pred_check
    _
  $region3: #{conformer_forward.23} parent=0 // pred_check_branch
    %9 = sbr.rel (0) target = $region5
  $region4: #{conformer_forward.23} parent=0 // pred_region
    _
  $region5: #{conformer_forward.23} parent=0 // pred_fallthru
    _
  // Predicated region
  $region6: #{conformer_forward.23} parent=0 // pred_check
    _
  $region7: #{conformer_forward.23} parent=0 // pred_check_branch
    %11 = sbr.rel (0) target = $region9
  $region8: #{conformer_forward.23} parent=0 // pred_region
    _
  $region9: #{conformer_forward.23} parent=0 // pred_fallthru
    _
  // Predicated region
  $region10: #{conformer_forward.23} parent=0 // pred_check
    _
  $region11: #{conformer_forward.23} parent=0 // pred_check_branch
    %13 = sbr.rel (0) target = $region13
  $region12: #{conformer_forward.23} parent=0 // pred_region
    _
  $region13: #{conformer_forward.23} parent=0 // pred_fallthru
    _
  %p15 = scmp.eq.s32.totalorder 0, 0
  // Predicated region
  $region14: #{conformer_forward.23} parent=0 // pred_check
    %p16 = pneg %p15
  $region15: #{conformer_forward.23} parent=0 // pred_check_branch
    %18 = sbr.rel (%p16) target = $region17
  $region16: #{conformer_forward.23} parent=0 // pred_region
    %19 = vst [vmem:[#allocation2] sm:$0xff] 0.0
    %20 = vst [vmem:[#allocation2 + $0x8] sm:$0xff] 0.0
  $region17: #{conformer_forward.23} parent=0 // pred_fallthru
    _
  %v21 = vld [vmem:[%s0] sm:$0xf]
  %v22 = vld [vmem:[%s0 + $0x4] sm:$0xf]
  %v23 = vld [vmem:[#allocation2] sm:$0xff]
  %v24 = vld [vmem:[#allocation2 + $0x8] sm:$0xff]
  %v25 = vld [vmem:[%s1] sm:$0xf]
  %v26 = vld [vmem:[%s1 + $0x4] sm:$0xf]
  %v29 = vunpack.c.l.b16 %v21
  %v30 = vunpack.c.l.b16 %v22
  %v31 = vpack.c.b16 %v30, %v29
  %v34 = vunpack.c.l.b16 %v25
  %v35 = vunpack.c.l.b16 %v26
  %v36 = vpack.c.b16 %v35, %v34
  %vm38 = vcmask 130048
  %v40 = vsel %vm38, %v31, 0
  %42 = vmatprep.subr.bf16.mxu0 0
  %43 = vmatpush1.bf16.msra.mxu0 %v36
  %44 = vmatprep.subr.bf16.mxu0 0
  %45 = vmatpush1.bf16.msra.mxu0 0
  %46 = vmatprep.subr.bf16.mxu0 0
  %47 = vmatpush1.bf16.msra.mxu0 0
  %48 = vmatprep.subr.bf16.mxu0 0
  %49 = vmatpush1.bf16.msra.mxu0 0
  %50 = vmatprep.subr.bf16.mxu0 0
  %51 = vmatpush1.bf16.msra.mxu0 0
  %52 = vmatprep.subr.bf16.mxu0 0
  %53 = vmatpush1.bf16.msra.mxu0 0
  %54 = vmatprep.subr.bf16.mxu0 0
  %55 = vmatpush1.bf16.msra.mxu0 0
  %56 = vmatprep.subr.bf16.mxu0 0
  %57 = vmatpush1.bf16.msra.mxu0 0
  %58 = vmatprep.subr.bf16.mxu0 0
  %59 = vmatpush1.bf16.msra.mxu0 0
  %60 = vmatprep.subr.bf16.mxu0 0
  %61 = vmatpush1.bf16.msra.mxu0 0
  %62 = vmatprep.subr.bf16.mxu0 0
  %63 = vmatpush1.bf16.msra.mxu0 0
  %64 = vmatprep.subr.bf16.mxu0 0
  %65 = vmatpush1.bf16.msra.mxu0 0
  %66 = vmatprep.subr.bf16.mxu0 0
  %67 = vmatpush1.bf16.msra.mxu0 0
  %68 = vmatprep.subr.bf16.mxu0 0
  %69 = vmatpush1.bf16.msra.mxu0 0
  %70 = vmatprep.subr.bf16.mxu0 0
  %71 = vmatpush1.bf16.msra.mxu0 0
  %72 = vmatprep.subr.bf16.mxu0 0
  %73 = vmatpush1.bf16.msra.mxu0 0
  %74 = vmatprep.mubr.bf16.mxu0 0
  %75 = vmatmul.mubr.bf16.gmra.mrb[0].mxu0 %v40
  %v76 = vpop.f32.mrb[0].mxu0
  %v77 = vadd.f32 0.0, %v76
  %v78 = vpop.f32.mrb[0].mxu0
  %v79 = vpop.f32.mrb[0].mxu0
  %v80 = vadd.f32 0.0, %v79
  %v81 = vpop.f32.mrb[0].mxu0
  %82 = vdwg.mxu0
  %v83 = vadd.f32 %v23, %v77
  %v84 = vadd.f32 %v24, %v80
  %85 = vst [vmem:[#allocation2] sm:$0xff] %v83
  %86 = vst [vmem:[#allocation2 + $0x8] sm:$0xff] %v84
  // Predicated region
  $region18: #{conformer_forward.23} parent=0 // pred_check
    %p87 = pneg %p15
  $region19: #{conformer_forward.23} parent=0 // pred_check_branch
    %89 = sbr.rel (%p87) target = $region21
  $region20: #{conformer_forward.23} parent=0 // pred_region
    %v90 = vld [vmem:[#allocation2] sm:$0xff]
    %v91 = vld [vmem:[#allocation2 + $0x8] sm:$0xff]
    %v92 = vld [vmem:[%s2] sm:$0x1]
    %v94 = vlaneseq
    %v95 = vshrl.u32 %v94, 7
    %v96 = vsub.s32 0, %v95
    %v97 = vrot.slane %v92, %v96
    %v99 = vadd.f32 %v90, %v97
    %v100 = vadd.f32 %v91, %v97
    %v101 = vxor.u32 %v99, 2147483648
    %v102 = vxor.u32 %v100, 2147483648
    %v103 = vmul.f32 %v101, 1.442695
    %v104 = vpow.pop %v103
    %v105 = vmul.f32 %v102, 1.442695
    %v106 = vpow.pop %v105
    %v107 = vadd.f32 %v104, 1.0
    %v108 = vadd.f32 %v106, 1.0
    %v109 = vrcp.pop %v107
    %v110 = vmul.f32 1.0, %v109
    %v111 = vrcp.pop %v108
    %v112 = vmul.f32 1.0, %v111
    %v113 = vmul.f32 %v99, %v110
    %v114 = vmul.f32 %v100, %v112
    %v115 = vpack.c.bf16 %v114, %v113
    %v117 = vunpack.c.l.b16 %v115
    %v118 = vunpack.c.h.b16 %v115
    %v119 = vpack.c.b16 %v117, %v117
    %v120 = vpack.c.b16 %v118, %v118
    %123 = vst [vmem:[%s3] sm:$0xf] %v119
    %124 = vst [vmem:[%s3 + $0x4] sm:$0xf] %v120
  $region21: #{conformer_forward.23} parent=0 // pred_fallthru
    _
  // Predicated region
  $region22: #{conformer_forward.23} parent=0 // pred_check
    _
  $region23: #{conformer_forward.23} parent=0 // pred_check_branch
    %126 = sbr.rel (0) target = $region25
  $region24: #{conformer_forward.23} parent=0 // pred_region
    _
  $region25: #{conformer_forward.23} parent=0 // pred_fallthru
    _
  // Predicated region
  $region26: #{conformer_forward.23} parent=0 // pred_check
    _
  $region27: #{conformer_forward.23} parent=0 // pred_check_branch
    %128 = sbr.rel (0) target = $region29
  $region28: #{conformer_forward.23} parent=0 // pred_region
    _
  $region29: #{conformer_forward.23} parent=0 // pred_fallthru
    _

// kernel: conformer_forward.25
$region0: #{conformer_forward.25}
  #allocation0 [shape = 'u32[]', space=smem, size = 0x4, offset = 0x4, fixed_abs, tag = 'smem constant byte address 0x4 - core index']
  #allocation1 [shape = 'u32[144,128]{1,0:T(1,128)}', space=vmem, size = 0x12000, scoped, tag = 'internal scratch']
  #allocation2 [shape = 'f32[16,128]{1,0:T(8,128)}', space=vmem, size = 0x2000, scoped, tag = 'scratch operand']
  %s0 = inlined_call_operand.vmem [shape: bf16[16,128], index: 0, kind: input, shape index: {}]
  %s1 = inlined_call_operand.vmem [shape: bf16[128,128], index: 1, kind: input, shape index: {}]
  %s2 = inlined_call_operand.vmem [shape: f32[1,128], index: 2, kind: input, shape index: {}]
  %s3 = inlined_call_operand.vmem [shape: bf16[16,128], index: 3, kind: input, shape index: {}]
  %s4 = inlined_call_operand.vmem [shape: bf16[16,128], index: 4, kind: output, shape index: {}]
  %s5 = sld [smem:[#allocation0]]
  $region34: #{conformer_forward.25} parent=0
    _
  %s7 = ssub.s32 1, %s5
  %s8 = scalar_select 0, %s7, %s5
  // Predicated region
  $region2: #{conformer_forward.25} parent=0 // pred_check
    _
  $region3: #{conformer_forward.25} parent=0 // pred_check_branch
    %10 = sbr.rel (0) target = $region5
  $region4: #{conformer_forward.25} parent=0 // pred_region
    _
  $region5: #{conformer_forward.25} parent=0 // pred_fallthru
    _
  // Predicated region
  $region6: #{conformer_forward.25} parent=0 // pred_check
    _
  $region7: #{conformer_forward.25} parent=0 // pred_check_branch
    %12 = sbr.rel (0) target = $region9
  $region8: #{conformer_forward.25} parent=0 // pred_region
    _
  $region9: #{conformer_forward.25} parent=0 // pred_fallthru
    _
  // Predicated region
  $region10: #{conformer_forward.25} parent=0 // pred_check
    _
  $region11: #{conformer_forward.25} parent=0 // pred_check_branch
    %14 = sbr.rel (0) target = $region13
  $region12: #{conformer_forward.25} parent=0 // pred_region
    _
  $region13: #{conformer_forward.25} parent=0 // pred_fallthru
    _
  // Predicated region
  $region14: #{conformer_forward.25} parent=0 // pred_check
    _
  $region15: #{conformer_forward.25} parent=0 // pred_check_branch
    %16 = sbr.rel (0) target = $region17
  $region16: #{conformer_forward.25} parent=0 // pred_region
    _
  $region17: #{conformer_forward.25} parent=0 // pred_fallthru
    _
  %p18 = scmp.eq.s32.totalorder 0, 0
  // Predicated region
  $region18: #{conformer_forward.25} parent=0 // pred_check
    %p19 = pneg %p18
  $region19: #{conformer_forward.25} parent=0 // pred_check_branch
    %21 = sbr.rel (%p19) target = $region21
  $region20: #{conformer_forward.25} parent=0 // pred_region
    %22 = vst [vmem:[#allocation2] sm:$0xff] 0.0
    %23 = vst [vmem:[#allocation2 + $0x8] sm:$0xff] 0.0
  $region21: #{conformer_forward.25} parent=0 // pred_fallthru
    _
  %v24 = vld [vmem:[%s0] sm:$0xf]
  %v25 = vld [vmem:[%s0 + $0x4] sm:$0xf]
  %v26 = vld [vmem:[#allocation2] sm:$0xff]
  %v27 = vld [vmem:[#allocation2 + $0x8] sm:$0xff]
  %v28 = vld [vmem:[%s1] sm:$0xf]
  %v29 = vld [vmem:[%s1 + $0x4] sm:$0xf]
  %v30 = vld [vmem:[%s1 + $0x8] sm:$0xf]
  %v31 = vld [vmem:[%s1 + $0xc] sm:$0xf]
  %v32 = vld [vmem:[%s1 + $0x10] sm:$0xf]
  %v33 = vld [vmem:[%s1 + $0x14] sm:$0xf]
  %v34 = vld [vmem:[%s1 + $0x18] sm:$0xf]
  %v35 = vld [vmem:[%s1 + $0x1c] sm:$0xf]
  %v36 = vld [vmem:[%s1 + $0x20] sm:$0xf]
  %v37 = vld [vmem:[%s1 + $0x24] sm:$0xf]
  %v38 = vld [vmem:[%s1 + $0x28] sm:$0xf]
  %v39 = vld [vmem:[%s1 + $0x2c] sm:$0xf]
  %v40 = vld [vmem:[%s1 + $0x30] sm:$0xf]
  %v41 = vld [vmem:[%s1 + $0x34] sm:$0xf]
  %v42 = vld [vmem:[%s1 + $0x38] sm:$0xf]
  %v43 = vld [vmem:[%s1 + $0x3c] sm:$0xf]
  %v46 = vunpack.c.l.b16 %v24
  %v47 = vunpack.c.l.b16 %v25
  %v48 = vpack.c.b16 %v47, %v46
  %v66 = vunpack.c.l.b16 %v28
  %v67 = vunpack.c.l.b16 %v29
  %v68 = vunpack.c.l.b16 %v30
  %v69 = vunpack.c.l.b16 %v31
  %v70 = vunpack.c.l.b16 %v32
  %v71 = vunpack.c.l.b16 %v33
  %v72 = vunpack.c.l.b16 %v34
  %v73 = vunpack.c.l.b16 %v35
  %v74 = vunpack.c.l.b16 %v36
  %v75 = vunpack.c.l.b16 %v37
  %v76 = vunpack.c.l.b16 %v38
  %v77 = vunpack.c.l.b16 %v39
  %v78 = vunpack.c.l.b16 %v40
  %v79 = vunpack.c.l.b16 %v41
  %v80 = vunpack.c.l.b16 %v42
  %v81 = vunpack.c.l.b16 %v43
  %v82 = vpack.c.b16 %v67, %v66
  %v83 = vpack.c.b16 %v69, %v68
  %v84 = vpack.c.b16 %v71, %v70
  %v85 = vpack.c.b16 %v73, %v72
  %v86 = vpack.c.b16 %v75, %v74
  %v87 = vpack.c.b16 %v77, %v76
  %v88 = vpack.c.b16 %v79, %v78
  %v89 = vpack.c.b16 %v81, %v80
  %98 = vmatprep.subr.bf16.mxu0 0
  %99 = vmatpush1.bf16.msra.mxu0 %v82
  %100 = vmatprep.subr.bf16.mxu0 0
  %101 = vmatpush1.bf16.msra.mxu0 %v83
  %102 = vmatprep.subr.bf16.mxu0 0
  %103 = vmatpush1.bf16.msra.mxu0 %v84
  %104 = vmatprep.subr.bf16.mxu0 0
  %105 = vmatpush1.bf16.msra.mxu0 %v85
  %106 = vmatprep.subr.bf16.mxu0 0
  %107 = vmatpush1.bf16.msra.mxu0 %v86
  %108 = vmatprep.subr.bf16.mxu0 0
  %109 = vmatpush1.bf16.msra.mxu0 %v87
  %110 = vmatprep.subr.bf16.mxu0 0
  %111 = vmatpush1.bf16.msra.mxu0 %v88
  %112 = vmatprep.subr.bf16.mxu0 0
  %113 = vmatpush1.bf16.msra.mxu0 %v89
  %114 = vmatprep.subr.bf16.mxu0 0
  %115 = vmatpush1.bf16.msra.mxu0 0
  %116 = vmatprep.subr.bf16.mxu0 0
  %117 = vmatpush1.bf16.msra.mxu0 0
  %118 = vmatprep.subr.bf16.mxu0 0
  %119 = vmatpush1.bf16.msra.mxu0 0
  %120 = vmatprep.subr.bf16.mxu0 0
  %121 = vmatpush1.bf16.msra.mxu0 0
  %122 = vmatprep.subr.bf16.mxu0 0
  %123 = vmatpush1.bf16.msra.mxu0 0
  %124 = vmatprep.subr.bf16.mxu0 0
  %125 = vmatpush1.bf16.msra.mxu0 0
  %126 = vmatprep.subr.bf16.mxu0 0
  %127 = vmatpush1.bf16.msra.mxu0 0
  %128 = vmatprep.subr.bf16.mxu0 0
  %129 = vmatpush1.bf16.msra.mxu0 0
  %130 = vmatprep.mubr.bf16.mxu0 0
  %131 = vmatmul.mubr.bf16.gmra.mrb[0].mxu0 %v48
  %v132 = vpop.f32.mrb[0].mxu0
  %v133 = vadd.f32 0.0, %v132
  %v134 = vpop.f32.mrb[0].mxu0
  %v135 = vpop.f32.mrb[0].mxu0
  %v136 = vadd.f32 0.0, %v135
  %v137 = vpop.f32.mrb[0].mxu0
  %138 = vdwg.mxu0
  %v139 = vadd.f32 %v26, %v133
  %v140 = vadd.f32 %v27, %v136
  %141 = vst [vmem:[#allocation2] sm:$0xff] %v139
  %142 = vst [vmem:[#allocation2 + $0x8] sm:$0xff] %v140
  // Predicated region
  $region22: #{conformer_forward.25} parent=0 // pred_check
    %p143 = pneg %p18
  $region23: #{conformer_forward.25} parent=0 // pred_check_branch
    %145 = sbr.rel (%p143) target = $region25
  $region24: #{conformer_forward.25} parent=0 // pred_region
    %v146 = vld [vmem:[#allocation2] sm:$0xff]
    %v147 = vld [vmem:[#allocation2 + $0x8] sm:$0xff]
    %v148 = vld [vmem:[%s2] sm:$0x1]
    %v150 = vlaneseq
    %v151 = vshrl.u32 %v150, 7
    %v152 = vsub.s32 0, %v151
    %v153 = vrot.slane %v148, %v152
    %v155 = vadd.f32 %v146, %v153
    %v156 = vadd.f32 %v147, %v153
    %v157 = vld [vmem:[%s3] sm:$0xf]
    %v158 = vld [vmem:[%s3 + $0x4] sm:$0xf]
    %v159 = vunpack.c.l.bf16 %v157
    %v160 = vunpack.c.l.bf16 %v158
    %v161 = vmul.f32 %v155, 0.5
    %v162 = vmul.f32 %v156, 0.5
    %v163 = vadd.f32 %v159, %v161
    %v164 = vadd.f32 %v160, %v162
    %v165 = vpack.c.bf16 %v164, %v163
    %v167 = vunpack.c.l.b16 %v165
    %v168 = vunpack.c.h.b16 %v165
    %v169 = vpack.c.b16 %v167, %v167
    %v170 = vpack.c.b16 %v168, %v168
    %173 = vst [vmem:[%s4] sm:$0xf] %v169
    %174 = vst [vmem:[%s4 + $0x4] sm:$0xf] %v170
  $region25: #{conformer_forward.25} parent=0 // pred_fallthru
    _
  // Predicated region
  $region26: #{conformer_forward.25} parent=0 // pred_check
    _
  $region27: #{conformer_forward.25} parent=0 // pred_check_branch
    %176 = sbr.rel (0) target = $region29
  $region28: #{conformer_forward.25} parent=0 // pred_region
    _
  $region29: #{conformer_forward.25} parent=0 // pred_fallthru
    _
  // Predicated region
  $region30: #{conformer_forward.25} parent=0 // pred_check
    _
  $region31: #{conformer_forward.25} parent=0 // pred_check_branch
    %178 = sbr.rel (0) target = $region33
  $region32: #{conformer_forward.25} parent=0 // pred_region
    _
  $region33: #{conformer_forward.25} parent=0 // pred_fallthru
    _

// kernel: conformer_forward.24
$region0: #{conformer_forward.24}
  #allocation0 [shape = 'u32[]', space=smem, size = 0x4, offset = 0x4, fixed_abs, tag = 'smem constant byte address 0x4 - core index']
  #allocation1 [shape = 'u32[144,128]{1,0:T(1,128)}', space=vmem, size = 0x12000, scoped, tag = 'internal scratch']
  #allocation2 [shape = 'f32[16,128]{1,0:T(8,128)}', space=vmem, size = 0x2000, scoped, tag = 'scratch operand']
  #allocation3 [shape = 'bf16[16,32]{1,0:T(16,128)(2,1)}', space=vmem, size = 0x1000, scoped, tag = 'scratch operand']
  %s0 = inlined_call_operand.vmem [shape: f32[1,32], index: 0, kind: input, shape index: {}]
  %s1 = inlined_call_operand.vmem [shape: f32[1,32], index: 1, kind: input, shape index: {}]
  %s2 = inlined_call_operand.vmem [shape: bf16[16,32], index: 2, kind: input, shape index: {}]
  %s3 = inlined_call_operand.vmem [shape: bf16[32,128], index: 3, kind: input, shape index: {}]
  %s4 = inlined_call_operand.vmem [shape: f32[1,128], index: 4, kind: input, shape index: {}]
  %s5 = inlined_call_operand.vmem [shape: bf16[16,128], index: 5, kind: output, shape index: {}]
  %s6 = sld [smem:[#allocation0]]
  $region42: #{conformer_forward.24} parent=0
    _
  %s8 = ssub.s32 1, %s6
  %s9 = scalar_select 0, %s8, %s6
  // Predicated region
  $region2: #{conformer_forward.24} parent=0 // pred_check
    _
  $region3: #{conformer_forward.24} parent=0 // pred_check_branch
    %11 = sbr.rel (0) target = $region5
  $region4: #{conformer_forward.24} parent=0 // pred_region
    _
  $region5: #{conformer_forward.24} parent=0 // pred_fallthru
    _
  // Predicated region
  $region6: #{conformer_forward.24} parent=0 // pred_check
    _
  $region7: #{conformer_forward.24} parent=0 // pred_check_branch
    %13 = sbr.rel (0) target = $region9
  $region8: #{conformer_forward.24} parent=0 // pred_region
    _
  $region9: #{conformer_forward.24} parent=0 // pred_fallthru
    _
  // Predicated region
  $region10: #{conformer_forward.24} parent=0 // pred_check
    _
  $region11: #{conformer_forward.24} parent=0 // pred_check_branch
    %15 = sbr.rel (0) target = $region13
  $region12: #{conformer_forward.24} parent=0 // pred_region
    _
  $region13: #{conformer_forward.24} parent=0 // pred_fallthru
    _
  // Predicated region
  $region14: #{conformer_forward.24} parent=0 // pred_check
    _
  $region15: #{conformer_forward.24} parent=0 // pred_check_branch
    %17 = sbr.rel (0) target = $region17
  $region16: #{conformer_forward.24} parent=0 // pred_region
    _
  $region17: #{conformer_forward.24} parent=0 // pred_fallthru
    _
  // Predicated region
  $region18: #{conformer_forward.24} parent=0 // pred_check
    _
  $region19: #{conformer_forward.24} parent=0 // pred_check_branch
    %19 = sbr.rel (0) target = $region21
  $region20: #{conformer_forward.24} parent=0 // pred_region
    _
  $region21: #{conformer_forward.24} parent=0 // pred_fallthru
    _
  %p21 = scmp.eq.s32.totalorder 0, 0
  // Predicated region
  $region22: #{conformer_forward.24} parent=0 // pred_check
    %p22 = pneg %p21
  $region23: #{conformer_forward.24} parent=0 // pred_check_branch
    %24 = sbr.rel (%p22) target = $region25
  $region24: #{conformer_forward.24} parent=0 // pred_region
    %25 = vst [vmem:[#allocation2] sm:$0xff] 0.0
    %26 = vst [vmem:[#allocation2 + $0x8] sm:$0xff] 0.0
  $region25: #{conformer_forward.24} parent=0 // pred_fallthru
    _
  %p27 = scmp.eq.s32.totalorder 0, 0
  // Predicated region
  $region26: #{conformer_forward.24} parent=0 // pred_check
    %p28 = pneg %p27
  $region27: #{conformer_forward.24} parent=0 // pred_check_branch
    %30 = sbr.rel (%p28) target = $region29
  $region28: #{conformer_forward.24} parent=0 // pred_region
    %v31 = vld [vmem:[%s2] sm:$0xf]
    %v32 = vld [vmem:[%s2 + $0x4] sm:$0xf]
    %v33 = vunpack.c.l.bf16 %v31
    %v34 = vunpack.c.l.bf16 %v32
    %vm35 = vcmask 261120
    %v36 = vsel %vm35, %v33, 0.0
    %37 = vadd.xlane.f32.xlu0 %v36
    %v38 = vpop.xlane.xlu0 %37
    %v39 = vsel %vm35, %v34, 0.0
    %40 = vadd.xlane.f32.xlu0 %v39
    %v41 = vpop.xlane.xlu0 %40
    %v42 = vrcp.pop 32.0
    %v43 = vmul.f32 %v38, %v42
    %v44 = vmul.f32 %v41, %v42
    %v45 = vsub.f32 %v33, %v43
    %v46 = vsub.f32 %v34, %v44
    %v47 = vmul.f32 %v45, %v45
    %v48 = vmul.f32 %v46, %v46
    %v49 = vsel %vm35, %v47, 0.0
    %50 = vadd.xlane.f32.xlu0 %v49
    %v51 = vpop.xlane.xlu0 %50
    %v52 = vsel %vm35, %v48, 0.0
    %53 = vadd.xlane.f32.xlu0 %v52
    %v54 = vpop.xlane.xlu0 %53
    %v55 = vmul.f32 %v51, %v42
    %v56 = vmul.f32 %v54, %v42
    %v57 = vadd.f32 %v55, 1e-05
    %v58 = vadd.f32 %v56, 1e-05
    %v59 = vrsqrt.pop %v57
    %v60 = vrsqrt.pop %v58
    %v61 = vmul.f32 %v45, %v59
    %v62 = vmul.f32 %v46, %v60
    %v63 = vld [vmem:[%s0] sm:$0x1]
    %v65 = vlaneseq
    %v66 = vshrl.u32 %v65, 7
    %v67 = vsub.s32 0, %v66
    %v68 = vrot.slane %v63, %v67
    %v70 = vmul.f32 %v61, %v68
    %v71 = vmul.f32 %v62, %v68
    %v72 = vld [vmem:[%s1] sm:$0x1]
    %v74 = vlaneseq
    %v75 = vshrl.u32 %v74, 7
    %v76 = vsub.s32 0, %v75
    %v77 = vrot.slane %v72, %v76
    %v79 = vadd.f32 %v70, %v77
    %v80 = vadd.f32 %v71, %v77
    %v81 = vpack.c.bf16 %v80, %v79
    %82 = vst.msk [vmem:[#allocation3] sm:$0xff] %vm35, %v81
  $region29: #{conformer_forward.24} parent=0 // pred_fallthru
    _
  %v83 = vld [vmem:[#allocation3] sm:$0xff]
  %v84 = vld [vmem:[#allocation2] sm:$0xff]
  %v85 = vld [vmem:[#allocation2 + $0x8] sm:$0xff]
  %v86 = vld [vmem:[%s3] sm:$0xf]
  %v87 = vld [vmem:[%s3 + $0x4] sm:$0xf]
  %v88 = vld [vmem:[%s3 + $0x8] sm:$0xf]
  %v89 = vld [vmem:[%s3 + $0xc] sm:$0xf]
  %v94 = vunpack.c.l.b16 %v86
  %v95 = vunpack.c.l.b16 %v87
  %v96 = vunpack.c.l.b16 %v88
  %v97 = vunpack.c.l.b16 %v89
  %v98 = vpack.c.b16 %v95, %v94
  %v99 = vpack.c.b16 %v97, %v96
  %vm102 = vcmask 261120
  %v104 = vsel %vm102, %v83, 0
  %106 = vmatprep.subr.bf16.mxu0 0
  %107 = vmatpush1.bf16.msra.mxu0 %v98
  %108 = vmatprep.subr.bf16.mxu0 0
  %109 = vmatpush1.bf16.msra.mxu0 %v99
  %110 = vmatprep.subr.bf16.mxu0 0
  %111 = vmatpush1.bf16.msra.mxu0 0
  %112 = vmatprep.subr.bf16.mxu0 0
  %113 = vmatpush1.bf16.msra.mxu0 0
  %114 = vmatprep.subr.bf16.mxu0 0
  %115 = vmatpush1.bf16.msra.mxu0 0
  %116 = vmatprep.subr.bf16.mxu0 0
  %117 = vmatpush1.bf16.msra.mxu0 0
  %118 = vmatprep.subr.bf16.mxu0 0
  %119 = vmatpush1.bf16.msra.mxu0 0
  %120 = vmatprep.subr.bf16.mxu0 0
  %121 = vmatpush1.bf16.msra.mxu0 0
  %122 = vmatprep.subr.bf16.mxu0 0
  %123 = vmatpush1.bf16.msra.mxu0 0
  %124 = vmatprep.subr.bf16.mxu0 0
  %125 = vmatpush1.bf16.msra.mxu0 0
  %126 = vmatprep.subr.bf16.mxu0 0
  %127 = vmatpush1.bf16.msra.mxu0 0
  %128 = vmatprep.subr.bf16.mxu0 0
  %129 = vmatpush1.bf16.msra.mxu0 0
  %130 = vmatprep.subr.bf16.mxu0 0
  %131 = vmatpush1.bf16.msra.mxu0 0
  %132 = vmatprep.subr.bf16.mxu0 0
  %133 = vmatpush1.bf16.msra.mxu0 0
  %134 = vmatprep.subr.bf16.mxu0 0
  %135 = vmatpush1.bf16.msra.mxu0 0
  %136 = vmatprep.subr.bf16.mxu0 0
  %137 = vmatpush1.bf16.msra.mxu0 0
  %138 = vmatprep.mubr.bf16.mxu0 0
  %139 = vmatmul.mubr.bf16.gmra.mrb[0].mxu0 %v104
  %v140 = vpop.f32.mrb[0].mxu0
  %v141 = vadd.f32 0.0, %v140
  %v142 = vpop.f32.mrb[0].mxu0
  %v143 = vpop.f32.mrb[0].mxu0
  %v144 = vadd.f32 0.0, %v143
  %v145 = vpop.f32.mrb[0].mxu0
  %146 = vdwg.mxu0
  %v147 = vadd.f32 %v84, %v141
  %v148 = vadd.f32 %v85, %v144
  %149 = vst [vmem:[#allocation2] sm:$0xff] %v147
  %150 = vst [vmem:[#allocation2 + $0x8] sm:$0xff] %v148
  // Predicated region
  $region30: #{conformer_forward.24} parent=0 // pred_check
    %p151 = pneg %p21
  $region31: #{conformer_forward.24} parent=0 // pred_check_branch
    %153 = sbr.rel (%p151) target = $region33
  $region32: #{conformer_forward.24} parent=0 // pred_region
    %v154 = vld [vmem:[#allocation2] sm:$0xff]
    %v155 = vld [vmem:[#allocation2 + $0x8] sm:$0xff]
    %v156 = vld [vmem:[%s4] sm:$0x1]
    %v158 = vlaneseq
    %v159 = vshrl.u32 %v158, 7
    %v160 = vsub.s32 0, %v159
    %v161 = vrot.slane %v156, %v160
    %v163 = vadd.f32 %v154, %v161
    %v164 = vadd.f32 %v155, %v161
    %v165 = vxor.u32 %v163, 2147483648
    %v166 = vxor.u32 %v164, 2147483648
    %v167 = vmul.f32 %v165, 1.442695
    %v168 = vpow.pop %v167
    %v169 = vmul.f32 %v166, 1.442695
    %v170 = vpow.pop %v169
    %v171 = vadd.f32 %v168, 1.0
    %v172 = vadd.f32 %v170, 1.0
    %v173 = vrcp.pop %v171
    %v174 = vmul.f32 1.0, %v173
    %v175 = vrcp.pop %v172
    %v176 = vmul.f32 1.0, %v175
    %v177 = vmul.f32 %v163, %v174
    %v178 = vmul.f32 %v164, %v176
    %v179 = vpack.c.bf16 %v178, %v177
    %v181 = vunpack.c.l.b16 %v179
    %v182 = vunpack.c.h.b16 %v179
    %v183 = vpack.c.b16 %v181, %v181
    %v184 = vpack.c.b16 %v182, %v182
    %187 = vst [vmem:[%s5] sm:$0xf] %v183
    %188 = vst [vmem:[%s5 + $0x4] sm:$0xf] %v184
  $region33: #{conformer_forward.24} parent=0 // pred_fallthru
    _
  // Predicated region
  $region34: #{conformer_forward.24} parent=0 // pred_check
    _
  $region35: #{conformer_forward.24} parent=0 // pred_check_branch
    %190 = sbr.rel (0) target = $region37
  $region36: #{conformer_forward.24} parent=0 // pred_region
    _
  $region37: #{conformer_forward.24} parent=0 // pred_fallthru
    _
  // Predicated region
  $region38: #{conformer_forward.24} parent=0 // pred_check
    _
  $region39: #{conformer_forward.24} parent=0 // pred_check_branch
    %192 = sbr.rel (0) target = $region41
  $region40: #{conformer_forward.24} parent=0 // pred_region
    _
  $region41: #{conformer_forward.24} parent=0 // pred_fallthru
    _

// kernel: conformer_forward.26
$region0: #{conformer_forward.26}
  #allocation0 [shape = 'u32[]', space=smem, size = 0x4, offset = 0x4, fixed_abs, tag = 'smem constant byte address 0x4 - core index']
  #allocation1 [shape = 'u32[144,128]{1,0:T(1,128)}', space=vmem, size = 0x12000, scoped, tag = 'internal scratch']
  #allocation2 [shape = 'f32[16,128]{1,0:T(8,128)}', space=vmem, size = 0x2000, scoped, tag = 'scratch operand']
  #allocation3 [shape = 'bf16[16,32]{1,0:T(16,128)(2,1)}', space=vmem, size = 0x1000, scoped, tag = 'scratch operand']
  %s0 = inlined_call_operand.vmem [shape: f32[1,32], index: 0, kind: input, shape index: {}]
  %s1 = inlined_call_operand.vmem [shape: f32[1,32], index: 1, kind: input, shape index: {}]
  %s2 = inlined_call_operand.vmem [shape: bf16[16,32], index: 2, kind: input, shape index: {}]
  %s3 = inlined_call_operand.vmem [shape: bf16[32,128], index: 3, kind: input, shape index: {}]
  %s4 = inlined_call_operand.vmem [shape: f32[1,128], index: 4, kind: input, shape index: {}]
  %s5 = inlined_call_operand.vmem [shape: bf16[16,128], index: 5, kind: output, shape index: {}]
  %s6 = sld [smem:[#allocation0]]
  $region42: #{conformer_forward.26} parent=0
    _
  %s8 = ssub.s32 1, %s6
  %s9 = scalar_select 0, %s8, %s6
  // Predicated region
  $region2: #{conformer_forward.26} parent=0 // pred_check
    _
  $region3: #{conformer_forward.26} parent=0 // pred_check_branch
    %11 = sbr.rel (0) target = $region5
  $region4: #{conformer_forward.26} parent=0 // pred_region
    _
  $region5: #{conformer_forward.26} parent=0 // pred_fallthru
    _
  // Predicated region
  $region6: #{conformer_forward.26} parent=0 // pred_check
    _
  $region7: #{conformer_forward.26} parent=0 // pred_check_branch
    %13 = sbr.rel (0) target = $region9
  $region8: #{conformer_forward.26} parent=0 // pred_region
    _
  $region9: #{conformer_forward.26} parent=0 // pred_fallthru
    _
  // Predicated region
  $region10: #{conformer_forward.26} parent=0 // pred_check
    _
  $region11: #{conformer_forward.26} parent=0 // pred_check_branch
    %15 = sbr.rel (0) target = $region13
  $region12: #{conformer_forward.26} parent=0 // pred_region
    _
  $region13: #{conformer_forward.26} parent=0 // pred_fallthru
    _
  // Predicated region
  $region14: #{conformer_forward.26} parent=0 // pred_check
    _
  $region15: #{conformer_forward.26} parent=0 // pred_check_branch
    %17 = sbr.rel (0) target = $region17
  $region16: #{conformer_forward.26} parent=0 // pred_region
    _
  $region17: #{conformer_forward.26} parent=0 // pred_fallthru
    _
  // Predicated region
  $region18: #{conformer_forward.26} parent=0 // pred_check
    _
  $region19: #{conformer_forward.26} parent=0 // pred_check_branch
    %19 = sbr.rel (0) target = $region21
  $region20: #{conformer_forward.26} parent=0 // pred_region
    _
  $region21: #{conformer_forward.26} parent=0 // pred_fallthru
    _
  %p21 = scmp.eq.s32.totalorder 0, 0
  // Predicated region
  $region22: #{conformer_forward.26} parent=0 // pred_check
    %p22 = pneg %p21
  $region23: #{conformer_forward.26} parent=0 // pred_check_branch
    %24 = sbr.rel (%p22) target = $region25
  $region24: #{conformer_forward.26} parent=0 // pred_region
    %25 = vst [vmem:[#allocation2] sm:$0xff] 0.0
    %26 = vst [vmem:[#allocation2 + $0x8] sm:$0xff] 0.0
  $region25: #{conformer_forward.26} parent=0 // pred_fallthru
    _
  %p27 = scmp.eq.s32.totalorder 0, 0
  // Predicated region
  $region26: #{conformer_forward.26} parent=0 // pred_check
    %p28 = pneg %p27
  $region27: #{conformer_forward.26} parent=0 // pred_check_branch
    %30 = sbr.rel (%p28) target = $region29
  $region28: #{conformer_forward.26} parent=0 // pred_region
    %v31 = vld [vmem:[%s2] sm:$0xf]
    %v32 = vld [vmem:[%s2 + $0x4] sm:$0xf]
    %v33 = vunpack.c.l.bf16 %v31
    %v34 = vunpack.c.l.bf16 %v32
    %vm35 = vcmask 261120
    %v36 = vsel %vm35, %v33, 0.0
    %37 = vadd.xlane.f32.xlu0 %v36
    %v38 = vpop.xlane.xlu0 %37
    %v39 = vsel %vm35, %v34, 0.0
    %40 = vadd.xlane.f32.xlu0 %v39
    %v41 = vpop.xlane.xlu0 %40
    %v42 = vrcp.pop 32.0
    %v43 = vmul.f32 %v38, %v42
    %v44 = vmul.f32 %v41, %v42
    %v45 = vsub.f32 %v33, %v43
    %v46 = vsub.f32 %v34, %v44
    %v47 = vmul.f32 %v45, %v45
    %v48 = vmul.f32 %v46, %v46
    %v49 = vsel %vm35, %v47, 0.0
    %50 = vadd.xlane.f32.xlu0 %v49
    %v51 = vpop.xlane.xlu0 %50
    %v52 = vsel %vm35, %v48, 0.0
    %53 = vadd.xlane.f32.xlu0 %v52
    %v54 = vpop.xlane.xlu0 %53
    %v55 = vmul.f32 %v51, %v42
    %v56 = vmul.f32 %v54, %v42
    %v57 = vadd.f32 %v55, 1e-05
    %v58 = vadd.f32 %v56, 1e-05
    %v59 = vrsqrt.pop %v57
    %v60 = vrsqrt.pop %v58
    %v61 = vmul.f32 %v45, %v59
    %v62 = vmul.f32 %v46, %v60
    %v63 = vld [vmem:[%s0] sm:$0x1]
    %v65 = vlaneseq
    %v66 = vshrl.u32 %v65, 7
    %v67 = vsub.s32 0, %v66
    %v68 = vrot.slane %v63, %v67
    %v70 = vmul.f32 %v61, %v68
    %v71 = vmul.f32 %v62, %v68
    %v72 = vld [vmem:[%s1] sm:$0x1]
    %v74 = vlaneseq
    %v75 = vshrl.u32 %v74, 7
    %v76 = vsub.s32 0, %v75
    %v77 = vrot.slane %v72, %v76
    %v79 = vadd.f32 %v70, %v77
    %v80 = vadd.f32 %v71, %v77
    %v81 = vpack.c.bf16 %v80, %v79
    %82 = vst.msk [vmem:[#allocation3] sm:$0xff] %vm35, %v81
  $region29: #{conformer_forward.26} parent=0 // pred_fallthru
    _
  %v83 = vld [vmem:[#allocation3] sm:$0xff]
  %v84 = vld [vmem:[#allocation2] sm:$0xff]
  %v85 = vld [vmem:[#allocation2 + $0x8] sm:$0xff]
  %v86 = vld [vmem:[%s3] sm:$0xf]
  %v87 = vld [vmem:[%s3 + $0x4] sm:$0xf]
  %v88 = vld [vmem:[%s3 + $0x8] sm:$0xf]
  %v89 = vld [vmem:[%s3 + $0xc] sm:$0xf]
  %v94 = vunpack.c.l.b16 %v86
  %v95 = vunpack.c.l.b16 %v87
  %v96 = vunpack.c.l.b16 %v88
  %v97 = vunpack.c.l.b16 %v89
  %v98 = vpack.c.b16 %v95, %v94
  %v99 = vpack.c.b16 %v97, %v96
  %vm102 = vcmask 261120
  %v104 = vsel %vm102, %v83, 0
  %106 = vmatprep.subr.bf16.mxu0 0
  %107 = vmatpush1.bf16.msra.mxu0 %v98
  %108 = vmatprep.subr.bf16.mxu0 0
  %109 = vmatpush1.bf16.msra.mxu0 %v99
  %110 = vmatprep.subr.bf16.mxu0 0
  %111 = vmatpush1.bf16.msra.mxu0 0
  %112 = vmatprep.subr.bf16.mxu0 0
  %113 = vmatpush1.bf16.msra.mxu0 0
  %114 = vmatprep.subr.bf16.mxu0 0
  %115 = vmatpush1.bf16.msra.mxu0 0
  %116 = vmatprep.subr.bf16.mxu0 0
  %117 = vmatpush1.bf16.msra.mxu0 0
  %118 = vmatprep.subr.bf16.mxu0 0
  %119 = vmatpush1.bf16.msra.mxu0 0
  %120 = vmatprep.subr.bf16.mxu0 0
  %121 = vmatpush1.bf16.msra.mxu0 0
  %122 = vmatprep.subr.bf16.mxu0 0
  %123 = vmatpush1.bf16.msra.mxu0 0
  %124 = vmatprep.subr.bf16.mxu0 0
  %125 = vmatpush1.bf16.msra.mxu0 0
  %126 = vmatprep.subr.bf16.mxu0 0
  %127 = vmatpush1.bf16.msra.mxu0 0
  %128 = vmatprep.subr.bf16.mxu0 0
  %129 = vmatpush1.bf16.msra.mxu0 0
  %130 = vmatprep.subr.bf16.mxu0 0
  %131 = vmatpush1.bf16.msra.mxu0 0
  %132 = vmatprep.subr.bf16.mxu0 0
  %133 = vmatpush1.bf16.msra.mxu0 0
  %134 = vmatprep.subr.bf16.mxu0 0
  %135 = vmatpush1.bf16.msra.mxu0 0
  %136 = vmatprep.subr.bf16.mxu0 0
  %137 = vmatpush1.bf16.msra.mxu0 0
  %138 = vmatprep.mubr.bf16.mxu0 0
  %139 = vmatmul.mubr.bf16.gmra.mrb[0].mxu0 %v104
  %v140 = vpop.f32.mrb[0].mxu0
  %v141 = vadd.f32 0.0, %v140
  %v142 = vpop.f32.mrb[0].mxu0
  %v143 = vpop.f32.mrb[0].mxu0
  %v144 = vadd.f32 0.0, %v143
  %v145 = vpop.f32.mrb[0].mxu0
  %146 = vdwg.mxu0
  %v147 = vadd.f32 %v84, %v141
  %v148 = vadd.f32 %v85, %v144
  %149 = vst [vmem:[#allocation2] sm:$0xff] %v147
  %150 = vst [vmem:[#allocation2 + $0x8] sm:$0xff] %v148
  // Predicated region
  $region30: #{conformer_forward.26} parent=0 // pred_check
    %p151 = pneg %p21
  $region31: #{conformer_forward.26} parent=0 // pred_check_branch
    %153 = sbr.rel (%p151) target = $region33
  $region32: #{conformer_forward.26} parent=0 // pred_region
    %v154 = vld [vmem:[#allocation2] sm:$0xff]
    %v155 = vld [vmem:[#allocation2 + $0x8] sm:$0xff]
    %v156 = vld [vmem:[%s4] sm:$0x1]
    %v158 = vlaneseq
    %v159 = vshrl.u32 %v158, 7
    %v160 = vsub.s32 0, %v159
    %v161 = vrot.slane %v156, %v160
    %v163 = vadd.f32 %v154, %v161
    %v164 = vadd.f32 %v155, %v161
    %v165 = vpack.c.bf16 %v164, %v163
    %v167 = vunpack.c.l.b16 %v165
    %v168 = vunpack.c.h.b16 %v165
    %v169 = vpack.c.b16 %v167, %v167
    %v170 = vpack.c.b16 %v168, %v168
    %173 = vst [vmem:[%s5] sm:$0xf] %v169
    %174 = vst [vmem:[%s5 + $0x4] sm:$0xf] %v170
  $region33: #{conformer_forward.26} parent=0 // pred_fallthru
    _
  // Predicated region
  $region34: #{conformer_forward.26} parent=0 // pred_check
    _
  $region35: #{conformer_forward.26} parent=0 // pred_check_branch
    %176 = sbr.rel (0) target = $region37
  $region36: #{conformer_forward.26} parent=0 // pred_region
    _
  $region37: #{conformer_forward.26} parent=0 // pred_fallthru
    _
  // Predicated region
  $region38: #{conformer_forward.26} parent=0 // pred_check
    _
  $region39: #{conformer_forward.26} parent=0 // pred_check_branch
    %178 = sbr.rel (0) target = $region41
  $region40: #{conformer_forward.26} parent=0 // pred_region
    _
  $region41: #{conformer_forward.26} parent=0 // pred_fallthru
    _

// kernel: conformer_forward.28
$region0: #{conformer_forward.28}
  #allocation0 [shape = 'u32[]', space=smem, size = 0x4, offset = 0x4, fixed_abs, tag = 'smem constant byte address 0x4 - core index']
  #allocation1 [shape = 'u32[144,128]{1,0:T(1,128)}', space=vmem, size = 0x12000, scoped, tag = 'internal scratch']
  #allocation2 [shape = 'f32[16,128]{1,0:T(8,128)}', space=vmem, size = 0x2000, scoped, tag = 'scratch operand']
  %s0 = inlined_call_operand.vmem [shape: bf16[16,32], index: 0, kind: input, shape index: {}]
  %s1 = inlined_call_operand.vmem [shape: bf16[32,128], index: 1, kind: input, shape index: {}]
  %s2 = inlined_call_operand.vmem [shape: f32[1,128], index: 2, kind: input, shape index: {}]
  %s3 = inlined_call_operand.vmem [shape: bf16[16,128], index: 3, kind: input, shape index: {}]
  %s4 = inlined_call_operand.vmem [shape: bf16[16,128], index: 4, kind: output, shape index: {}]
  %s5 = sld [smem:[#allocation0]]
  $region34: #{conformer_forward.28} parent=0
    _
  %s7 = ssub.s32 1, %s5
  %s8 = scalar_select 0, %s7, %s5
  // Predicated region
  $region2: #{conformer_forward.28} parent=0 // pred_check
    _
  $region3: #{conformer_forward.28} parent=0 // pred_check_branch
    %10 = sbr.rel (0) target = $region5
  $region4: #{conformer_forward.28} parent=0 // pred_region
    _
  $region5: #{conformer_forward.28} parent=0 // pred_fallthru
    _
  // Predicated region
  $region6: #{conformer_forward.28} parent=0 // pred_check
    _
  $region7: #{conformer_forward.28} parent=0 // pred_check_branch
    %12 = sbr.rel (0) target = $region9
  $region8: #{conformer_forward.28} parent=0 // pred_region
    _
  $region9: #{conformer_forward.28} parent=0 // pred_fallthru
    _
  // Predicated region
  $region10: #{conformer_forward.28} parent=0 // pred_check
    _
  $region11: #{conformer_forward.28} parent=0 // pred_check_branch
    %14 = sbr.rel (0) target = $region13
  $region12: #{conformer_forward.28} parent=0 // pred_region
    _
  $region13: #{conformer_forward.28} parent=0 // pred_fallthru
    _
  // Predicated region
  $region14: #{conformer_forward.28} parent=0 // pred_check
    _
  $region15: #{conformer_forward.28} parent=0 // pred_check_branch
    %16 = sbr.rel (0) target = $region17
  $region16: #{conformer_forward.28} parent=0 // pred_region
    _
  $region17: #{conformer_forward.28} parent=0 // pred_fallthru
    _
  %p18 = scmp.eq.s32.totalorder 0, 0
  // Predicated region
  $region18: #{conformer_forward.28} parent=0 // pred_check
    %p19 = pneg %p18
  $region19: #{conformer_forward.28} parent=0 // pred_check_branch
    %21 = sbr.rel (%p19) target = $region21
  $region20: #{conformer_forward.28} parent=0 // pred_region
    %22 = vst [vmem:[#allocation2] sm:$0xff] 0.0
    %23 = vst [vmem:[#allocation2 + $0x8] sm:$0xff] 0.0
  $region21: #{conformer_forward.28} parent=0 // pred_fallthru
    _
  %v24 = vld [vmem:[%s0] sm:$0xf]
  %v25 = vld [vmem:[%s0 + $0x4] sm:$0xf]
  %v26 = vld [vmem:[#allocation2] sm:$0xff]
  %v27 = vld [vmem:[#allocation2 + $0x8] sm:$0xff]
  %v28 = vld [vmem:[%s1] sm:$0xf]
  %v29 = vld [vmem:[%s1 + $0x4] sm:$0xf]
  %v30 = vld [vmem:[%s1 + $0x8] sm:$0xf]
  %v31 = vld [vmem:[%s1 + $0xc] sm:$0xf]
  %v34 = vunpack.c.l.b16 %v24
  %v35 = vunpack.c.l.b16 %v25
  %v36 = vpack.c.b16 %v35, %v34
  %v41 = vunpack.c.l.b16 %v28
  %v42 = vunpack.c.l.b16 %v29
  %v43 = vunpack.c.l.b16 %v30
  %v44 = vunpack.c.l.b16 %v31
  %v45 = vpack.c.b16 %v42, %v41
  %v46 = vpack.c.b16 %v44, %v43
  %vm49 = vcmask 261120
  %v51 = vsel %vm49, %v36, 0
  %53 = vmatprep.subr.bf16.mxu0 0
  %54 = vmatpush1.bf16.msra.mxu0 %v45
  %55 = vmatprep.subr.bf16.mxu0 0
  %56 = vmatpush1.bf16.msra.mxu0 %v46
  %57 = vmatprep.subr.bf16.mxu0 0
  %58 = vmatpush1.bf16.msra.mxu0 0
  %59 = vmatprep.subr.bf16.mxu0 0
  %60 = vmatpush1.bf16.msra.mxu0 0
  %61 = vmatprep.subr.bf16.mxu0 0
  %62 = vmatpush1.bf16.msra.mxu0 0
  %63 = vmatprep.subr.bf16.mxu0 0
  %64 = vmatpush1.bf16.msra.mxu0 0
  %65 = vmatprep.subr.bf16.mxu0 0
  %66 = vmatpush1.bf16.msra.mxu0 0
  %67 = vmatprep.subr.bf16.mxu0 0
  %68 = vmatpush1.bf16.msra.mxu0 0
  %69 = vmatprep.subr.bf16.mxu0 0
  %70 = vmatpush1.bf16.msra.mxu0 0
  %71 = vmatprep.subr.bf16.mxu0 0
  %72 = vmatpush1.bf16.msra.mxu0 0
  %73 = vmatprep.subr.bf16.mxu0 0
  %74 = vmatpush1.bf16.msra.mxu0 0
  %75 = vmatprep.subr.bf16.mxu0 0
  %76 = vmatpush1.bf16.msra.mxu0 0
  %77 = vmatprep.subr.bf16.mxu0 0
  %78 = vmatpush1.bf16.msra.mxu0 0
  %79 = vmatprep.subr.bf16.mxu0 0
  %80 = vmatpush1.bf16.msra.mxu0 0
  %81 = vmatprep.subr.bf16.mxu0 0
  %82 = vmatpush1.bf16.msra.mxu0 0
  %83 = vmatprep.subr.bf16.mxu0 0
  %84 = vmatpush1.bf16.msra.mxu0 0
  %85 = vmatprep.mubr.bf16.mxu0 0
  %86 = vmatmul.mubr.bf16.gmra.mrb[0].mxu0 %v51
  %v87 = vpop.f32.mrb[0].mxu0
  %v88 = vadd.f32 0.0, %v87
  %v89 = vpop.f32.mrb[0].mxu0
  %v90 = vpop.f32.mrb[0].mxu0
  %v91 = vadd.f32 0.0, %v90
  %v92 = vpop.f32.mrb[0].mxu0
  %93 = vdwg.mxu0
  %v94 = vadd.f32 %v26, %v88
  %v95 = vadd.f32 %v27, %v91
  %96 = vst [vmem:[#allocation2] sm:$0xff] %v94
  %97 = vst [vmem:[#allocation2 + $0x8] sm:$0xff] %v95
  // Predicated region
  $region22: #{conformer_forward.28} parent=0 // pred_check
    %p98 = pneg %p18
  $region23: #{conformer_forward.28} parent=0 // pred_check_branch
    %100 = sbr.rel (%p98) target = $region25
  $region24: #{conformer_forward.28} parent=0 // pred_region
    %v101 = vld [vmem:[#allocation2] sm:$0xff]
    %v102 = vld [vmem:[#allocation2 + $0x8] sm:$0xff]
    %v103 = vld [vmem:[%s2] sm:$0x1]
    %v105 = vlaneseq
    %v106 = vshrl.u32 %v105, 7
    %v107 = vsub.s32 0, %v106
    %v108 = vrot.slane %v103, %v107
    %v110 = vadd.f32 %v101, %v108
    %v111 = vadd.f32 %v102, %v108
    %v112 = vld [vmem:[%s3] sm:$0xf]
    %v113 = vld [vmem:[%s3 + $0x4] sm:$0xf]
    %v114 = vunpack.c.l.bf16 %v112
    %v115 = vunpack.c.l.bf16 %v113
    %v116 = vadd.f32 %v114, %v110
    %v117 = vadd.f32 %v115, %v111
    %v118 = vpack.c.bf16 %v117, %v116
    %v120 = vunpack.c.l.b16 %v118
    %v121 = vunpack.c.h.b16 %v118
    %v122 = vpack.c.b16 %v120, %v120
    %v123 = vpack.c.b16 %v121, %v121
    %126 = vst [vmem:[%s4] sm:$0xf] %v122
    %127 = vst [vmem:[%s4 + $0x4] sm:$0xf] %v123
  $region25: #{conformer_forward.28} parent=0 // pred_fallthru
    _
  // Predicated region
  $region26: #{conformer_forward.28} parent=0 // pred_check
    _
  $region27: #{conformer_forward.28} parent=0 // pred_check_branch
    %129 = sbr.rel (0) target = $region29
  $region28: #{conformer_forward.28} parent=0 // pred_region
    _
  $region29: #{conformer_forward.28} parent=0 // pred_fallthru
    _
  // Predicated region
  $region30: #{conformer_forward.28} parent=0 // pred_check
    _
  $region31: #{conformer_forward.28} parent=0 // pred_check_branch
    %131 = sbr.rel (0) target = $region33
  $region32: #{conformer_forward.28} parent=0 // pred_region
    _
  $region33: #{conformer_forward.28} parent=0 // pred_fallthru
    _

// kernel: conformer_forward.27
$region0: #{conformer_forward.27}
  #allocation0 [shape = 'u32[]', space=smem, size = 0x4, offset = 0x4, fixed_abs, tag = 'smem constant byte address 0x4 - core index']
  #allocation1 [shape = 'u32[144,128]{1,0:T(1,128)}', space=vmem, size = 0x12000, scoped, tag = 'internal scratch']
  %s0 = inlined_call_operand.vmem [shape: bf16[2,8,96], index: 0, kind: input, shape index: {}]
  %s1 = inlined_call_operand.vmem [shape: bf16[2,8,32], index: 1, kind: output, shape index: {}]
  %s2 = sld [smem:[#allocation0]]
  $region37: #{conformer_forward.27} parent=0
    _
  %s4 = ssub.s32 1, %s2
  %s5 = scalar_select 0, %s4, %s2
  loop: start=0, step=1, limit=4
  $region2: #{conformer_forward.27} parent=0 // loop_pre_header
    _
  $region3: #{conformer_forward.27} parent=0 // loop_header
    %s7 = sphi 0, %s11
    %p8 = scmp.ge.s32.totalorder %s7, 4
    %s17 = sphi 0, %s19
    %s20 = sphi 0, %s17
    %s21 = sphi 0, %s20
    %s37 = sphi 0, %s21
    %s43 = sphi 0, %s45
    %s46 = sphi 0, %s43
    %s47 = sphi 0, %s46
    %s63 = sphi 0, %s47
  $region4: #{conformer_forward.27} parent=0 // loop_header_branch
    %10 = sbr.rel (%p8) target = $region8
  $region5: #{conformer_forward.27} parent=0 // loop_body
    %s12 = ssub.s32 %s7, 1
    %s13 = ssub.s32 %s7, 2
    %s14 = sadd.s32 %s7, 1
    %s15 = ssub.s32 %s7, %s14
    %p16 = scmp.eq.s32.totalorder %s15, 0
    %s18 = sadd.s32 %s17, 1
    %s19 = scalar_select %p16, %s17, %s18
    %p22 = pneg %p16
    %p23 = scmp.eq.s32.totalorder %s7, 1
    %p24 = por %p22, %p23
    %p25 = scmp.ne.s32.totalorder %s17, %s20
    %p26 = scmp.eq.s32.totalorder %s7, 0
    %p27 = por %p25, %p26
    %p28 = scmp.ne.s32.totalorder %s17, %s20
    %p29 = scmp.eq.s32.totalorder %s12, 1
    %p30 = por %p28, %p29
    %p31 = scmp.ne.s32.totalorder %s20, %s21
    %p32 = scmp.eq.s32.totalorder %s12, 0
    %p33 = por %p31, %p32
    %p34 = scmp.ne.s32.totalorder %s20, %s21
    %p35 = scmp.eq.s32.totalorder %s13, 1
    %p36 = por %p34, %p35
    %p38 = scmp.ne.s32.totalorder %s21, %s37
    %p39 = scmp.eq.s32.totalorder %s13, 0
    %p40 = por %p38, %p39
    %s41 = ssub.s32 %s7, %s14
    %p42 = scmp.eq.s32.totalorder %s41, 0
    %s44 = sadd.s32 %s43, 1
    %s45 = scalar_select %p42, %s43, %s44
    %p48 = pneg %p42
    %p49 = scmp.eq.s32.totalorder %s7, 1
    %p50 = por %p48, %p49
    %p51 = scmp.ne.s32.totalorder %s43, %s46
    %p52 = scmp.eq.s32.totalorder %s7, 0
    %p53 = por %p51, %p52
    %p54 = scmp.ne.s32.totalorder %s43, %s46
    %p55 = scmp.eq.s32.totalorder %s12, 1
    %p56 = por %p54, %p55
    %p57 = scmp.ne.s32.totalorder %s46, %s47
    %p58 = scmp.eq.s32.totalorder %s12, 0
    %p59 = por %p57, %p58
    %p60 = scmp.ne.s32.totalorder %s46, %s47
    %p61 = scmp.eq.s32.totalorder %s13, 1
    %p62 = por %p60, %p61
    %p64 = scmp.ne.s32.totalorder %s47, %s63
    %p65 = scmp.eq.s32.totalorder %s13, 0
    %p66 = por %p64, %p65
    %p67 = scmp.le.s32.totalorder 1, %s7
    %p68 = scmp.lt.s32.totalorder %s7, 3
    %p69 = pnand %p67, %p68
    %p70 = pneg %p69
    // Predicated region
    $region9: #{conformer_forward.27} parent=5 // pred_check
      _
    $region10: #{conformer_forward.27} parent=5 // pred_check_branch
      %72 = sbr.rel (%p69) target = $region12
    $region11: #{conformer_forward.27} parent=5 // pred_region
      %s73 = ssub.s32 %s7, 1
    $region12: #{conformer_forward.27} parent=5 // pred_fallthru
      _
    %p74 = scmp.lt.s32.totalorder %s7, 2
    // Predicated region
    $region13: #{conformer_forward.27} parent=5 // pred_check
      %p75 = pneg %p74
    $region14: #{conformer_forward.27} parent=5 // pred_check_branch
      %77 = sbr.rel (%p75) target = $region16
    $region15: #{conformer_forward.27} parent=5 // pred_region
      // Predicated region
      $region17: #{conformer_forward.27} parent=15 // pred_check
        %p78 = pneg %p27
      $region18: #{conformer_forward.27} parent=15 // pred_check_branch
        %80 = sbr.rel (%p78) target = $region20
      $region19: #{conformer_forward.27} parent=15 // pred_region
        %p81 = scmp.lt.s32.totalorder %s7, 1
        %s82 = scalar_select %p81, %s7, 1
        %s83 = smul.addr %s82, 4
        %s84 = scalar_lea.vmem %s0, %s83
      $region20: #{conformer_forward.27} parent=15 // pred_fallthru
        _
    $region16: #{conformer_forward.27} parent=5 // pred_fallthru
      _
    %p85 = scmp.le.s32.totalorder 1, %s7
    %p86 = scmp.lt.s32.totalorder %s7, 3
    %p87 = pnand %p85, %p86
    %p88 = pneg %p87
    // Predicated region
    $region21: #{conformer_forward.27} parent=5 // pred_check
      _
    $region22: #{conformer_forward.27} parent=5 // pred_check_branch
      %90 = sbr.rel (%p87) target = $region24
    $region23: #{conformer_forward.27} parent=5 // pred_region
      %s91 = ssub.s32 %s7, 1
      %p92 = scmp.lt.s32.totalorder %s12, 1
      %s93 = scalar_select %p92, %s12, 1
      %s94 = smul.addr %s93, 4
      %s95 = scalar_lea.vmem %s0, %s94
      %p96 = pneg %p33
      %p97 = pneg %p30
      %p98 = pneg %p59
      %p99 = pneg %p56
      %p100 = scmp.lt.s32.totalorder %s12, 1
      %s101 = scalar_select %p100, %s12, 1
      %s102 = smul.addr %s101, 4
      %s103 = scalar_lea.vmem %s1, %s102
      %p104 = scmp.lt.s32.totalorder %s12, 1
      %s105 = scalar_select %p104, %s12, 1
      %s106 = smul.addr %s105, 4
      %s107 = scalar_lea.vmem %s0, %s106
      %p108 = scmp.lt.s32.totalorder %s12, 1
      %s109 = scalar_select %p108, %s12, 1
      %s110 = smul.addr %s109, 4
      %s111 = scalar_lea.vmem %s1, %s110
      %v114 = vld [vmem:[%s107] sm:$0xf]
      %v115 = vmul.bf16 %v114, 1052065461
      %v117 = vunpack.c.l.b16 %v114
      %v118 = vpack.c.b16 %v117, %v117
      %119 = vrot.lane.b32.xlu0 %v118, 96
      %v120 = vpop.permute.xlu0 %119
      %vm121 = vcmask 64512
      %v123 = vsel %vm121, %v115, 0
      %v126 = vsel %vm121, %v120, 0
      %128 = vmatprep.subr.bf16.mxu0 0
      %129 = vmatpush1.bf16.xpose.msra.mxu0 %v126
      %130 = vmatprep.subr.bf16.mxu0 0
      %131 = vmatpush1.bf16.xpose.msra.mxu0 0
      %132 = vmatprep.subr.bf16.mxu0 0
      %133 = vmatpush1.bf16.xpose.msra.mxu0 0
      %134 = vmatprep.subr.bf16.mxu0 0
      %135 = vmatpush1.bf16.xpose.msra.mxu0 0
      %136 = vmatprep.subr.bf16.mxu0 0
      %137 = vmatpush1.bf16.xpose.msra.mxu0 0
      %138 = vmatprep.subr.bf16.mxu0 0
      %139 = vmatpush1.bf16.xpose.msra.mxu0 0
      %140 = vmatprep.subr.bf16.mxu0 0
      %141 = vmatpush1.bf16.xpose.msra.mxu0 0
      %142 = vmatprep.subr.bf16.mxu0 0
      %143 = vmatpush1.bf16.xpose.msra.mxu0 0
      %144 = vmatprep.subr.bf16.mxu0 0
      %145 = vmatpush1.bf16.xpose.msra.mxu0 0
      %146 = vmatprep.subr.bf16.mxu0 0
      %147 = vmatpush1.bf16.xpose.msra.mxu0 0
      %148 = vmatprep.subr.bf16.mxu0 0
      %149 = vmatpush1.bf16.xpose.msra.mxu0 0
      %150 = vmatprep.subr.bf16.mxu0 0
      %151 = vmatpush1.bf16.xpose.msra.mxu0 0
      %152 = vmatprep.subr.bf16.mxu0 0
      %153 = vmatpush1.bf16.xpose.msra.mxu0 0
      %154 = vmatprep.subr.bf16.mxu0 0
      %155 = vmatpush1.bf16.xpose.msra.mxu0 0
      %156 = vmatprep.subr.bf16.mxu0 0
      %157 = vmatpush1.bf16.xpose.msra.mxu0 0
      %158 = vmatprep.subr.bf16.mxu0 0
      %159 = vmatpush1.bf16.xpose.msra.mxu0 0
      %160 = vmatprep.mubr.bf16.mxu0 0
      %161 = vmatmul.mubr.bf16.gmra.mrb[0].mxu0 %v123
      %v162 = vpop.f32.mrb[0].mxu0
      %v163 = vadd.f32 0.0, %v162
      %v164 = vpop.f32.mrb[0].mxu0
      %v165 = vpop.f32.mrb[0].mxu0
      %v166 = vpop.f32.mrb[0].mxu0
      %167 = vdwg.mxu0
      %v168 = vsel %vm121, %v163, -inf
      %169 = vmax.xlane.f32.xlu0 %v168
      %v170 = vpop.xlane.xlu0 %169
      %v171 = vsub.f32 %v163, %v170
      %v172 = vmul.f32 %v171, 1.442695
      %v173 = vpow.pop %v172
      %v174 = vsel %vm121, %v173, 0.0
      %175 = vadd.xlane.f32.xlu0 %v174
      %v176 = vpop.xlane.xlu0 %175
      %v177 = vpack.c.bf16 %v173, %v173
      %178 = vrot.lane.b32.xlu0 %v118, 64
      %v179 = vpop.permute.xlu0 %178
      %v181 = vsel %vm121, %v177, 0
      %vm183 = vcmask 1043456
      %v185 = vsel %vm183, %v179, 0
      %187 = vmatprep.subr.bf16.mxu0 0
      %188 = vmatpush1.bf16.msra.mxu0 %v185
      %189 = vmatprep.subr.bf16.mxu0 0
      %190 = vmatpush1.bf16.msra.mxu0 0
      %191 = vmatprep.subr.bf16.mxu0 0
      %192 = vmatpush1.bf16.msra.mxu0 0
      %193 = vmatprep.subr.bf16.mxu0 0
      %194 = vmatpush1.bf16.msra.mxu0 0
      %195 = vmatprep.subr.bf16.mxu0 0
      %196 = vmatpush1.bf16.msra.mxu0 0
      %197 = vmatprep.subr.bf16.mxu0 0
      %198 = vmatpush1.bf16.msra.mxu0 0
      %199 = vmatprep.subr.bf16.mxu0 0
      %200 = vmatpush1.bf16.msra.mxu0 0
      %201 = vmatprep.subr.bf16.mxu0 0
      %202 = vmatpush1.bf16.msra.mxu0 0
      %203 = vmatprep.subr.bf16.mxu0 0
      %204 = vmatpush1.bf16.msra.mxu0 0
      %205 = vmatprep.subr.bf16.mxu0 0
      %206 = vmatpush1.bf16.msra.mxu0 0
      %207 = vmatprep.subr.bf16.mxu0 0
      %208 = vmatpush1.bf16.msra.mxu0 0
      %209 = vmatprep.subr.bf16.mxu0 0
      %210 = vmatpush1.bf16.msra.mxu0 0
      %211 = vmatprep.subr.bf16.mxu0 0
      %212 = vmatpush1.bf16.msra.mxu0 0
      %213 = vmatprep.subr.bf16.mxu0 0
      %214 = vmatpush1.bf16.msra.mxu0 0
      %215 = vmatprep.subr.bf16.mxu0 0
      %216 = vmatpush1.bf16.msra.mxu0 0
      %217 = vmatprep.subr.bf16.mxu0 0
      %218 = vmatpush1.bf16.msra.mxu0 0
      %219 = vmatprep.mubr.bf16.mxu0 0
      %220 = vmatmul.mubr.bf16.gmra.mrb[0].mxu0 %v181
      %v221 = vpop.f32.mrb[0].mxu0
      %v222 = vadd.f32 0.0, %v221
      %v223 = vpop.f32.mrb[0].mxu0
      %v224 = vpop.f32.mrb[0].mxu0
      %v225 = vpop.f32.mrb[0].mxu0
      %226 = vdwg.mxu0
      %v227 = vrcp.pop %v176
      %v228 = vmul.f32 %v222, %v227
      %v229 = vpack.c.bf16 %v228, %v228
      %vm230 = vcmask 60416
      %231 = vst.msk [vmem:[%s111] sm:$0xf] %vm230, %v229
      %v233 = vunpack.c.l.b16 %v115
      %v234 = vpack.c.b16 %v233, %v233
      %235 = vrot.lane.b32.xlu0 %v234, 120
      %v236 = vpop.permute.xlu0 %235
      %237 = vrot.lane.b32.xlu0 %v118, 88
      %v238 = vpop.permute.xlu0 %237
      %v240 = vsel %vm121, %v236, 0
      %v243 = vsel %vm121, %v238, 0
      %245 = vmatprep.subr.bf16.mxu0 0
      %246 = vmatpush1.bf16.xpose.msra.mxu0 %v243
      %247 = vmatprep.subr.bf16.mxu0 0
      %248 = vmatpush1.bf16.xpose.msra.mxu0 0
      %249 = vmatprep.subr.bf16.mxu0 0
      %250 = vmatpush1.bf16.xpose.msra.mxu0 0
      %251 = vmatprep.subr.bf16.mxu0 0
      %252 = vmatpush1.bf16.xpose.msra.mxu0 0
      %253 = vmatprep.subr.bf16.mxu0 0
      %254 = vmatpush1.bf16.xpose.msra.mxu0 0
      %255 = vmatprep.subr.bf16.mxu0 0
      %256 = vmatpush1.bf16.xpose.msra.mxu0 0
      %257 = vmatprep.subr.bf16.mxu0 0
      %258 = vmatpush1.bf16.xpose.msra.mxu0 0
      %259 = vmatprep.subr.bf16.mxu0 0
      %260 = vmatpush1.bf16.xpose.msra.mxu0 0
      %261 = vmatprep.subr.bf16.mxu0 0
      %262 = vmatpush1.bf16.xpose.msra.mxu0 0
      %263 = vmatprep.subr.bf16.mxu0 0
      %264 = vmatpush1.bf16.xpose.msra.mxu0 0
      %265 = vmatprep.subr.bf16.mxu0 0
      %266 = vmatpush1.bf16.xpose.msra.mxu0 0
      %267 = vmatprep.subr.bf16.mxu0 0
      %268 = vmatpush1.bf16.xpose.msra.mxu0 0
      %269 = vmatprep.subr.bf16.mxu0 0
      %270 = vmatpush1.bf16.xpose.msra.mxu0 0
      %271 = vmatprep.subr.bf16.mxu0 0
      %272 = vmatpush1.bf16.xpose.msra.mxu0 0
      %273 = vmatprep.subr.bf16.mxu0 0
      %274 = vmatpush1.bf16.xpose.msra.mxu0 0
      %275 = vmatprep.subr.bf16.mxu0 0
      %276 = vmatpush1.bf16.xpose.msra.mxu0 0
      %277 = vmatprep.mubr.bf16.mxu0 0
      %278 = vmatmul.mubr.bf16.gmra.mrb[0].mxu0 %v240
      %v279 = vpop.f32.mrb[0].mxu0
      %v280 = vadd.f32 0.0, %v279
      %v281 = vpop.f32.mrb[0].mxu0
      %v282 = vpop.f32.mrb[0].mxu0
      %v283 = vpop.f32.mrb[0].mxu0
      %284 = vdwg.mxu0
      %v285 = vsel %vm121, %v280, -inf
      %286 = vmax.xlane.f32.xlu0 %v285
      %v287 = vpop.xlane.xlu0 %286
      %v288 = vsub.f32 %v280, %v287
      %v289 = vmul.f32 %v288, 1.442695
      %v290 = vpow.pop %v289
      %v291 = vsel %vm121, %v290, 0.0
      %292 = vadd.xlane.f32.xlu0 %v291
      %v293 = vpop.xlane.xlu0 %292
      %v294 = vpack.c.bf16 %v290, %v290
      %295 = vrot.lane.b32.xlu0 %v118, 56
      %v296 = vpop.permute.xlu0 %295
      %v298 = vsel %vm121, %v294, 0
      %v301 = vsel %vm183, %v296, 0
      %303 = vmatprep.subr.bf16.mxu0 0
      %304 = vmatpush1.bf16.msra.mxu0 %v301
      %305 = vmatprep.subr.bf16.mxu0 0
      %306 = vmatpush1.bf16.msra.mxu0 0
      %307 = vmatprep.subr.bf16.mxu0 0
      %308 = vmatpush1.bf16.msra.mxu0 0
      %309 = vmatprep.subr.bf16.mxu0 0
      %310 = vmatpush1.bf16.msra.mxu0 0
      %311 = vmatprep.subr.bf16.mxu0 0
      %312 = vmatpush1.bf16.msra.mxu0 0
      %313 = vmatprep.subr.bf16.mxu0 0
      %314 = vmatpush1.bf16.msra.mxu0 0
      %315 = vmatprep.subr.bf16.mxu0 0
      %316 = vmatpush1.bf16.msra.mxu0 0
      %317 = vmatprep.subr.bf16.mxu0 0
      %318 = vmatpush1.bf16.msra.mxu0 0
      %319 = vmatprep.subr.bf16.mxu0 0
      %320 = vmatpush1.bf16.msra.mxu0 0
      %321 = vmatprep.subr.bf16.mxu0 0
      %322 = vmatpush1.bf16.msra.mxu0 0
      %323 = vmatprep.subr.bf16.mxu0 0
      %324 = vmatpush1.bf16.msra.mxu0 0
      %325 = vmatprep.subr.bf16.mxu0 0
      %326 = vmatpush1.bf16.msra.mxu0 0
      %327 = vmatprep.subr.bf16.mxu0 0
      %328 = vmatpush1.bf16.msra.mxu0 0
      %329 = vmatprep.subr.bf16.mxu0 0
      %330 = vmatpush1.bf16.msra.mxu0 0
      %331 = vmatprep.subr.bf16.mxu0 0
      %332 = vmatpush1.bf16.msra.mxu0 0
      %333 = vmatprep.subr.bf16.mxu0 0
      %334 = vmatpush1.bf16.msra.mxu0 0
      %335 = vmatprep.mubr.bf16.mxu0 0
      %336 = vmatmul.mubr.bf16.gmra.mrb[0].mxu0 %v298
      %v337 = vpop.f32.mrb[0].mxu0
      %v338 = vadd.f32 0.0, %v337
      %v339 = vpop.f32.mrb[0].mxu0
      %v340 = vpop.f32.mrb[0].mxu0
      %v341 = vpop.f32.mrb[0].mxu0
      %342 = vdwg.mxu0
      %v343 = vrcp.pop %v293
      %v344 = vmul.f32 %v338, %v343
      %v345 = vpack.c.bf16 %v344, %v344
      %v347 = vunpack.c.l.b16 %v345
      %v348 = vpack.c.b16 %v347, %v347
      %349 = vrot.lane.b32.xlu0 %v348, 8
      %v350 = vpop.permute.xlu0 %349
      %vm352 = vcmask 126016
      %353 = vst.msk [vmem:[%s111] sm:$0xf] %vm352, %v350
      %354 = vrot.lane.b32.xlu0 %v234, 112
      %v355 = vpop.permute.xlu0 %354
      %356 = vrot.lane.b32.xlu0 %v118, 80
      %v357 = vpop.permute.xlu0 %356
      %v359 = vsel %vm121, %v355, 0
      %v362 = vsel %vm121, %v357, 0
      %364 = vmatprep.subr.bf16.mxu0 0
      %365 = vmatpush1.bf16.xpose.msra.mxu0 %v362
      %366 = vmatprep.subr.bf16.mxu0 0
      %367 = vmatpush1.bf16.xpose.msra.mxu0 0
      %368 = vmatprep.subr.bf16.mxu0 0
      %369 = vmatpush1.bf16.xpose.msra.mxu0 0
      %370 = vmatprep.subr.bf16.mxu0 0
      %371 = vmatpush1.bf16.xpose.msra.mxu0 0
      %372 = vmatprep.subr.bf16.mxu0 0
      %373 = vmatpush1.bf16.xpose.msra.mxu0 0
      %374 = vmatprep.subr.bf16.mxu0 0
      %375 = vmatpush1.bf16.xpose.msra.mxu0 0
      %376 = vmatprep.subr.bf16.mxu0 0
      %377 = vmatpush1.bf16.xpose.msra.mxu0 0
      %378 = vmatprep.subr.bf16.mxu0 0
      %379 = vmatpush1.bf16.xpose.msra.mxu0 0
      %380 = vmatprep.subr.bf16.mxu0 0
      %381 = vmatpush1.bf16.xpose.msra.mxu0 0
      %382 = vmatprep.subr.bf16.mxu0 0
      %383 = vmatpush1.bf16.xpose.msra.mxu0 0
      %384 = vmatprep.subr.bf16.mxu0 0
      %385 = vmatpush1.bf16.xpose.msra.mxu0 0
      %386 = vmatprep.subr.bf16.mxu0 0
      %387 = vmatpush1.bf16.xpose.msra.mxu0 0
      %388 = vmatprep.subr.bf16.mxu0 0
      %389 = vmatpush1.bf16.xpose.msra.mxu0 0
      %390 = vmatprep.subr.bf16.mxu0 0
      %391 = vmatpush1.bf16.xpose.msra.mxu0 0
      %392 = vmatprep.subr.bf16.mxu0 0
      %393 = vmatpush1.bf16.xpose.msra.mxu0 0
      %394 = vmatprep.subr.bf16.mxu0 0
      %395 = vmatpush1.bf16.xpose.msra.mxu0 0
      %396 = vmatprep.mubr.bf16.mxu0 0
      %397 = vmatmul.mubr.bf16.gmra.mrb[0].mxu0 %v359
      %v398 = vpop.f32.mrb[0].mxu0
      %v399 = vadd.f32 0.0, %v398
      %v400 = vpop.f32.mrb[0].mxu0
      %v401 = vpop.f32.mrb[0].mxu0
      %v402 = vpop.f32.mrb[0].mxu0
      %403 = vdwg.mxu0
      %v404 = vsel %vm121, %v399, -inf
      %405 = vmax.xlane.f32.xlu0 %v404
      %v406 = vpop.xlane.xlu0 %405
      %v407 = vsub.f32 %v399, %v406
      %v408 = vmul.f32 %v407, 1.442695
      %v409 = vpow.pop %v408
      %v410 = vsel %vm121, %v409, 0.0
      %411 = vadd.xlane.f32.xlu0 %v410
      %v412 = vpop.xlane.xlu0 %411
      %v413 = vpack.c.bf16 %v409, %v409
      %414 = vrot.lane.b32.xlu0 %v118, 48
      %v415 = vpop.permute.xlu0 %414
      %v417 = vsel %vm121, %v413, 0
      %v420 = vsel %vm183, %v415, 0
      %422 = vmatprep.subr.bf16.mxu0 0
      %423 = vmatpush1.bf16.msra.mxu0 %v420
      %424 = vmatprep.subr.bf16.mxu0 0
      %425 = vmatpush1.bf16.msra.mxu0 0
      %426 = vmatprep.subr.bf16.mxu0 0
      %427 = vmatpush1.bf16.msra.mxu0 0
      %428 = vmatprep.subr.bf16.mxu0 0
      %429 = vmatpush1.bf16.msra.mxu0 0
      %430 = vmatprep.subr.bf16.mxu0 0
      %431 = vmatpush1.bf16.msra.mxu0 0
      %432 = vmatprep.subr.bf16.mxu0 0
      %433 = vmatpush1.bf16.msra.mxu0 0
      %434 = vmatprep.subr.bf16.mxu0 0
      %435 = vmatpush1.bf16.msra.mxu0 0
      %436 = vmatprep.subr.bf16.mxu0 0
      %437 = vmatpush1.bf16.msra.mxu0 0
      %438 = vmatprep.subr.bf16.mxu0 0
      %439 = vmatpush1.bf16.msra.mxu0 0
      %440 = vmatprep.subr.bf16.mxu0 0
      %441 = vmatpush1.bf16.msra.mxu0 0
      %442 = vmatprep.subr.bf16.mxu0 0
      %443 = vmatpush1.bf16.msra.mxu0 0
      %444 = vmatprep.subr.bf16.mxu0 0
      %445 = vmatpush1.bf16.msra.mxu0 0
      %446 = vmatprep.subr.bf16.mxu0 0
      %447 = vmatpush1.bf16.msra.mxu0 0
      %448 = vmatprep.subr.bf16.mxu0 0
      %449 = vmatpush1.bf16.msra.mxu0 0
      %450 = vmatprep.subr.bf16.mxu0 0
      %451 = vmatpush1.bf16.msra.mxu0 0
      %452 = vmatprep.subr.bf16.mxu0 0
      %453 = vmatpush1.bf16.msra.mxu0 0
      %454 = vmatprep.mubr.bf16.mxu0 0
      %455 = vmatmul.mubr.bf16.gmra.mrb[0].mxu0 %v417
      %v456 = vpop.f32.mrb[0].mxu0
      %v457 = vadd.f32 0.0, %v456
      %v458 = vpop.f32.mrb[0].mxu0
      %v459 = vpop.f32.mrb[0].mxu0
      %v460 = vpop.f32.mrb[0].mxu0
      %461 = vdwg.mxu0
      %v462 = vrcp.pop %v412
      %v463 = vmul.f32 %v457, %v462
      %v464 = vpack.c.bf16 %v463, %v463
      %v466 = vunpack.c.l.b16 %v464
      %v467 = vpack.c.b16 %v466, %v466
      %468 = vrot.lane.b32.xlu0 %v467, 16
      %v469 = vpop.permute.xlu0 %468
      %vm471 = vcmask 191616
      %472 = vst.msk [vmem:[%s111] sm:$0xf] %vm471, %v469
      %473 = vrot.lane.b32.xlu0 %v234, 104
      %v474 = vpop.permute.xlu0 %473
      %475 = vrot.lane.b32.xlu0 %v118, 72
      %v476 = vpop.permute.xlu0 %475
      %v478 = vsel %vm121, %v474, 0
      %v481 = vsel %vm121, %v476, 0
      %483 = vmatprep.subr.bf16.mxu0 0
      %484 = vmatpush1.bf16.xpose.msra.mxu0 %v481
      %485 = vmatprep.subr.bf16.mxu0 0
      %486 = vmatpush1.bf16.xpose.msra.mxu0 0
      %487 = vmatprep.subr.bf16.mxu0 0
      %488 = vmatpush1.bf16.xpose.msra.mxu0 0
      %489 = vmatprep.subr.bf16.mxu0 0
      %490 = vmatpush1.bf16.xpose.msra.mxu0 0
      %491 = vmatprep.subr.bf16.mxu0 0
      %492 = vmatpush1.bf16.xpose.msra.mxu0 0
      %493 = vmatprep.subr.bf16.mxu0 0
      %494 = vmatpush1.bf16.xpose.msra.mxu0 0
      %495 = vmatprep.subr.bf16.mxu0 0
      %496 = vmatpush1.bf16.xpose.msra.mxu0 0
      %497 = vmatprep.subr.bf16.mxu0 0
      %498 = vmatpush1.bf16.xpose.msra.mxu0 0
      %499 = vmatprep.subr.bf16.mxu0 0
      %500 = vmatpush1.bf16.xpose.msra.mxu0 0
      %501 = vmatprep.subr.bf16.mxu0 0
      %502 = vmatpush1.bf16.xpose.msra.mxu0 0
      %503 = vmatprep.subr.bf16.mxu0 0
      %504 = vmatpush1.bf16.xpose.msra.mxu0 0
      %505 = vmatprep.subr.bf16.mxu0 0
      %506 = vmatpush1.bf16.xpose.msra.mxu0 0
      %507 = vmatprep.subr.bf16.mxu0 0
      %508 = vmatpush1.bf16.xpose.msra.mxu0 0
      %509 = vmatprep.subr.bf16.mxu0 0
      %510 = vmatpush1.bf16.xpose.msra.mxu0 0
      %511 = vmatprep.subr.bf16.mxu0 0
      %512 = vmatpush1.bf16.xpose.msra.mxu0 0
      %513 = vmatprep.subr.bf16.mxu0 0
      %514 = vmatpush1.bf16.xpose.msra.mxu0 0
      %515 = vmatprep.mubr.bf16.mxu0 0
      %516 = vmatmul.mubr.bf16.gmra.mrb[0].mxu0 %v478
      %v517 = vpop.f32.mrb[0].mxu0
      %v518 = vadd.f32 0.0, %v517
      %v519 = vpop.f32.mrb[0].mxu0
      %v520 = vpop.f32.mrb[0].mxu0
      %v521 = vpop.f32.mrb[0].mxu0
      %522 = vdwg.mxu0
      %v523 = vsel %vm121, %v518, -inf
      %524 = vmax.xlane.f32.xlu0 %v523
      %v525 = vpop.xlane.xlu0 %524
      %v526 = vsub.f32 %v518, %v525
      %v527 = vmul.f32 %v526, 1.442695
      %v528 = vpow.pop %v527
      %v529 = vsel %vm121, %v528, 0.0
      %530 = vadd.xlane.f32.xlu0 %v529
      %v531 = vpop.xlane.xlu0 %530
      %v532 = vpack.c.bf16 %v528, %v528
      %533 = vrot.lane.b32.xlu0 %v118, 40
      %v534 = vpop.permute.xlu0 %533
      %v536 = vsel %vm121, %v532, 0
      %v539 = vsel %vm183, %v534, 0
      %541 = vmatprep.subr.bf16.mxu0 0
      %542 = vmatpush1.bf16.msra.mxu0 %v539
      %543 = vmatprep.subr.bf16.mxu0 0
      %544 = vmatpush1.bf16.msra.mxu0 0
      %545 = vmatprep.subr.bf16.mxu0 0
      %546 = vmatpush1.bf16.msra.mxu0 0
      %547 = vmatprep.subr.bf16.mxu0 0
      %548 = vmatpush1.bf16.msra.mxu0 0
      %549 = vmatprep.subr.bf16.mxu0 0
      %550 = vmatpush1.bf16.msra.mxu0 0
      %551 = vmatprep.subr.bf16.mxu0 0
      %552 = vmatpush1.bf16.msra.mxu0 0
      %553 = vmatprep.subr.bf16.mxu0 0
      %554 = vmatpush1.bf16.msra.mxu0 0
      %555 = vmatprep.subr.bf16.mxu0 0
      %556 = vmatpush1.bf16.msra.mxu0 0
      %557 = vmatprep.subr.bf16.mxu0 0
      %558 = vmatpush1.bf16.msra.mxu0 0
      %559 = vmatprep.subr.bf16.mxu0 0
      %560 = vmatpush1.bf16.msra.mxu0 0
      %561 = vmatprep.subr.bf16.mxu0 0
      %562 = vmatpush1.bf16.msra.mxu0 0
      %563 = vmatprep.subr.bf16.mxu0 0
      %564 = vmatpush1.bf16.msra.mxu0 0
      %565 = vmatprep.subr.bf16.mxu0 0
      %566 = vmatpush1.bf16.msra.mxu0 0
      %567 = vmatprep.subr.bf16.mxu0 0
      %568 = vmatpush1.bf16.msra.mxu0 0
      %569 = vmatprep.subr.bf16.mxu0 0
      %570 = vmatpush1.bf16.msra.mxu0 0
      %571 = vmatprep.subr.bf16.mxu0 0
      %572 = vmatpush1.bf16.msra.mxu0 0
      %573 = vmatprep.mubr.bf16.mxu0 0
      %574 = vmatmul.mubr.bf16.gmra.mrb[0].mxu0 %v536
      %v575 = vpop.f32.mrb[0].mxu0
      %v576 = vadd.f32 0.0, %v575
      %v577 = vpop.f32.mrb[0].mxu0
      %v578 = vpop.f32.mrb[0].mxu0
      %v579 = vpop.f32.mrb[0].mxu0
      %580 = vdwg.mxu0
      %v581 = vrcp.pop %v531
      %v582 = vmul.f32 %v576, %v581
      %v583 = vpack.c.bf16 %v582, %v582
      %v585 = vunpack.c.l.b16 %v583
      %v586 = vpack.c.b16 %v585, %v585
      %587 = vrot.lane.b32.xlu0 %v586, 24
      %v588 = vpop.permute.xlu0 %587
      %vm590 = vcmask 257216
      %591 = vst.msk [vmem:[%s111] sm:$0xf] %vm590, %v588
      %p592 = scmp.lt.s32.totalorder %s12, 1
      %s593 = scalar_select %p592, %s12, 1
      %s594 = smul.addr %s593, 4
      %s595 = scalar_lea.vmem %s1, %s594
      // Predicated region
      $region25: #{conformer_forward.27} parent=23 // pred_check
        %p596 = pneg %p56
      $region26: #{conformer_forward.27} parent=23 // pred_check_branch
        %598 = sbr.rel (%p596) target = $region28
      $region27: #{conformer_forward.27} parent=23 // pred_region
        _
      $region28: #{conformer_forward.27} parent=23 // pred_fallthru
        _
    $region24: #{conformer_forward.27} parent=5 // pred_fallthru
      _
    %p599 = scmp.le.s32.totalorder 2, %s7
    // Predicated region
    $region29: #{conformer_forward.27} parent=5 // pred_check
      %p600 = pneg %p599
    $region30: #{conformer_forward.27} parent=5 // pred_check_branch
      %602 = sbr.rel (%p600) target = $region32
    $region31: #{conformer_forward.27} parent=5 // pred_region
      %s603 = ssub.s32 %s7, 2
      // Predicated region
      $region33: #{conformer_forward.27} parent=31 // pred_check
        %p604 = pneg %p62
      $region34: #{conformer_forward.27} parent=31 // pred_check_branch
        %606 = sbr.rel (%p604) target = $region36
      $region35: #{conformer_forward.27} parent=31 // pred_region
        %p607 = scmp.lt.s32.totalorder %s13, 1
        %s608 = scalar_select %p607, %s13, 1
        %s609 = smul.addr %s608, 4
        %s610 = scalar_lea.vmem %s1, %s609
      $region36: #{conformer_forward.27} parent=31 // pred_fallthru
        _
    $region32: #{conformer_forward.27} parent=5 // pred_fallthru
      _
  $region6: #{conformer_forward.27} parent=0 // loop_footer
    %s11 = sadd.s32 1, %s7
  $region7: #{conformer_forward.27} parent=0 // loop_footer_branch
    %6 = sbr.rel target = $region3
  $region8: #{conformer_forward.27} parent=0 // loop_exit
    _

// kernel: conformer_forward.29
$region0: #{conformer_forward.29}
  #allocation0 [shape = 'u32[]', space=smem, size = 0x4, offset = 0x4, fixed_abs, tag = 'smem constant byte address 0x4 - core index']
  #allocation1 [shape = 'u32[144,128]{1,0:T(1,128)}', space=vmem, size = 0x12000, scoped, tag = 'internal scratch']
  #allocation2 [shape = 'f32[16,128]{1,0:T(8,128)}', space=vmem, size = 0x2000, scoped, tag = 'scratch operand']
  #allocation3 [shape = 'f32[16,128]{1,0:T(8,128)}', space=vmem, size = 0x2000, scoped, tag = 'scratch operand']
  #allocation4 [shape = 'bf16[16,32]{1,0:T(16,128)(2,1)}', space=vmem, size = 0x1000, scoped, tag = 'scratch operand']
  %s0 = inlined_call_operand.vmem [shape: f32[1,32], index: 0, kind: input, shape index: {}]
  %s1 = inlined_call_operand.vmem [shape: f32[1,32], index: 1, kind: input, shape index: {}]
  %s2 = inlined_call_operand.vmem [shape: bf16[16,32], index: 2, kind: input, shape index: {}]
  %s3 = inlined_call_operand.vmem [shape: bf16[32,128], index: 3, kind: input, shape index: {}]
  %s4 = inlined_call_operand.vmem [shape: f32[1,128], index: 4, kind: input, shape index: {}]
  %s5 = inlined_call_operand.vmem [shape: bf16[32,128], index: 5, kind: input, shape index: {}]
  %s6 = inlined_call_operand.vmem [shape: f32[1,128], index: 6, kind: input, shape index: {}]
  %s7 = inlined_call_operand.vmem [shape: bf16[16,128], index: 7, kind: output, shape index: {}]
  %s8 = sld [smem:[#allocation0]]
  $region50: #{conformer_forward.29} parent=0
    _
  %s10 = ssub.s32 1, %s8
  %s11 = scalar_select 0, %s10, %s8
  // Predicated region
  $region2: #{conformer_forward.29} parent=0 // pred_check
    _
  $region3: #{conformer_forward.29} parent=0 // pred_check_branch
    %13 = sbr.rel (0) target = $region5
  $region4: #{conformer_forward.29} parent=0 // pred_region
    _
  $region5: #{conformer_forward.29} parent=0 // pred_fallthru
    _
  // Predicated region
  $region6: #{conformer_forward.29} parent=0 // pred_check
    _
  $region7: #{conformer_forward.29} parent=0 // pred_check_branch
    %15 = sbr.rel (0) target = $region9
  $region8: #{conformer_forward.29} parent=0 // pred_region
    _
  $region9: #{conformer_forward.29} parent=0 // pred_fallthru
    _
  // Predicated region
  $region10: #{conformer_forward.29} parent=0 // pred_check
    _
  $region11: #{conformer_forward.29} parent=0 // pred_check_branch
    %17 = sbr.rel (0) target = $region13
  $region12: #{conformer_forward.29} parent=0 // pred_region
    _
  $region13: #{conformer_forward.29} parent=0 // pred_fallthru
    _
  // Predicated region
  $region14: #{conformer_forward.29} parent=0 // pred_check
    _
  $region15: #{conformer_forward.29} parent=0 // pred_check_branch
    %19 = sbr.rel (0) target = $region17
  $region16: #{conformer_forward.29} parent=0 // pred_region
    _
  $region17: #{conformer_forward.29} parent=0 // pred_fallthru
    _
  // Predicated region
  $region18: #{conformer_forward.29} parent=0 // pred_check
    _
  $region19: #{conformer_forward.29} parent=0 // pred_check_branch
    %21 = sbr.rel (0) target = $region21
  $region20: #{conformer_forward.29} parent=0 // pred_region
    _
  $region21: #{conformer_forward.29} parent=0 // pred_fallthru
    _
  // Predicated region
  $region22: #{conformer_forward.29} parent=0 // pred_check
    _
  $region23: #{conformer_forward.29} parent=0 // pred_check_branch
    %23 = sbr.rel (0) target = $region25
  $region24: #{conformer_forward.29} parent=0 // pred_region
    _
  $region25: #{conformer_forward.29} parent=0 // pred_fallthru
    _
  // Predicated region
  $region26: #{conformer_forward.29} parent=0 // pred_check
    _
  $region27: #{conformer_forward.29} parent=0 // pred_check_branch
    %25 = sbr.rel (0) target = $region29
  $region28: #{conformer_forward.29} parent=0 // pred_region
    _
  $region29: #{conformer_forward.29} parent=0 // pred_fallthru
    _
  %p27 = scmp.eq.s32.totalorder 0, 0
  // Predicated region
  $region30: #{conformer_forward.29} parent=0 // pred_check
    %p28 = pneg %p27
  $region31: #{conformer_forward.29} parent=0 // pred_check_branch
    %30 = sbr.rel (%p28) target = $region33
  $region32: #{conformer_forward.29} parent=0 // pred_region
    %31 = vst [vmem:[#allocation2] sm:$0xff] 0.0
    %32 = vst [vmem:[#allocation2 + $0x8] sm:$0xff] 0.0
    %33 = vst [vmem:[#allocation3] sm:$0xff] 0.0
    %34 = vst [vmem:[#allocation3 + $0x8] sm:$0xff] 0.0
  $region33: #{conformer_forward.29} parent=0 // pred_fallthru
    _
  %p35 = scmp.eq.s32.totalorder 0, 0
  // Predicated region
  $region34: #{conformer_forward.29} parent=0 // pred_check
    %p36 = pneg %p35
  $region35: #{conformer_forward.29} parent=0 // pred_check_branch
    %38 = sbr.rel (%p36) target = $region37
  $region36: #{conformer_forward.29} parent=0 // pred_region
    %v39 = vld [vmem:[%s2] sm:$0xf]
    %v40 = vld [vmem:[%s2 + $0x4] sm:$0xf]
    %v41 = vunpack.c.l.bf16 %v39
    %v42 = vunpack.c.l.bf16 %v40
    %vm43 = vcmask 261120
    %v44 = vsel %vm43, %v41, 0.0
    %45 = vadd.xlane.f32.xlu0 %v44
    %v46 = vpop.xlane.xlu0 %45
    %v47 = vsel %vm43, %v42, 0.0
    %48 = vadd.xlane.f32.xlu0 %v47
    %v49 = vpop.xlane.xlu0 %48
    %v50 = vrcp.pop 32.0
    %v51 = vmul.f32 %v46, %v50
    %v52 = vmul.f32 %v49, %v50
    %v53 = vsub.f32 %v41, %v51
    %v54 = vsub.f32 %v42, %v52
    %v55 = vmul.f32 %v53, %v53
    %v56 = vmul.f32 %v54, %v54
    %v57 = vsel %vm43, %v55, 0.0
    %58 = vadd.xlane.f32.xlu0 %v57
    %v59 = vpop.xlane.xlu0 %58
    %v60 = vsel %vm43, %v56, 0.0
    %61 = vadd.xlane.f32.xlu0 %v60
    %v62 = vpop.xlane.xlu0 %61
    %v63 = vmul.f32 %v59, %v50
    %v64 = vmul.f32 %v62, %v50
    %v65 = vadd.f32 %v63, 1e-05
    %v66 = vadd.f32 %v64, 1e-05
    %v67 = vrsqrt.pop %v65
    %v68 = vrsqrt.pop %v66
    %v69 = vmul.f32 %v53, %v67
    %v70 = vmul.f32 %v54, %v68
    %v71 = vld [vmem:[%s0] sm:$0x1]
    %v73 = vlaneseq
    %v74 = vshrl.u32 %v73, 7
    %v75 = vsub.s32 0, %v74
    %v76 = vrot.slane %v71, %v75
    %v78 = vmul.f32 %v69, %v76
    %v79 = vmul.f32 %v70, %v76
    %v80 = vld [vmem:[%s1] sm:$0x1]
    %v82 = vlaneseq
    %v83 = vshrl.u32 %v82, 7
    %v84 = vsub.s32 0, %v83
    %v85 = vrot.slane %v80, %v84
    %v87 = vadd.f32 %v78, %v85
    %v88 = vadd.f32 %v79, %v85
    %v89 = vpack.c.bf16 %v88, %v87
    %90 = vst.msk [vmem:[#allocation4] sm:$0xff] %vm43, %v89
  $region37: #{conformer_forward.29} parent=0 // pred_fallthru
    _
  %v91 = vld [vmem:[#allocation4] sm:$0xff]
  %v92 = vld [vmem:[#allocation2] sm:$0xff]
  %v93 = vld [vmem:[#allocation2 + $0x8] sm:$0xff]
  %v94 = vld [vmem:[%s3] sm:$0xf]
  %v95 = vld [vmem:[%s3 + $0x4] sm:$0xf]
  %v96 = vld [vmem:[%s3 + $0x8] sm:$0xf]
  %v97 = vld [vmem:[%s3 + $0xc] sm:$0xf]
  %v102 = vunpack.c.l.b16 %v94
  %v103 = vunpack.c.l.b16 %v95
  %v104 = vunpack.c.l.b16 %v96
  %v105 = vunpack.c.l.b16 %v97
  %v106 = vpack.c.b16 %v103, %v102
  %v107 = vpack.c.b16 %v105, %v104
  %vm110 = vcmask 261120
  %v112 = vsel %vm110, %v91, 0
  %114 = vmatprep.subr.bf16.mxu0 0
  %115 = vmatpush1.bf16.msra.mxu0 %v106
  %116 = vmatprep.subr.bf16.mxu0 0
  %117 = vmatpush1.bf16.msra.mxu0 %v107
  %118 = vmatprep.subr.bf16.mxu0 0
  %119 = vmatpush1.bf16.msra.mxu0 0
  %120 = vmatprep.subr.bf16.mxu0 0
  %121 = vmatpush1.bf16.msra.mxu0 0
  %122 = vmatprep.subr.bf16.mxu0 0
  %123 = vmatpush1.bf16.msra.mxu0 0
  %124 = vmatprep.subr.bf16.mxu0 0
  %125 = vmatpush1.bf16.msra.mxu0 0
  %126 = vmatprep.subr.bf16.mxu0 0
  %127 = vmatpush1.bf16.msra.mxu0 0
  %128 = vmatprep.subr.bf16.mxu0 0
  %129 = vmatpush1.bf16.msra.mxu0 0
  %130 = vmatprep.subr.bf16.mxu0 0
  %131 = vmatpush1.bf16.msra.mxu0 0
  %132 = vmatprep.subr.bf16.mxu0 0
  %133 = vmatpush1.bf16.msra.mxu0 0
  %134 = vmatprep.subr.bf16.mxu0 0
  %135 = vmatpush1.bf16.msra.mxu0 0
  %136 = vmatprep.subr.bf16.mxu0 0
  %137 = vmatpush1.bf16.msra.mxu0 0
  %138 = vmatprep.subr.bf16.mxu0 0
  %139 = vmatpush1.bf16.msra.mxu0 0
  %140 = vmatprep.subr.bf16.mxu0 0
  %141 = vmatpush1.bf16.msra.mxu0 0
  %142 = vmatprep.subr.bf16.mxu0 0
  %143 = vmatpush1.bf16.msra.mxu0 0
  %144 = vmatprep.subr.bf16.mxu0 0
  %145 = vmatpush1.bf16.msra.mxu0 0
  %146 = vmatprep.mubr.bf16.mxu0 0
  %147 = vmatmul.mubr.bf16.gmra.mrb[0].mxu0 %v112
  %v148 = vpop.f32.mrb[0].mxu0
  %v149 = vadd.f32 0.0, %v148
  %v150 = vpop.f32.mrb[0].mxu0
  %v151 = vpop.f32.mrb[0].mxu0
  %v152 = vadd.f32 0.0, %v151
  %v153 = vpop.f32.mrb[0].mxu0
  %154 = vdwg.mxu0
  %v155 = vadd.f32 %v92, %v149
  %v156 = vadd.f32 %v93, %v152
  %157 = vst [vmem:[#allocation2] sm:$0xff] %v155
  %158 = vst [vmem:[#allocation2 + $0x8] sm:$0xff] %v156
  %v159 = vld [vmem:[#allocation3] sm:$0xff]
  %v160 = vld [vmem:[#allocation3 + $0x8] sm:$0xff]
  %v161 = vld [vmem:[%s5] sm:$0xf]
  %v162 = vld [vmem:[%s5 + $0x4] sm:$0xf]
  %v163 = vld [vmem:[%s5 + $0x8] sm:$0xf]
  %v164 = vld [vmem:[%s5 + $0xc] sm:$0xf]
  %v169 = vunpack.c.l.b16 %v161
  %v170 = vunpack.c.l.b16 %v162
  %v171 = vunpack.c.l.b16 %v163
  %v172 = vunpack.c.l.b16 %v164
  %v173 = vpack.c.b16 %v170, %v169
  %v174 = vpack.c.b16 %v172, %v171
  %177 = vmatprep.subr.bf16.mxu0 0
  %178 = vmatpush1.bf16.msra.mxu0 %v173
  %179 = vmatprep.subr.bf16.mxu0 0
  %180 = vmatpush1.bf16.msra.mxu0 %v174
  %181 = vmatprep.subr.bf16.mxu0 0
  %182 = vmatpush1.bf16.msra.mxu0 0
  %183 = vmatprep.subr.bf16.mxu0 0
  %184 = vmatpush1.bf16.msra.mxu0 0
  %185 = vmatprep.subr.bf16.mxu0 0
  %186 = vmatpush1.bf16.msra.mxu0 0
  %187 = vmatprep.subr.bf16.mxu0 0
  %188 = vmatpush1.bf16.msra.mxu0 0
  %189 = vmatprep.subr.bf16.mxu0 0
  %190 = vmatpush1.bf16.msra.mxu0 0
  %191 = vmatprep.subr.bf16.mxu0 0
  %192 = vmatpush1.bf16.msra.mxu0 0
  %193 = vmatprep.subr.bf16.mxu0 0
  %194 = vmatpush1.bf16.msra.mxu0 0
  %195 = vmatprep.subr.bf16.mxu0 0
  %196 = vmatpush1.bf16.msra.mxu0 0
  %197 = vmatprep.subr.bf16.mxu0 0
  %198 = vmatpush1.bf16.msra.mxu0 0
  %199 = vmatprep.subr.bf16.mxu0 0
  %200 = vmatpush1.bf16.msra.mxu0 0
  %201 = vmatprep.subr.bf16.mxu0 0
  %202 = vmatpush1.bf16.msra.mxu0 0
  %203 = vmatprep.subr.bf16.mxu0 0
  %204 = vmatpush1.bf16.msra.mxu0 0
  %205 = vmatprep.subr.bf16.mxu0 0
  %206 = vmatpush1.bf16.msra.mxu0 0
  %207 = vmatprep.subr.bf16.mxu0 0
  %208 = vmatpush1.bf16.msra.mxu0 0
  %209 = vmatprep.mubr.bf16.mxu0 0
  %210 = vmatmul.mubr.bf16.gmra.mrb[0].mxu0 %v112
  %v211 = vpop.f32.mrb[0].mxu0
  %v212 = vadd.f32 0.0, %v211
  %v213 = vpop.f32.mrb[0].mxu0
  %v214 = vpop.f32.mrb[0].mxu0
  %v215 = vadd.f32 0.0, %v214
  %v216 = vpop.f32.mrb[0].mxu0
  %217 = vdwg.mxu0
  %v218 = vadd.f32 %v159, %v212
  %v219 = vadd.f32 %v160, %v215
  %220 = vst [vmem:[#allocation3] sm:$0xff] %v218
  %221 = vst [vmem:[#allocation3 + $0x8] sm:$0xff] %v219
  // Predicated region
  $region38: #{conformer_forward.29} parent=0 // pred_check
    %p222 = pneg %p27
  $region39: #{conformer_forward.29} parent=0 // pred_check_branch
    %224 = sbr.rel (%p222) target = $region41
  $region40: #{conformer_forward.29} parent=0 // pred_region
    %v225 = vld [vmem:[#allocation2] sm:$0xff]
    %v226 = vld [vmem:[#allocation2 + $0x8] sm:$0xff]
    %v227 = vld [vmem:[%s4] sm:$0x1]
    %v229 = vlaneseq
    %v230 = vshrl.u32 %v229, 7
    %v231 = vsub.s32 0, %v230
    %v232 = vrot.slane %v227, %v231
    %v234 = vadd.f32 %v225, %v232
    %v235 = vadd.f32 %v226, %v232
    %v236 = vld [vmem:[#allocation3] sm:$0xff]
    %v237 = vld [vmem:[#allocation3 + $0x8] sm:$0xff]
    %v238 = vld [vmem:[%s6] sm:$0x1]
    %v240 = vlaneseq
    %v241 = vshrl.u32 %v240, 7
    %v242 = vsub.s32 0, %v241
    %v243 = vrot.slane %v238, %v242
    %v245 = vadd.f32 %v236, %v243
    %v246 = vadd.f32 %v237, %v243
    %v247 = vxor.u32 %v245, 2147483648
    %v248 = vxor.u32 %v246, 2147483648
    %v249 = vmul.f32 %v247, 1.442695
    %v250 = vpow.pop %v249
    %v251 = vmul.f32 %v248, 1.442695
    %v252 = vpow.pop %v251
    %v253 = vadd.f32 %v250, 1.0
    %v254 = vadd.f32 %v252, 1.0
    %v255 = vrcp.pop %v253
    %v256 = vmul.f32 1.0, %v255
    %v257 = vrcp.pop %v254
    %v258 = vmul.f32 1.0, %v257
    %v259 = vmul.f32 %v234, %v256
    %v260 = vmul.f32 %v235, %v258
    %v261 = vpack.c.bf16 %v260, %v259
    %v263 = vunpack.c.l.b16 %v261
    %v264 = vunpack.c.h.b16 %v261
    %v265 = vpack.c.b16 %v263, %v263
    %v266 = vpack.c.b16 %v264, %v264
    %269 = vst [vmem:[%s7] sm:$0xf] %v265
    %270 = vst [vmem:[%s7 + $0x4] sm:$0xf] %v266
  $region41: #{conformer_forward.29} parent=0 // pred_fallthru
    _
  // Predicated region
  $region42: #{conformer_forward.29} parent=0 // pred_check
    _
  $region43: #{conformer_forward.29} parent=0 // pred_check_branch
    %272 = sbr.rel (0) target = $region45
  $region44: #{conformer_forward.29} parent=0 // pred_region
    _
  $region45: #{conformer_forward.29} parent=0 // pred_fallthru
    _
  // Predicated region
  $region46: #{conformer_forward.29} parent=0 // pred_check
    _
  $region47: #{conformer_forward.29} parent=0 // pred_check_branch
    %274 = sbr.rel (0) target = $region49
  $region48: #{conformer_forward.29} parent=0 // pred_region
    _
  $region49: #{conformer_forward.29} parent=0 // pred_fallthru
    _

// kernel: conformer_forward.30
$region0: #{conformer_forward.30}
  #allocation0 [shape = 'u32[]', space=smem, size = 0x4, offset = 0x4, fixed_abs, tag = 'smem constant byte address 0x4 - core index']
  #allocation1 [shape = 'u32[144,128]{1,0:T(1,128)}', space=vmem, size = 0x12000, scoped, tag = 'internal scratch']
  %s0 = inlined_call_operand.vmem [shape: bf16[2,8,32], index: 0, kind: input, shape index: {}]
  %s1 = inlined_call_operand.vmem [shape: bf16[3,32], index: 1, kind: input, shape index: {}]
  %s2 = inlined_call_operand.vmem [shape: f32[1,32], index: 2, kind: input, shape index: {}]
  %s3 = inlined_call_operand.vmem [shape: f32[1,32], index: 3, kind: input, shape index: {}]
  %s4 = inlined_call_operand.vmem [shape: bf16[2,8,32], index: 4, kind: output, shape index: {}]
  %s5 = sld [smem:[#allocation0]]
  $region49: #{conformer_forward.30} parent=0
    _
  %s7 = ssub.s32 1, %s5
  %s8 = scalar_select 0, %s7, %s5
  loop: start=0, step=1, limit=4
  $region2: #{conformer_forward.30} parent=0 // loop_pre_header
    _
  $region3: #{conformer_forward.30} parent=0 // loop_header
    %s10 = sphi 0, %s14
    %p11 = scmp.ge.s32.totalorder %s10, 4
    %s20 = sphi 0, %s22
    %s23 = sphi 0, %s20
    %s24 = sphi 0, %s23
    %s40 = sphi 0, %s24
    %s44 = sphi 0, %s44
    %s46 = sphi 0, %s44
    %s47 = sphi 0, %s46
    %s61 = sphi 0, %s47
    %s65 = sphi 0, %s65
    %s67 = sphi 0, %s65
    %s68 = sphi 0, %s67
    %s82 = sphi 0, %s68
    %s86 = sphi 0, %s86
    %s88 = sphi 0, %s86
    %s89 = sphi 0, %s88
    %s103 = sphi 0, %s89
    %s109 = sphi 0, %s111
    %s112 = sphi 0, %s109
    %s113 = sphi 0, %s112
    %s129 = sphi 0, %s113
  $region4: #{conformer_forward.30} parent=0 // loop_header_branch
    %13 = sbr.rel (%p11) target = $region8
  $region5: #{conformer_forward.30} parent=0 // loop_body
    %s15 = ssub.s32 %s10, 1
    %s16 = ssub.s32 %s10, 2
    %s17 = sadd.s32 %s10, 1
    %s18 = ssub.s32 %s10, %s17
    %p19 = scmp.eq.s32.totalorder %s18, 0
    %s21 = sadd.s32 %s20, 1
    %s22 = scalar_select %p19, %s20, %s21
    %p25 = pneg %p19
    %p26 = scmp.eq.s32.totalorder %s10, 1
    %p27 = por %p25, %p26
    %p28 = scmp.ne.s32.totalorder %s20, %s23
    %p29 = scmp.eq.s32.totalorder %s10, 0
    %p30 = por %p28, %p29
    %p31 = scmp.ne.s32.totalorder %s20, %s23
    %p32 = scmp.eq.s32.totalorder %s15, 1
    %p33 = por %p31, %p32
    %p34 = scmp.ne.s32.totalorder %s23, %s24
    %p35 = scmp.eq.s32.totalorder %s15, 0
    %p36 = por %p34, %p35
    %p37 = scmp.ne.s32.totalorder %s23, %s24
    %p38 = scmp.eq.s32.totalorder %s16, 1
    %p39 = por %p37, %p38
    %p41 = scmp.ne.s32.totalorder %s24, %s40
    %p42 = scmp.eq.s32.totalorder %s16, 0
    %p43 = por %p41, %p42
    %s45 = sadd.s32 %s44, 1
    %p48 = scmp.eq.s32.totalorder %s10, 1
    %p49 = scmp.ne.s32.totalorder %s44, %s46
    %p50 = scmp.eq.s32.totalorder %s10, 0
    %p51 = por %p49, %p50
    %p52 = scmp.ne.s32.totalorder %s44, %s46
    %p53 = scmp.eq.s32.totalorder %s15, 1
    %p54 = por %p52, %p53
    %p55 = scmp.ne.s32.totalorder %s46, %s47
    %p56 = scmp.eq.s32.totalorder %s15, 0
    %p57 = por %p55, %p56
    %p58 = scmp.ne.s32.totalorder %s46, %s47
    %p59 = scmp.eq.s32.totalorder %s16, 1
    %p60 = por %p58, %p59
    %p62 = scmp.ne.s32.totalorder %s47, %s61
    %p63 = scmp.eq.s32.totalorder %s16, 0
    %p64 = por %p62, %p63
    %s66 = sadd.s32 %s65, 1
    %p69 = scmp.eq.s32.totalorder %s10, 1
    %p70 = scmp.ne.s32.totalorder %s65, %s67
    %p71 = scmp.eq.s32.totalorder %s10, 0
    %p72 = por %p70, %p71
    %p73 = scmp.ne.s32.totalorder %s65, %s67
    %p74 = scmp.eq.s32.totalorder %s15, 1
    %p75 = por %p73, %p74
    %p76 = scmp.ne.s32.totalorder %s67, %s68
    %p77 = scmp.eq.s32.totalorder %s15, 0
    %p78 = por %p76, %p77
    %p79 = scmp.ne.s32.totalorder %s67, %s68
    %p80 = scmp.eq.s32.totalorder %s16, 1
    %p81 = por %p79, %p80
    %p83 = scmp.ne.s32.totalorder %s68, %s82
    %p84 = scmp.eq.s32.totalorder %s16, 0
    %p85 = por %p83, %p84
    %s87 = sadd.s32 %s86, 1
    %p90 = scmp.eq.s32.totalorder %s10, 1
    %p91 = scmp.ne.s32.totalorder %s86, %s88
    %p92 = scmp.eq.s32.totalorder %s10, 0
    %p93 = por %p91, %p92
    %p94 = scmp.ne.s32.totalorder %s86, %s88
    %p95 = scmp.eq.s32.totalorder %s15, 1
    %p96 = por %p94, %p95
    %p97 = scmp.ne.s32.totalorder %s88, %s89
    %p98 = scmp.eq.s32.totalorder %s15, 0
    %p99 = por %p97, %p98
    %p100 = scmp.ne.s32.totalorder %s88, %s89
    %p101 = scmp.eq.s32.totalorder %s16, 1
    %p102 = por %p100, %p101
    %p104 = scmp.ne.s32.totalorder %s89, %s103
    %p105 = scmp.eq.s32.totalorder %s16, 0
    %p106 = por %p104, %p105
    %s107 = ssub.s32 %s10, %s17
    %p108 = scmp.eq.s32.totalorder %s107, 0
    %s110 = sadd.s32 %s109, 1
    %s111 = scalar_select %p108, %s109, %s110
    %p114 = pneg %p108
    %p115 = scmp.eq.s32.totalorder %s10, 1
    %p116 = por %p114, %p115
    %p117 = scmp.ne.s32.totalorder %s109, %s112
    %p118 = scmp.eq.s32.totalorder %s10, 0
    %p119 = por %p117, %p118
    %p120 = scmp.ne.s32.totalorder %s109, %s112
    %p121 = scmp.eq.s32.totalorder %s15, 1
    %p122 = por %p120, %p121
    %p123 = scmp.ne.s32.totalorder %s112, %s113
    %p124 = scmp.eq.s32.totalorder %s15, 0
    %p125 = por %p123, %p124
    %p126 = scmp.ne.s32.totalorder %s112, %s113
    %p127 = scmp.eq.s32.totalorder %s16, 1
    %p128 = por %p126, %p127
    %p130 = scmp.ne.s32.totalorder %s113, %s129
    %p131 = scmp.eq.s32.totalorder %s16, 0
    %p132 = por %p130, %p131
    %p133 = scmp.le.s32.totalorder 1, %s10
    %p134 = scmp.lt.s32.totalorder %s10, 3
    %p135 = pnand %p133, %p134
    %p136 = pneg %p135
    // Predicated region
    $region9: #{conformer_forward.30} parent=5 // pred_check
      _
    $region10: #{conformer_forward.30} parent=5 // pred_check_branch
      %138 = sbr.rel (%p135) target = $region12
    $region11: #{conformer_forward.30} parent=5 // pred_region
      %s139 = ssub.s32 %s10, 1
      // Predicated region
      $region13: #{conformer_forward.30} parent=11 // pred_check
        %p140 = pneg %p57
      $region14: #{conformer_forward.30} parent=11 // pred_check_branch
        %142 = sbr.rel (%p140) target = $region16
      $region15: #{conformer_forward.30} parent=11 // pred_region
        _
      $region16: #{conformer_forward.30} parent=11 // pred_fallthru
        _
      // Predicated region
      $region17: #{conformer_forward.30} parent=11 // pred_check
        %p143 = pneg %p78
      $region18: #{conformer_forward.30} parent=11 // pred_check_branch
        %145 = sbr.rel (%p143) target = $region20
      $region19: #{conformer_forward.30} parent=11 // pred_region
        _
      $region20: #{conformer_forward.30} parent=11 // pred_fallthru
        _
      // Predicated region
      $region21: #{conformer_forward.30} parent=11 // pred_check
        %p146 = pneg %p99
      $region22: #{conformer_forward.30} parent=11 // pred_check_branch
        %148 = sbr.rel (%p146) target = $region24
      $region23: #{conformer_forward.30} parent=11 // pred_region
        _
      $region24: #{conformer_forward.30} parent=11 // pred_fallthru
        _
    $region12: #{conformer_forward.30} parent=5 // pred_fallthru
      _
    %p149 = scmp.lt.s32.totalorder %s10, 2
    // Predicated region
    $region25: #{conformer_forward.30} parent=5 // pred_check
      %p150 = pneg %p149
    $region26: #{conformer_forward.30} parent=5 // pred_check_branch
      %152 = sbr.rel (%p150) target = $region28
    $region27: #{conformer_forward.30} parent=5 // pred_region
      // Predicated region
      $region29: #{conformer_forward.30} parent=27 // pred_check
        %p153 = pneg %p30
      $region30: #{conformer_forward.30} parent=27 // pred_check_branch
        %155 = sbr.rel (%p153) target = $region32
      $region31: #{conformer_forward.30} parent=27 // pred_region
        %p156 = scmp.lt.s32.totalorder %s10, 1
        %s157 = scalar_select %p156, %s10, 1
        %s158 = smul.addr %s157, 4
        %s159 = scalar_lea.vmem %s0, %s158
      $region32: #{conformer_forward.30} parent=27 // pred_fallthru
        _
    $region28: #{conformer_forward.30} parent=5 // pred_fallthru
      _
    %p160 = scmp.le.s32.totalorder 1, %s10
    %p161 = scmp.lt.s32.totalorder %s10, 3
    %p162 = pnand %p160, %p161
    %p163 = pneg %p162
    // Predicated region
    $region33: #{conformer_forward.30} parent=5 // pred_check
      _
    $region34: #{conformer_forward.30} parent=5 // pred_check_branch
      %165 = sbr.rel (%p162) target = $region36
    $region35: #{conformer_forward.30} parent=5 // pred_region
      %s166 = ssub.s32 %s10, 1
      %p167 = scmp.lt.s32.totalorder %s15, 1
      %s168 = scalar_select %p167, %s15, 1
      %s169 = smul.addr %s168, 4
      %s170 = scalar_lea.vmem %s0, %s169
      %p171 = pneg %p36
      %p172 = pneg %p33
      %p173 = pneg %p57
      %p174 = pneg %p54
      %p175 = pneg %p78
      %p176 = pneg %p75
      %p177 = pneg %p99
      %p178 = pneg %p96
      %p179 = pneg %p125
      %p180 = pneg %p122
      %p181 = scmp.lt.s32.totalorder %s15, 1
      %s182 = scalar_select %p181, %s15, 1
      %s183 = smul.addr %s182, 4
      %s184 = scalar_lea.vmem %s4, %s183
      %p185 = scmp.lt.s32.totalorder %s15, 1
      %s186 = scalar_select %p185, %s15, 1
      %s187 = smul.addr %s186, 4
      %s188 = scalar_lea.vmem %s0, %s187
      %p189 = scmp.lt.s32.totalorder %s15, 1
      %s190 = scalar_select %p189, %s15, 1
      %s191 = smul.addr %s190, 4
      %s192 = scalar_lea.vmem %s4, %s191
      %v193 = vld [vmem:[%s188] sm:$0xf]
      %v194 = vunpack.c.l.bf16 %v193
      %v195 = vld [vmem:[%s1] sm:$0x3]
      %v196 = vunpack.c.l.bf16 %v195
      %v197 = vlaneseq
      %v198 = vshrl.u32 %v197, 7
      %v199 = vrot.slane %v194, 7
      %vm200 = vcmp.ge.s32.totalorder %v198, 1
      %v201 = vsel %vm200, 1, 0
      %vm202 = vcmp.eq.s32.totalorder %v201, 1
      %v203 = vsel %vm202, %v199, 0.0
      %v204 = vlaneseq
      %v205 = vshrl.u32 %v204, 7
      %v206 = vsub.s32 0, %v205
      %v207 = vrot.slane %v196, %v206
      %v208 = vmul.f32 %v203, %v207
      %v209 = vadd.f32 %v208, 0.0
      %v210 = vlaneseq
      %v211 = vshrl.u32 %v210, 7
      %v212 = vsub.s32 1, %v211
      %v213 = vrot.slane %v196, %v212
      %v214 = vmul.f32 %v194, %v213
      %v215 = vadd.f32 %v209, %v214
      %v216 = vrot.slane %v194, 1
      %vm217 = vcmp.lt.s32.totalorder %v198, 7
      %v218 = vsel %vm217, 1, 0
      %vm219 = vcmp.eq.s32.totalorder %v218, 1
      %v220 = vsel %vm219, %v216, 0.0
      %v221 = vlaneseq
      %v222 = vshrl.u32 %v221, 7
      %v223 = vsub.s32 2, %v222
      %v224 = vrot.slane %v196, %v223
      %v225 = vmul.f32 %v220, %v224
      %v226 = vadd.f32 %v215, %v225
      %v227 = vld [vmem:[%s2] sm:$0x1]
      %v229 = vlaneseq
      %v230 = vshrl.u32 %v229, 7
      %v231 = vsub.s32 0, %v230
      %v232 = vrot.slane %v227, %v231
      %v234 = vmul.f32 %v226, %v232
      %v235 = vld [vmem:[%s3] sm:$0x1]
      %v237 = vlaneseq
      %v238 = vshrl.u32 %v237, 7
      %v239 = vsub.s32 0, %v238
      %v240 = vrot.slane %v235, %v239
      %v242 = vadd.f32 %v234, %v240
      %v243 = vxor.u32 %v242, 2147483648
      %v244 = vmul.f32 %v243, 1.442695
      %v245 = vpow.pop %v244
      %v246 = vadd.f32 %v245, 1.0
      %v247 = vrcp.pop %v246
      %v248 = vmul.f32 1.0, %v247
      %v249 = vmul.f32 %v242, %v248
      %v250 = vpack.c.bf16 %v249, %v249
      %vm251 = vcmask 257024
      %252 = vst.msk [vmem:[%s192] sm:$0xf] %vm251, %v250
      %p253 = scmp.lt.s32.totalorder %s15, 1
      %s254 = scalar_select %p253, %s15, 1
      %s255 = smul.addr %s254, 4
      %s256 = scalar_lea.vmem %s4, %s255
      // Predicated region
      $region37: #{conformer_forward.30} parent=35 // pred_check
        %p257 = pneg %p122
      $region38: #{conformer_forward.30} parent=35 // pred_check_branch
        %259 = sbr.rel (%p257) target = $region40
      $region39: #{conformer_forward.30} parent=35 // pred_region
        _
      $region40: #{conformer_forward.30} parent=35 // pred_fallthru
        _
    $region36: #{conformer_forward.30} parent=5 // pred_fallthru
      _
    %p260 = scmp.le.s32.totalorder 2, %s10
    // Predicated region
    $region41: #{conformer_forward.30} parent=5 // pred_check
      %p261 = pneg %p260
    $region42: #{conformer_forward.30} parent=5 // pred_check_branch
      %263 = sbr.rel (%p261) target = $region44
    $region43: #{conformer_forward.30} parent=5 // pred_region
      %s264 = ssub.s32 %s10, 2
      // Predicated region
      $region45: #{conformer_forward.30} parent=43 // pred_check
        %p265 = pneg %p128
      $region46: #{conformer_forward.30} parent=43 // pred_check_branch
        %267 = sbr.rel (%p265) target = $region48
      $region47: #{conformer_forward.30} parent=43 // pred_region
        %p268 = scmp.lt.s32.totalorder %s16, 1
        %s269 = scalar_select %p268, %s16, 1
        %s270 = smul.addr %s269, 4
        %s271 = scalar_lea.vmem %s4, %s270
      $region48: #{conformer_forward.30} parent=43 // pred_fallthru
        _
    $region44: #{conformer_forward.30} parent=5 // pred_fallthru
      _
  $region6: #{conformer_forward.30} parent=0 // loop_footer
    %s14 = sadd.s32 1, %s10
  $region7: #{conformer_forward.30} parent=0 // loop_footer_branch
    %9 = sbr.rel target = $region3
  $region8: #{conformer_forward.30} parent=0 // loop_exit
    _

// kernel: conformer_forward.33
$region0: #{conformer_forward.33}
  #allocation0 [shape = 'u32[]', space=smem, size = 0x4, offset = 0x4, fixed_abs, tag = 'smem constant byte address 0x4 - core index']
  #allocation1 [shape = 'u32[144,128]{1,0:T(1,128)}', space=vmem, size = 0x12000, scoped, tag = 'internal scratch']
  #allocation2 [shape = 'f32[16,32]{1,0:T(8,128)}', space=vmem, size = 0x2000, scoped, tag = 'scratch operand']
  %s0 = inlined_call_operand.vmem [shape: bf16[16,128], index: 0, kind: input, shape index: {}]
  %s1 = inlined_call_operand.vmem [shape: bf16[128,32], index: 1, kind: input, shape index: {}]
  %s2 = inlined_call_operand.vmem [shape: f32[1,32], index: 2, kind: input, shape index: {}]
  %s3 = inlined_call_operand.vmem [shape: bf16[16,32], index: 3, kind: input, shape index: {}]
  %s4 = inlined_call_operand.vmem [shape: f32[1,32], index: 4, kind: input, shape index: {}]
  %s5 = inlined_call_operand.vmem [shape: f32[1,32], index: 5, kind: input, shape index: {}]
  %s6 = inlined_call_operand.vmem [shape: bf16[16,32], index: 6, kind: output, shape index: {}]
  %s7 = sld [smem:[#allocation0]]
  $region42: #{conformer_forward.33} parent=0
    _
  %s9 = ssub.s32 1, %s7
  %s10 = scalar_select 0, %s9, %s7
  // Predicated region
  $region2: #{conformer_forward.33} parent=0 // pred_check
    _
  $region3: #{conformer_forward.33} parent=0 // pred_check_branch
    %12 = sbr.rel (0) target = $region5
  $region4: #{conformer_forward.33} parent=0 // pred_region
    _
  $region5: #{conformer_forward.33} parent=0 // pred_fallthru
    _
  // Predicated region
  $region6: #{conformer_forward.33} parent=0 // pred_check
    _
  $region7: #{conformer_forward.33} parent=0 // pred_check_branch
    %14 = sbr.rel (0) target = $region9
  $region8: #{conformer_forward.33} parent=0 // pred_region
    _
  $region9: #{conformer_forward.33} parent=0 // pred_fallthru
    _
  // Predicated region
  $region10: #{conformer_forward.33} parent=0 // pred_check
    _
  $region11: #{conformer_forward.33} parent=0 // pred_check_branch
    %16 = sbr.rel (0) target = $region13
  $region12: #{conformer_forward.33} parent=0 // pred_region
    _
  $region13: #{conformer_forward.33} parent=0 // pred_fallthru
    _
  // Predicated region
  $region14: #{conformer_forward.33} parent=0 // pred_check
    _
  $region15: #{conformer_forward.33} parent=0 // pred_check_branch
    %18 = sbr.rel (0) target = $region17
  $region16: #{conformer_forward.33} parent=0 // pred_region
    _
  $region17: #{conformer_forward.33} parent=0 // pred_fallthru
    _
  // Predicated region
  $region18: #{conformer_forward.33} parent=0 // pred_check
    _
  $region19: #{conformer_forward.33} parent=0 // pred_check_branch
    %20 = sbr.rel (0) target = $region21
  $region20: #{conformer_forward.33} parent=0 // pred_region
    _
  $region21: #{conformer_forward.33} parent=0 // pred_fallthru
    _
  // Predicated region
  $region22: #{conformer_forward.33} parent=0 // pred_check
    _
  $region23: #{conformer_forward.33} parent=0 // pred_check_branch
    %22 = sbr.rel (0) target = $region25
  $region24: #{conformer_forward.33} parent=0 // pred_region
    _
  $region25: #{conformer_forward.33} parent=0 // pred_fallthru
    _
  %p24 = scmp.eq.s32.totalorder 0, 0
  // Predicated region
  $region26: #{conformer_forward.33} parent=0 // pred_check
    %p25 = pneg %p24
  $region27: #{conformer_forward.33} parent=0 // pred_check_branch
    %27 = sbr.rel (%p25) target = $region29
  $region28: #{conformer_forward.33} parent=0 // pred_region
    %vm28 = vcmask 261120
    %29 = vst.msk [vmem:[#allocation2] sm:$0xff] %vm28, 0.0
    %30 = vst.msk [vmem:[#allocation2 + $0x8] sm:$0xff] %vm28, 0.0
  $region29: #{conformer_forward.33} parent=0 // pred_fallthru
    _
  %v31 = vld [vmem:[%s0] sm:$0xf]
  %v32 = vld [vmem:[%s0 + $0x4] sm:$0xf]
  %v33 = vld [vmem:[#allocation2] sm:$0xff]
  %v34 = vld [vmem:[#allocation2 + $0x8] sm:$0xff]
  %v35 = vld [vmem:[%s1] sm:$0xf]
  %v36 = vld [vmem:[%s1 + $0x4] sm:$0xf]
  %v37 = vld [vmem:[%s1 + $0x8] sm:$0xf]
  %v38 = vld [vmem:[%s1 + $0xc] sm:$0xf]
  %v39 = vld [vmem:[%s1 + $0x10] sm:$0xf]
  %v40 = vld [vmem:[%s1 + $0x14] sm:$0xf]
  %v41 = vld [vmem:[%s1 + $0x18] sm:$0xf]
  %v42 = vld [vmem:[%s1 + $0x1c] sm:$0xf]
  %v43 = vld [vmem:[%s1 + $0x20] sm:$0xf]
  %v44 = vld [vmem:[%s1 + $0x24] sm:$0xf]
  %v45 = vld [vmem:[%s1 + $0x28] sm:$0xf]
  %v46 = vld [vmem:[%s1 + $0x2c] sm:$0xf]
  %v47 = vld [vmem:[%s1 + $0x30] sm:$0xf]
  %v48 = vld [vmem:[%s1 + $0x34] sm:$0xf]
  %v49 = vld [vmem:[%s1 + $0x38] sm:$0xf]
  %v50 = vld [vmem:[%s1 + $0x3c] sm:$0xf]
  %v53 = vunpack.c.l.b16 %v31
  %v54 = vunpack.c.l.b16 %v32
  %v55 = vpack.c.b16 %v54, %v53
  %v73 = vunpack.c.l.b16 %v35
  %v74 = vunpack.c.l.b16 %v36
  %v75 = vunpack.c.l.b16 %v37
  %v76 = vunpack.c.l.b16 %v38
  %v77 = vunpack.c.l.b16 %v39
  %v78 = vunpack.c.l.b16 %v40
  %v79 = vunpack.c.l.b16 %v41
  %v80 = vunpack.c.l.b16 %v42
  %v81 = vunpack.c.l.b16 %v43
  %v82 = vunpack.c.l.b16 %v44
  %v83 = vunpack.c.l.b16 %v45
  %v84 = vunpack.c.l.b16 %v46
  %v85 = vunpack.c.l.b16 %v47
  %v86 = vunpack.c.l.b16 %v48
  %v87 = vunpack.c.l.b16 %v49
  %v88 = vunpack.c.l.b16 %v50
  %v89 = vpack.c.b16 %v74, %v73
  %v90 = vpack.c.b16 %v76, %v75
  %v91 = vpack.c.b16 %v78, %v77
  %v92 = vpack.c.b16 %v80, %v79
  %v93 = vpack.c.b16 %v82, %v81
  %v94 = vpack.c.b16 %v84, %v83
  %v95 = vpack.c.b16 %v86, %v85
  %v96 = vpack.c.b16 %v88, %v87
  %105 = vmatprep.subr.bf16.mxu0 0
  %106 = vmatpush1.bf16.msra.mxu0 %v89
  %107 = vmatprep.subr.bf16.mxu0 0
  %108 = vmatpush1.bf16.msra.mxu0 %v90
  %109 = vmatprep.subr.bf16.mxu0 0
  %110 = vmatpush1.bf16.msra.mxu0 %v91
  %111 = vmatprep.subr.bf16.mxu0 0
  %112 = vmatpush1.bf16.msra.mxu0 %v92
  %113 = vmatprep.subr.bf16.mxu0 0
  %114 = vmatpush1.bf16.msra.mxu0 %v93
  %115 = vmatprep.subr.bf16.mxu0 0
  %116 = vmatpush1.bf16.msra.mxu0 %v94
  %117 = vmatprep.subr.bf16.mxu0 0
  %118 = vmatpush1.bf16.msra.mxu0 %v95
  %119 = vmatprep.subr.bf16.mxu0 0
  %120 = vmatpush1.bf16.msra.mxu0 %v96
  %121 = vmatprep.subr.bf16.mxu0 0
  %122 = vmatpush1.bf16.msra.mxu0 0
  %123 = vmatprep.subr.bf16.mxu0 0
  %124 = vmatpush1.bf16.msra.mxu0 0
  %125 = vmatprep.subr.bf16.mxu0 0
  %126 = vmatpush1.bf16.msra.mxu0 0
  %127 = vmatprep.subr.bf16.mxu0 0
  %128 = vmatpush1.bf16.msra.mxu0 0
  %129 = vmatprep.subr.bf16.mxu0 0
  %130 = vmatpush1.bf16.msra.mxu0 0
  %131 = vmatprep.subr.bf16.mxu0 0
  %132 = vmatpush1.bf16.msra.mxu0 0
  %133 = vmatprep.subr.bf16.mxu0 0
  %134 = vmatpush1.bf16.msra.mxu0 0
  %135 = vmatprep.subr.bf16.mxu0 0
  %136 = vmatpush1.bf16.msra.mxu0 0
  %137 = vmatprep.mubr.bf16.mxu0 0
  %138 = vmatmul.mubr.bf16.gmra.mrb[0].mxu0 %v55
  %v139 = vpop.f32.mrb[0].mxu0
  %v140 = vadd.f32 0.0, %v139
  %v141 = vpop.f32.mrb[0].mxu0
  %v142 = vpop.f32.mrb[0].mxu0
  %v143 = vadd.f32 0.0, %v142
  %v144 = vpop.f32.mrb[0].mxu0
  %145 = vdwg.mxu0
  %v146 = vadd.f32 %v33, %v140
  %v147 = vadd.f32 %v34, %v143
  %vm148 = vcmask 261120
  %149 = vst.msk [vmem:[#allocation2] sm:$0xff] %vm148, %v146
  %150 = vst.msk [vmem:[#allocation2 + $0x8] sm:$0xff] %vm148, %v147
  // Predicated region
  $region30: #{conformer_forward.33} parent=0 // pred_check
    %p151 = pneg %p24
  $region31: #{conformer_forward.33} parent=0 // pred_check_branch
    %153 = sbr.rel (%p151) target = $region33
  $region32: #{conformer_forward.33} parent=0 // pred_region
    %v154 = vld [vmem:[#allocation2] sm:$0xff]
    %v155 = vld [vmem:[#allocation2 + $0x8] sm:$0xff]
    %v156 = vld [vmem:[%s2] sm:$0x1]
    %v158 = vlaneseq
    %v159 = vshrl.u32 %v158, 7
    %v160 = vsub.s32 0, %v159
    %v161 = vrot.slane %v156, %v160
    %v163 = vadd.f32 %v154, %v161
    %v164 = vadd.f32 %v155, %v161
    %v165 = vld [vmem:[%s3] sm:$0xf]
    %v166 = vld [vmem:[%s3 + $0x4] sm:$0xf]
    %v167 = vunpack.c.l.bf16 %v165
    %v168 = vunpack.c.l.bf16 %v166
    %v169 = vmul.f32 %v163, 0.5
    %v170 = vmul.f32 %v164, 0.5
    %v171 = vadd.f32 %v167, %v169
    %v172 = vadd.f32 %v168, %v170
    %v173 = vsel %vm148, %v171, 0.0
    %174 = vadd.xlane.f32.xlu0 %v173
    %v175 = vpop.xlane.xlu0 %174
    %v176 = vsel %vm148, %v172, 0.0
    %177 = vadd.xlane.f32.xlu0 %v176
    %v178 = vpop.xlane.xlu0 %177
    %v179 = vrcp.pop 32.0
    %v180 = vmul.f32 %v175, %v179
    %v181 = vmul.f32 %v178, %v179
    %v182 = vsub.f32 %v171, %v180
    %v183 = vsub.f32 %v172, %v181
    %v184 = vmul.f32 %v182, %v182
    %v185 = vmul.f32 %v183, %v183
    %v186 = vsel %vm148, %v184, 0.0
    %187 = vadd.xlane.f32.xlu0 %v186
    %v188 = vpop.xlane.xlu0 %187
    %v189 = vsel %vm148, %v185, 0.0
    %190 = vadd.xlane.f32.xlu0 %v189
    %v191 = vpop.xlane.xlu0 %190
    %v192 = vmul.f32 %v188, %v179
    %v193 = vmul.f32 %v191, %v179
    %v194 = vadd.f32 %v192, 1e-05
    %v195 = vadd.f32 %v193, 1e-05
    %v196 = vrsqrt.pop %v194
    %v197 = vrsqrt.pop %v195
    %v198 = vmul.f32 %v182, %v196
    %v199 = vmul.f32 %v183, %v197
    %v200 = vld [vmem:[%s4] sm:$0x1]
    %v202 = vlaneseq
    %v203 = vshrl.u32 %v202, 7
    %v204 = vsub.s32 0, %v203
    %v205 = vrot.slane %v200, %v204
    %v207 = vmul.f32 %v198, %v205
    %v208 = vmul.f32 %v199, %v205
    %v209 = vld [vmem:[%s5] sm:$0x1]
    %v211 = vlaneseq
    %v212 = vshrl.u32 %v211, 7
    %v213 = vsub.s32 0, %v212
    %v214 = vrot.slane %v209, %v213
    %v216 = vadd.f32 %v207, %v214
    %v217 = vadd.f32 %v208, %v214
    %v218 = vpack.c.bf16 %v217, %v216
    %v220 = vunpack.c.l.b16 %v218
    %v221 = vunpack.c.h.b16 %v218
    %v222 = vpack.c.b16 %v220, %v220
    %v223 = vpack.c.b16 %v221, %v221
    %vm226 = vcmask 257024
    %227 = vst.msk [vmem:[%s6] sm:$0xf] %vm226, %v222
    %228 = vst.msk [vmem:[%s6 + $0x4] sm:$0xf] %vm226, %v223
  $region33: #{conformer_forward.33} parent=0 // pred_fallthru
    _
  // Predicated region
  $region34: #{conformer_forward.33} parent=0 // pred_check
    _
  $region35: #{conformer_forward.33} parent=0 // pred_check_branch
    %230 = sbr.rel (0) target = $region37
  $region36: #{conformer_forward.33} parent=0 // pred_region
    _
  $region37: #{conformer_forward.33} parent=0 // pred_fallthru
    _
  // Predicated region
  $region38: #{conformer_forward.33} parent=0 // pred_check
    _
  $region39: #{conformer_forward.33} parent=0 // pred_check_branch
    %232 = sbr.rel (0) target = $region41
  $region40: #{conformer_forward.33} parent=0 // pred_region
    _
  $region41: #{conformer_forward.33} parent=0 // pred_fallthru
    _

// kernel: conformer_forward.44
$region0: #{conformer_forward.44}
  #allocation0 [shape = 'u32[]', space=smem, size = 0x4, offset = 0x4, fixed_abs, tag = 'smem constant byte address 0x4 - core index']
  #allocation1 [shape = 'u32[144,128]{1,0:T(1,128)}', space=vmem, size = 0x12000, scoped, tag = 'internal scratch']
  #allocation2 [shape = 'f32[16,128]{1,0:T(8,128)}', space=vmem, size = 0x2000, scoped, tag = 'scratch operand']
  %s0 = inlined_call_operand.vmem [shape: bf16[16,32], index: 0, kind: input, shape index: {}]
  %s1 = inlined_call_operand.vmem [shape: bf16[32,128], index: 1, kind: input, shape index: {}]
  %s2 = inlined_call_operand.vmem [shape: f32[1,128], index: 2, kind: input, shape index: {}]
  %s3 = inlined_call_operand.vmem [shape: bf16[16,128], index: 3, kind: output, shape index: {}]
  %s4 = sld [smem:[#allocation0]]
  $region30: #{conformer_forward.44} parent=0
    _
  %s6 = ssub.s32 1, %s4
  %s7 = scalar_select 0, %s6, %s4
  // Predicated region
  $region2: #{conformer_forward.44} parent=0 // pred_check
    _
  $region3: #{conformer_forward.44} parent=0 // pred_check_branch
    %9 = sbr.rel (0) target = $region5
  $region4: #{conformer_forward.44} parent=0 // pred_region
    _
  $region5: #{conformer_forward.44} parent=0 // pred_fallthru
    _
  // Predicated region
  $region6: #{conformer_forward.44} parent=0 // pred_check
    _
  $region7: #{conformer_forward.44} parent=0 // pred_check_branch
    %11 = sbr.rel (0) target = $region9
  $region8: #{conformer_forward.44} parent=0 // pred_region
    _
  $region9: #{conformer_forward.44} parent=0 // pred_fallthru
    _
  // Predicated region
  $region10: #{conformer_forward.44} parent=0 // pred_check
    _
  $region11: #{conformer_forward.44} parent=0 // pred_check_branch
    %13 = sbr.rel (0) target = $region13
  $region12: #{conformer_forward.44} parent=0 // pred_region
    _
  $region13: #{conformer_forward.44} parent=0 // pred_fallthru
    _
  %p15 = scmp.eq.s32.totalorder 0, 0
  // Predicated region
  $region14: #{conformer_forward.44} parent=0 // pred_check
    %p16 = pneg %p15
  $region15: #{conformer_forward.44} parent=0 // pred_check_branch
    %18 = sbr.rel (%p16) target = $region17
  $region16: #{conformer_forward.44} parent=0 // pred_region
    %19 = vst [vmem:[#allocation2] sm:$0xff] 0.0
    %20 = vst [vmem:[#allocation2 + $0x8] sm:$0xff] 0.0
  $region17: #{conformer_forward.44} parent=0 // pred_fallthru
    _
  %v21 = vld [vmem:[%s0] sm:$0xf]
  %v22 = vld [vmem:[%s0 + $0x4] sm:$0xf]
  %v23 = vld [vmem:[#allocation2] sm:$0xff]
  %v24 = vld [vmem:[#allocation2 + $0x8] sm:$0xff]
  %v25 = vld [vmem:[%s1] sm:$0xf]
  %v26 = vld [vmem:[%s1 + $0x4] sm:$0xf]
  %v27 = vld [vmem:[%s1 + $0x8] sm:$0xf]
  %v28 = vld [vmem:[%s1 + $0xc] sm:$0xf]
  %v31 = vunpack.c.l.b16 %v21
  %v32 = vunpack.c.l.b16 %v22
  %v33 = vpack.c.b16 %v32, %v31
  %v38 = vunpack.c.l.b16 %v25
  %v39 = vunpack.c.l.b16 %v26
  %v40 = vunpack.c.l.b16 %v27
  %v41 = vunpack.c.l.b16 %v28
  %v42 = vpack.c.b16 %v39, %v38
  %v43 = vpack.c.b16 %v41, %v40
  %vm46 = vcmask 261120
  %v48 = vsel %vm46, %v33, 0
  %50 = vmatprep.subr.bf16.mxu0 0
  %51 = vmatpush1.bf16.msra.mxu0 %v42
  %52 = vmatprep.subr.bf16.mxu0 0
  %53 = vmatpush1.bf16.msra.mxu0 %v43
  %54 = vmatprep.subr.bf16.mxu0 0
  %55 = vmatpush1.bf16.msra.mxu0 0
  %56 = vmatprep.subr.bf16.mxu0 0
  %57 = vmatpush1.bf16.msra.mxu0 0
  %58 = vmatprep.subr.bf16.mxu0 0
  %59 = vmatpush1.bf16.msra.mxu0 0
  %60 = vmatprep.subr.bf16.mxu0 0
  %61 = vmatpush1.bf16.msra.mxu0 0
  %62 = vmatprep.subr.bf16.mxu0 0
  %63 = vmatpush1.bf16.msra.mxu0 0
  %64 = vmatprep.subr.bf16.mxu0 0
  %65 = vmatpush1.bf16.msra.mxu0 0
  %66 = vmatprep.subr.bf16.mxu0 0
  %67 = vmatpush1.bf16.msra.mxu0 0
  %68 = vmatprep.subr.bf16.mxu0 0
  %69 = vmatpush1.bf16.msra.mxu0 0
  %70 = vmatprep.subr.bf16.mxu0 0
  %71 = vmatpush1.bf16.msra.mxu0 0
  %72 = vmatprep.subr.bf16.mxu0 0
  %73 = vmatpush1.bf16.msra.mxu0 0
  %74 = vmatprep.subr.bf16.mxu0 0
  %75 = vmatpush1.bf16.msra.mxu0 0
  %76 = vmatprep.subr.bf16.mxu0 0
  %77 = vmatpush1.bf16.msra.mxu0 0
  %78 = vmatprep.subr.bf16.mxu0 0
  %79 = vmatpush1.bf16.msra.mxu0 0
  %80 = vmatprep.subr.bf16.mxu0 0
  %81 = vmatpush1.bf16.msra.mxu0 0
  %82 = vmatprep.mubr.bf16.mxu0 0
  %83 = vmatmul.mubr.bf16.gmra.mrb[0].mxu0 %v48
  %v84 = vpop.f32.mrb[0].mxu0
  %v85 = vadd.f32 0.0, %v84
  %v86 = vpop.f32.mrb[0].mxu0
  %v87 = vpop.f32.mrb[0].mxu0
  %v88 = vadd.f32 0.0, %v87
  %v89 = vpop.f32.mrb[0].mxu0
  %90 = vdwg.mxu0
  %v91 = vadd.f32 %v23, %v85
  %v92 = vadd.f32 %v24, %v88
  %93 = vst [vmem:[#allocation2] sm:$0xff] %v91
  %94 = vst [vmem:[#allocation2 + $0x8] sm:$0xff] %v92
  // Predicated region
  $region18: #{conformer_forward.44} parent=0 // pred_check
    %p95 = pneg %p15
  $region19: #{conformer_forward.44} parent=0 // pred_check_branch
    %97 = sbr.rel (%p95) target = $region21
  $region20: #{conformer_forward.44} parent=0 // pred_region
    %v98 = vld [vmem:[#allocation2] sm:$0xff]
    %v99 = vld [vmem:[#allocation2 + $0x8] sm:$0xff]
    %v100 = vld [vmem:[%s2] sm:$0x1]
    %v102 = vlaneseq
    %v103 = vshrl.u32 %v102, 7
    %v104 = vsub.s32 0, %v103
    %v105 = vrot.slane %v100, %v104
    %v107 = vadd.f32 %v98, %v105
    %v108 = vadd.f32 %v99, %v105
    %v109 = vmax.f32 %v107, 0.0
    %v110 = vmax.f32 %v108, 0.0
    %v111 = vpack.c.bf16 %v110, %v109
    %v113 = vunpack.c.l.b16 %v111
    %v114 = vunpack.c.h.b16 %v111
    %v115 = vpack.c.b16 %v113, %v113
    %v116 = vpack.c.b16 %v114, %v114
    %119 = vst [vmem:[%s3] sm:$0xf] %v115
    %120 = vst [vmem:[%s3 + $0x4] sm:$0xf] %v116
  $region21: #{conformer_forward.44} parent=0 // pred_fallthru
    _
  // Predicated region
  $region22: #{conformer_forward.44} parent=0 // pred_check
    _
  $region23: #{conformer_forward.44} parent=0 // pred_check_branch
    %122 = sbr.rel (0) target = $region25
  $region24: #{conformer_forward.44} parent=0 // pred_region
    _
  $region25: #{conformer_forward.44} parent=0 // pred_fallthru
    _
  // Predicated region
  $region26: #{conformer_forward.44} parent=0 // pred_check
    _
  $region27: #{conformer_forward.44} parent=0 // pred_check_branch
    %124 = sbr.rel (0) target = $region29
  $region28: #{conformer_forward.44} parent=0 // pred_region
    _
  $region29: #{conformer_forward.44} parent=0 // pred_fallthru
    _

// kernel: conformer_forward.45
$region0: #{conformer_forward.45}
  #allocation0 [shape = 'u32[]', space=smem, size = 0x4, offset = 0x4, fixed_abs, tag = 'smem constant byte address 0x4 - core index']
  #allocation1 [shape = 'u32[144,128]{1,0:T(1,128)}', space=vmem, size = 0x12000, scoped, tag = 'internal scratch']
  #allocation2 [shape = 'f32[16,128]{1,0:T(8,128)}', space=vmem, size = 0x2000, scoped, tag = 'scratch operand']
  %s0 = inlined_call_operand.vmem [shape: bf16[16,32], index: 0, kind: input, shape index: {}]
  %s1 = inlined_call_operand.vmem [shape: bf16[32,128], index: 1, kind: input, shape index: {}]
  %s2 = inlined_call_operand.vmem [shape: f32[1,128], index: 2, kind: input, shape index: {}]
  %s3 = inlined_call_operand.vmem [shape: bf16[16,128], index: 3, kind: output, shape index: {}]
  %s4 = sld [smem:[#allocation0]]
  $region30: #{conformer_forward.45} parent=0
    _
  %s6 = ssub.s32 1, %s4
  %s7 = scalar_select 0, %s6, %s4
  // Predicated region
  $region2: #{conformer_forward.45} parent=0 // pred_check
    _
  $region3: #{conformer_forward.45} parent=0 // pred_check_branch
    %9 = sbr.rel (0) target = $region5
  $region4: #{conformer_forward.45} parent=0 // pred_region
    _
  $region5: #{conformer_forward.45} parent=0 // pred_fallthru
    _
  // Predicated region
  $region6: #{conformer_forward.45} parent=0 // pred_check
    _
  $region7: #{conformer_forward.45} parent=0 // pred_check_branch
    %11 = sbr.rel (0) target = $region9
  $region8: #{conformer_forward.45} parent=0 // pred_region
    _
  $region9: #{conformer_forward.45} parent=0 // pred_fallthru
    _
  // Predicated region
  $region10: #{conformer_forward.45} parent=0 // pred_check
    _
  $region11: #{conformer_forward.45} parent=0 // pred_check_branch
    %13 = sbr.rel (0) target = $region13
  $region12: #{conformer_forward.45} parent=0 // pred_region
    _
  $region13: #{conformer_forward.45} parent=0 // pred_fallthru
    _
  %p15 = scmp.eq.s32.totalorder 0, 0
  // Predicated region
  $region14: #{conformer_forward.45} parent=0 // pred_check
    %p16 = pneg %p15
  $region15: #{conformer_forward.45} parent=0 // pred_check_branch
    %18 = sbr.rel (%p16) target = $region17
  $region16: #{conformer_forward.45} parent=0 // pred_region
    %19 = vst [vmem:[#allocation2] sm:$0xff] 0.0
    %20 = vst [vmem:[#allocation2 + $0x8] sm:$0xff] 0.0
  $region17: #{conformer_forward.45} parent=0 // pred_fallthru
    _
  %v21 = vld [vmem:[%s0] sm:$0xf]
  %v22 = vld [vmem:[%s0 + $0x4] sm:$0xf]
  %v23 = vld [vmem:[#allocation2] sm:$0xff]
  %v24 = vld [vmem:[#allocation2 + $0x8] sm:$0xff]
  %v25 = vld [vmem:[%s1] sm:$0xf]
  %v26 = vld [vmem:[%s1 + $0x4] sm:$0xf]
  %v27 = vld [vmem:[%s1 + $0x8] sm:$0xf]
  %v28 = vld [vmem:[%s1 + $0xc] sm:$0xf]
  %v31 = vunpack.c.l.b16 %v21
  %v32 = vunpack.c.l.b16 %v22
  %v33 = vpack.c.b16 %v32, %v31
  %v38 = vunpack.c.l.b16 %v25
  %v39 = vunpack.c.l.b16 %v26
  %v40 = vunpack.c.l.b16 %v27
  %v41 = vunpack.c.l.b16 %v28
  %v42 = vpack.c.b16 %v39, %v38
  %v43 = vpack.c.b16 %v41, %v40
  %vm46 = vcmask 261120
  %v48 = vsel %vm46, %v33, 0
  %50 = vmatprep.subr.bf16.mxu0 0
  %51 = vmatpush1.bf16.msra.mxu0 %v42
  %52 = vmatprep.subr.bf16.mxu0 0
  %53 = vmatpush1.bf16.msra.mxu0 %v43
  %54 = vmatprep.subr.bf16.mxu0 0
  %55 = vmatpush1.bf16.msra.mxu0 0
  %56 = vmatprep.subr.bf16.mxu0 0
  %57 = vmatpush1.bf16.msra.mxu0 0
  %58 = vmatprep.subr.bf16.mxu0 0
  %59 = vmatpush1.bf16.msra.mxu0 0
  %60 = vmatprep.subr.bf16.mxu0 0
  %61 = vmatpush1.bf16.msra.mxu0 0
  %62 = vmatprep.subr.bf16.mxu0 0
  %63 = vmatpush1.bf16.msra.mxu0 0
  %64 = vmatprep.subr.bf16.mxu0 0
  %65 = vmatpush1.bf16.msra.mxu0 0
  %66 = vmatprep.subr.bf16.mxu0 0
  %67 = vmatpush1.bf16.msra.mxu0 0
  %68 = vmatprep.subr.bf16.mxu0 0
  %69 = vmatpush1.bf16.msra.mxu0 0
  %70 = vmatprep.subr.bf16.mxu0 0
  %71 = vmatpush1.bf16.msra.mxu0 0
  %72 = vmatprep.subr.bf16.mxu0 0
  %73 = vmatpush1.bf16.msra.mxu0 0
  %74 = vmatprep.subr.bf16.mxu0 0
  %75 = vmatpush1.bf16.msra.mxu0 0
  %76 = vmatprep.subr.bf16.mxu0 0
  %77 = vmatpush1.bf16.msra.mxu0 0
  %78 = vmatprep.subr.bf16.mxu0 0
  %79 = vmatpush1.bf16.msra.mxu0 0
  %80 = vmatprep.subr.bf16.mxu0 0
  %81 = vmatpush1.bf16.msra.mxu0 0
  %82 = vmatprep.mubr.bf16.mxu0 0
  %83 = vmatmul.mubr.bf16.gmra.mrb[0].mxu0 %v48
  %v84 = vpop.f32.mrb[0].mxu0
  %v85 = vadd.f32 0.0, %v84
  %v86 = vpop.f32.mrb[0].mxu0
  %v87 = vpop.f32.mrb[0].mxu0
  %v88 = vadd.f32 0.0, %v87
  %v89 = vpop.f32.mrb[0].mxu0
  %90 = vdwg.mxu0
  %v91 = vadd.f32 %v23, %v85
  %v92 = vadd.f32 %v24, %v88
  %93 = vst [vmem:[#allocation2] sm:$0xff] %v91
  %94 = vst [vmem:[#allocation2 + $0x8] sm:$0xff] %v92
  // Predicated region
  $region18: #{conformer_forward.45} parent=0 // pred_check
    %p95 = pneg %p15
  $region19: #{conformer_forward.45} parent=0 // pred_check_branch
    %97 = sbr.rel (%p95) target = $region21
  $region20: #{conformer_forward.45} parent=0 // pred_region
    %v98 = vld [vmem:[#allocation2] sm:$0xff]
    %v99 = vld [vmem:[#allocation2 + $0x8] sm:$0xff]
    %v100 = vld [vmem:[%s2] sm:$0x1]
    %v102 = vlaneseq
    %v103 = vshrl.u32 %v102, 7
    %v104 = vsub.s32 0, %v103
    %v105 = vrot.slane %v100, %v104
    %v107 = vadd.f32 %v98, %v105
    %v108 = vadd.f32 %v99, %v105
    %v109 = vpack.c.bf16 %v108, %v107
    %v111 = vunpack.c.l.b16 %v109
    %v112 = vunpack.c.h.b16 %v109
    %v113 = vpack.c.b16 %v111, %v111
    %v114 = vpack.c.b16 %v112, %v112
    %117 = vst [vmem:[%s3] sm:$0xf] %v113
    %118 = vst [vmem:[%s3 + $0x4] sm:$0xf] %v114
  $region21: #{conformer_forward.45} parent=0 // pred_fallthru
    _
  // Predicated region
  $region22: #{conformer_forward.45} parent=0 // pred_check
    _
  $region23: #{conformer_forward.45} parent=0 // pred_check_branch
    %120 = sbr.rel (0) target = $region25
  $region24: #{conformer_forward.45} parent=0 // pred_region
    _
  $region25: #{conformer_forward.45} parent=0 // pred_fallthru
    _
  // Predicated region
  $region26: #{conformer_forward.45} parent=0 // pred_check
    _
  $region27: #{conformer_forward.45} parent=0 // pred_check_branch
    %122 = sbr.rel (0) target = $region29
  $region28: #{conformer_forward.45} parent=0 // pred_region
    _
  $region29: #{conformer_forward.45} parent=0 // pred_fallthru
    _

</llo_original>
